<compile_context>
chip_gen: v7x
topology: tpu7x:2x2x1
jax: 0.10.0
libtpu: 0.0.40
codegen_flags: <defaults>
</compile_context>

<pallas_src>
import functools

import jax
import jax.numpy as jnp
from jax.experimental import pallas as pl
from jax.experimental.pallas import tpu as pltpu


# ------------------------------ Pallas kernel -------------------------------

def _lenet_kernel(x_ref, b1_ref, cb1_ref, b2_ref, cb2_ref,
                  w1_ref, fb1_ref, w2_ref, fb2_ref, w3_ref, fb3_ref,
                  o_ref,
                  acc1_ref, acc2_ref, p1_ref, p2_ref):
    """LeNet forward for one batch tile of BT images; activations stay in VMEM.

    Activation slabs are 2-D with rows ordered (image-row major, batch minor):
    row = h * BT + b, columns = width*channels (channel minor). Conv weights
    are pre-expanded banded matrices with even-parity output columns in lanes
    [0,128) and odd-parity in lanes [128,256).
    """
    f32 = jnp.float32
    bt = o_ref.shape[0]                       # batch tile (multiple of 8)

    # ---- conv1 (+bias+ReLU) as banded matmuls, parity-stacked along N -------
    for i in range(5):                        # kernel-height taps
        lhs = x_ref[0, i * bt:(i + 28) * bt, :]              # (28*BT, 32)
        d = jnp.dot(lhs, b1_ref[i], preferred_element_type=f32)
        if i == 0:
            acc1_ref[...] = d
        else:
            acc1_ref[...] += d

    # ---- fused 2x2 max-pool #1: width via parity lanes, height via row pairs
    bias1 = cb1_ref[...]                                      # (1, 256)
    for r in range(14):
        blk = jnp.maximum(acc1_ref[2 * r * bt:(2 * r + 2) * bt, :] + bias1, 0.0)
        wmax = jnp.maximum(blk[:, :128], blk[:, 128:])        # (2*BT, 128)
        p1_ref[r * bt:(r + 1) * bt, :] = jnp.maximum(wmax[:bt], wmax[bt:])

    # TODO(synk): nn.Dropout is identity in eval mode (what we implement);
    # train-mode MC-dropout sampling (pltpu.prng_random_bits mask) not wired in.

    # ---- conv2 (+bias+ReLU), same banded / parity-stacked scheme ------------
    for i in range(5):
        lhs = p1_ref[i * bt:(i + 10) * bt, :]                 # (10*BT, 128)
        d = jnp.dot(lhs, b2_ref[i], preferred_element_type=f32)
        if i == 0:
            acc2_ref[...] = d
        else:
            acc2_ref[...] += d

    # ---- fused 2x2 max-pool #2 ----------------------------------------------
    bias2 = cb2_ref[...]                                      # (1, 256)
    for r in range(5):
        blk = jnp.maximum(acc2_ref[2 * r * bt:(2 * r + 2) * bt, :] + bias2, 0.0)
        wmax = jnp.maximum(blk[:, :128], blk[:, 128:])        # (2*BT, 128)
        p2_ref[r * bt:(r + 1) * bt, :] = jnp.maximum(wmax[:bt], wmax[bt:])

    # ---- fc1 + ReLU: NCHW flatten folded into the pre-permuted weights ------
    h1 = jnp.zeros((bt, 120), f32)
    for h in range(5):                         # pooled-height taps, K=128 each
        h1 = h1 + jnp.dot(p2_ref[h * bt:(h + 1) * bt, :], w1_ref[h],
                          preferred_element_type=f32)
    h1 = jnp.maximum(h1 + fb1_ref[...], 0.0)                  # (BT, 120)

    # ---- fc2 + ReLU ----------------------------------------------------------
    h2 = jnp.maximum(
        jnp.dot(h1, w2_ref[...], preferred_element_type=f32) + fb2_ref[...],
        0.0)                                                  # (BT, 84)

    # ---- fc3 (logits), one (BT, 10) store per grid step ----------------------
    o_ref[...] = (jnp.dot(h2, w3_ref[...], preferred_element_type=f32)
                  + fb3_ref[...]).astype(o_ref.dtype)


# --------------------- one-time weight preprocessing ------------------------

def _banded_conv_weights(w_hwio, w_in):
    """Expand a (KH,KW,Cin,Cout) kernel into parity-split banded matrices of
    shape (2, KH, W_in*Cin, (OW//2)*Cout): for an activation slab
    in2d[h, w*Cin+ci], the valid conv output at column 2q+parity is
        sum_i in2d[oh+i, :] @ B[parity, i]  ->  [oh, q*Cout + co]."""
    kh, kw, cin, cout = w_hwio.shape
    ow = w_in - kw + 1
    owp = ow // 2
    w_pos = jnp.arange(w_in)[:, None]            # input column index (W_in, 1)
    q_pos = jnp.arange(owp)[None, :]             # pooled output column (1, OWp)
    bands = []
    for parity in (0, 1):
        j = w_pos - (2 * q_pos + parity)         # kernel-width tap index
        valid = (j >= 0) & (j < kw)
        jc = jnp.clip(j, 0, kw - 1)
        t = w_hwio[:, jc]                        # (KH, W_in, OWp, Cin, Cout)
        t = t * valid[None, :, :, None, None].astype(w_hwio.dtype)
        bands.append(
            t.transpose(0, 1, 3, 2, 4).reshape(kh, w_in * cin, owp * cout))
    return jnp.stack(bands)                      # (2, KH, W_in*Cin, OWp*Cout)


def _parity_stack(bands, k_pad, n_lane=128):
    """(2,KH,Kin,Nout) -> (KH, k_pad, 2*n_lane): parity-0 in lanes [0,Nout),
    parity-1 in lanes [n_lane, n_lane+Nout); zero-padded elsewhere."""
    _, kh, kin, nout = bands.shape
    out = jnp.zeros((kh, k_pad, 2 * n_lane), bands.dtype)
    out = out.at[:, :kin, :nout].set(bands[0])
    out = out.at[:, :kin, n_lane:n_lane + nout].set(bands[1])
    return out


def _parity_bias(bias, reps, n_lane=128):
    """Bias row matching the parity-stacked column layout (bias per cout,
    tiled over pooled width, duplicated into both parity lane groups)."""
    row = jnp.tile(bias, reps)
    out = jnp.zeros((1, 2 * n_lane), bias.dtype)
    out = out.at[0, :row.shape[0]].set(row)
    out = out.at[0, n_lane:n_lane + row.shape[0]].set(row)
    return out


def prepare_params(params):
    """One-time weight preprocessing (hoisted out of the hot path)."""
    (cw1, cb1, cw2, cb2, fw1, fb1, fw2, fb2, fw3, fb3) = params
    f32 = jnp.float32
    b1 = _parity_stack(_banded_conv_weights(cw1.astype(f32), 32), k_pad=32)
    b2 = _parity_stack(_banded_conv_weights(cw2.astype(f32), 14), k_pad=128)
    cb1_row = _parity_bias(cb1.astype(f32), 14)              # (1, 256)
    cb2_row = _parity_bias(cb2.astype(f32), 5)               # (1, 256)
    # fc1 rows are stored in PyTorch NCHW-flatten order (c, h, w); permute once
    # to the kernel's pooled (h, w, c) slab order and split into 5 per-row
    # chunks; pad K from 80 to 128 so the kernel feeds the full pooled slab.
    w1c = (fw1.astype(f32).reshape(16, 5, 5, 120)
           .transpose(1, 2, 0, 3).reshape(5, 80, 120))
    w1c = jnp.zeros((5, 128, 120), f32).at[:, :80, :].set(w1c)
    return (b1, cb1_row, b2, cb2_row, w1c,
            fb1.astype(f32).reshape(1, 120), fw2.astype(f32),
            fb2.astype(f32).reshape(1, 84), fw3.astype(f32),
            fb3.astype(f32).reshape(1, 10))


# ------------------------------ fused forward -------------------------------

def _resident(arr):
    nd = arr.ndim
    return pl.BlockSpec(arr.shape, lambda i, _nd=nd: (0,) * _nd)


def lenet_forward(x_nchw, packed, bt=32):
    """Fused LeNet forward: one pallas_call, BT images per grid step."""
    n = x_nchw.shape[0]
    (b1, cb1_row, b2, cb2_row, w1c, fb1r, w2, fb2r, w3, fb3r) = packed

    # Effective batch tile: multiple of 8 (sublane alignment), no larger than
    # the (rounded-up) batch so small batches don't over-pad.
    bt = max(8, (min(bt, ((n + 7) // 8) * 8) // 8) * 8)
    n_pad = ((n + bt - 1) // bt) * bt
    nblk = n_pad // bt

    x = x_nchw.astype(jnp.float32).reshape(n, 32, 32)        # Cin == 1
    if n_pad != n:
        x = jnp.concatenate(
            [x, jnp.zeros((n_pad - n, 32, 32), jnp.float32)], axis=0)
    # Wrapper-side layout plumbing: (N,32,32) -> (nblk, 32*BT, 32) with rows
    # ordered image-row-major / batch-minor inside each tile, so every
    # in-kernel access is a sublane-aligned 2-D slice (no in-kernel reshape).
    x_slab = (x.reshape(nblk, bt, 32, 32).transpose(0, 2, 1, 3)
              .reshape(nblk, 32 * bt, 32))

    out = pl.pallas_call(
        _lenet_kernel,
        out_shape=jax.ShapeDtypeStruct((n_pad, 10), jnp.float32),
        grid=(nblk,),
        in_specs=[
            pl.BlockSpec((1, 32 * bt, 32), lambda i: (i, 0, 0)),  # image tile
            _resident(b1), _resident(cb1_row),
            _resident(b2), _resident(cb2_row),
            _resident(w1c), _resident(fb1r),
            _resident(w2), _resident(fb2r),
            _resident(w3), _resident(fb3r),
        ],
        out_specs=pl.BlockSpec((bt, 10), lambda i: (i, 0)),
        scratch_shapes=[
            pltpu.VMEM((28 * bt, 256), jnp.float32),   # conv1 accumulator
            pltpu.VMEM((10 * bt, 256), jnp.float32),   # conv2 accumulator
            pltpu.VMEM((14 * bt, 128), jnp.float32),   # pooled conv1
            pltpu.VMEM((5 * bt, 128), jnp.float32),    # pooled conv2
        ],
        compiler_params=pltpu.CompilerParams(
            dimension_semantics=("parallel",),   # batch tiles -> both TCs (v7x)
            vmem_limit_bytes=48 * 1024 * 1024,   # headroom on v7x's 64 MiB VMEM
        ),
    )(x_slab, b1, cb1_row, b2, cb2_row, w1c, fb1r, w2, fb2r, w3, fb3r)
    return out[:n]


# ------------------------- plain-JAX reference ------------------------------

def reference_forward(x_nchw, params):
    (cw1, cb1, cw2, cb2, fw1, fb1, fw2, fb2, fw3, fb3) = params
    dn = ("NHWC", "HWIO", "NHWC")
    hi = jax.lax.Precision.HIGHEST
    x = jnp.transpose(x_nchw, (0, 2, 3, 1)).astype(jnp.float32)
    y = jax.lax.conv_general_dilated(x, cw1, (1, 1), "VALID",
                                     dimension_numbers=dn, precision=hi)
    y = jax.nn.relu(y + cb1)
    y = jax.lax.reduce_window(y, -jnp.inf, jax.lax.max,
                              (1, 2, 2, 1), (1, 2, 2, 1), "VALID")
    y = jax.lax.conv_general_dilated(y, cw2, (1, 1), "VALID",
                                     dimension_numbers=dn, precision=hi)
    y = jax.nn.relu(y + cb2)
    y = jax.lax.reduce_window(y, -jnp.inf, jax.lax.max,
                              (1, 2, 2, 1), (1, 2, 2, 1), "VALID")
    y = jnp.transpose(y, (0, 3, 1, 2)).reshape(y.shape[0], -1)  # NCHW flatten
    y = jax.nn.relu(jnp.dot(y, fw1, precision=hi) + fb1)
    y = jax.nn.relu(jnp.dot(y, fw2, precision=hi) + fb2)
    return jnp.dot(y, fw3, precision=hi) + fb3


# ------------------------------ parameters ----------------------------------

def init_params(key):
    ks = jax.random.split(key, 10)

    def unif(k, shape, fan_in):
        bound = 1.0 / float(fan_in) ** 0.5
        return jax.random.uniform(k, shape, jnp.float32, -bound, bound)

    cw1 = unif(ks[0], (5, 5, 1, 6), 5 * 5 * 1)      # conv1 weight (HWIO)
    cb1 = unif(ks[1], (6,), 5 * 5 * 1)
    cw2 = unif(ks[2], (5, 5, 6, 16), 5 * 5 * 6)     # conv2 weight (HWIO)
    cb2 = unif(ks[3], (16,), 5 * 5 * 6)
    fw1 = unif(ks[4], (400, 120), 400)              # fc weights stored (in, out)
    fb1 = unif(ks[5], (120,), 400)                  # fc1 rows in NCHW order
    fw2 = unif(ks[6], (120, 84), 120)
    fb2 = unif(ks[7], (84,), 120)
    fw3 = unif(ks[8], (84, 10), 84)
    fb3 = unif(ks[9], (10,), 84)
    return (cw1, cb1, cw2, cb2, fw1, fb1, fw2, fb2, fw3, fb3)


if __name__ == "__main__":
    key = jax.random.PRNGKey(0)
    pkey, xkey = jax.random.split(key)
    params = init_params(pkey)
    packed = prepare_params(params)                 # one-time weight prep
    x = jax.random.normal(xkey, (16, 1, 32, 32), dtype=jnp.float32)  # NCHW

    fwd = jax.jit(functools.partial(lenet_forward, bt=8))   # 2 grid steps
    logits = fwd(x, packed)
    jax.block_until_ready(logits)
    assert logits.shape == (16, 10), logits.shape

    ref = reference_forward(x, params)
    if not jnp.allclose(logits, ref, rtol=1e-2, atol=1e-2):
        max_err = float(jnp.max(jnp.abs(logits - ref)))
        raise AssertionError(f"kernel mismatch vs reference, max|err|={max_err}")
    print("KERNEL_OK")
</pallas_src>

<mosaic_0001>
module attributes {stable_mosaic.version = 11 : i64} {
  func.func @_lenet_kernel(%arg0: i32, %arg1: memref<1x256x32xf32, #tpu.memory_space<vmem>>, %arg2: memref<5x32x256xf32, #tpu.memory_space<vmem>>, %arg3: memref<1x256xf32, #tpu.memory_space<vmem>>, %arg4: memref<5x128x256xf32, #tpu.memory_space<vmem>>, %arg5: memref<1x256xf32, #tpu.memory_space<vmem>>, %arg6: memref<5x128x120xf32, #tpu.memory_space<vmem>>, %arg7: memref<1x120xf32, #tpu.memory_space<vmem>>, %arg8: memref<120x84xf32, #tpu.memory_space<vmem>>, %arg9: memref<1x84xf32, #tpu.memory_space<vmem>>, %arg10: memref<84x10xf32, #tpu.memory_space<vmem>>, %arg11: memref<1x10xf32, #tpu.memory_space<vmem>>, %arg12: memref<8x10xf32, #tpu.memory_space<vmem>>, %arg13: memref<224x256xf32, #tpu.memory_space<vmem>>, %arg14: memref<80x256xf32, #tpu.memory_space<vmem>>, %arg15: memref<112x128xf32, #tpu.memory_space<vmem>>, %arg16: memref<40x128xf32, #tpu.memory_space<vmem>>) attributes {dimension_semantics = [#tpu.dimension_semantics<parallel>], iteration_bounds = array<i64: 2>, scalar_prefetch = 0 : i64, scratch_operands = 4 : i64, tpu.core_type = #tpu.core_type<tc>, window_params = [{transform_indices = @transform_0, window_bounds = array<i64: 1, 256, 32>}, {pipeline_mode = #tpu.pipeline_mode<synchronous>, transform_indices = @transform_1, window_bounds = array<i64: 5, 32, 256>}, {pipeline_mode = #tpu.pipeline_mode<synchronous>, transform_indices = @transform_2, window_bounds = array<i64: 1, 256>}, {pipeline_mode = #tpu.pipeline_mode<synchronous>, transform_indices = @transform_3, window_bounds = array<i64: 5, 128, 256>}, {pipeline_mode = #tpu.pipeline_mode<synchronous>, transform_indices = @transform_4, window_bounds = array<i64: 1, 256>}, {pipeline_mode = #tpu.pipeline_mode<synchronous>, transform_indices = @transform_5, window_bounds = array<i64: 5, 128, 120>}, {pipeline_mode = #tpu.pipeline_mode<synchronous>, transform_indices = @transform_6, window_bounds = array<i64: 1, 120>}, {pipeline_mode = #tpu.pipeline_mode<synchronous>, transform_indices = @transform_7, window_bounds = array<i64: 120, 84>}, {pipeline_mode = #tpu.pipeline_mode<synchronous>, transform_indices = @transform_8, window_bounds = array<i64: 1, 84>}, {pipeline_mode = #tpu.pipeline_mode<synchronous>, transform_indices = @transform_9, window_bounds = array<i64: 84, 10>}, {pipeline_mode = #tpu.pipeline_mode<synchronous>, transform_indices = @transform_10, window_bounds = array<i64: 1, 10>}, {transform_indices = @transform_11, window_bounds = array<i64: 8, 10>}]} {
    %c0 = arith.constant 0 : index
    %c0_0 = arith.constant 0 : index
    %c0_1 = arith.constant 0 : index
    %0 = vector.load %arg1[%c0, %c0_0, %c0_1] : memref<1x256x32xf32, #tpu.memory_space<vmem>>, vector<1x224x32xf32>
    %1 = vector.shape_cast %0 : vector<1x224x32xf32> to vector<224x32xf32>
    %c0_2 = arith.constant 0 : index
    %c0_3 = arith.constant 0 : index
    %c0_4 = arith.constant 0 : index
    %2 = vector.load %arg2[%c0_2, %c0_3, %c0_4] : memref<5x32x256xf32, #tpu.memory_space<vmem>>, vector<1x32x256xf32>
    %3 = vector.shape_cast %2 : vector<1x32x256xf32> to vector<32x256xf32>
    %cst = arith.constant dense<0.000000e+00> : vector<224x256xf32>
    %4 = tpu.matmul %1, %3, %cst {dimension_numbers = #tpu.dot_dimension_numbers<[1], [0], [0], [1], [0, 0, 1, 1], [], []>} : vector<224x32xf32>, vector<32x256xf32>, vector<224x256xf32> -> vector<224x256xf32>
    %c0_5 = arith.constant 0 : index
    %c0_6 = arith.constant 0 : index
    %5 = vector.load %arg13[%c0_5, %c0_6] : memref<224x256xf32, #tpu.memory_space<vmem>>, vector<224x256xf32>
    tpu.vector_store %arg13[%c0_5, %c0_6], %4 {strides = array<i32>} : memref<224x256xf32, #tpu.memory_space<vmem>>, vector<224x256xf32>,
    %c0_7 = arith.constant 0 : index
    %c8 = arith.constant 8 : index
    %c0_8 = arith.constant 0 : index
    %6 = vector.load %arg1[%c0_7, %c8, %c0_8] : memref<1x256x32xf32, #tpu.memory_space<vmem>>, vector<1x224x32xf32>
    %7 = vector.shape_cast %6 : vector<1x224x32xf32> to vector<224x32xf32>
    %c1 = arith.constant 1 : index
    %c0_9 = arith.constant 0 : index
    %c0_10 = arith.constant 0 : index
    %8 = vector.load %arg2[%c1, %c0_9, %c0_10] : memref<5x32x256xf32, #tpu.memory_space<vmem>>, vector<1x32x256xf32>
    %9 = vector.shape_cast %8 : vector<1x32x256xf32> to vector<32x256xf32>
    %cst_11 = arith.constant dense<0.000000e+00> : vector<224x256xf32>
    %10 = tpu.matmul %7, %9, %cst_11 {dimension_numbers = #tpu.dot_dimension_numbers<[1], [0], [0], [1], [0, 0, 1, 1], [], []>} : vector<224x32xf32>, vector<32x256xf32>, vector<224x256xf32> -> vector<224x256xf32>
    %c0_12 = arith.constant 0 : index
    %c0_13 = arith.constant 0 : index
    %11 = vector.load %arg13[%c0_12, %c0_13] : memref<224x256xf32, #tpu.memory_space<vmem>>, vector<224x256xf32>
    %12 = arith.addf %11, %10 : vector<224x256xf32>
    %c0_14 = arith.constant 0 : index
    %c0_15 = arith.constant 0 : index
    %13 = vector.load %arg13[%c0_14, %c0_15] : memref<224x256xf32, #tpu.memory_space<vmem>>, vector<224x256xf32>
    tpu.vector_store %arg13[%c0_14, %c0_15], %12 {strides = array<i32>} : memref<224x256xf32, #tpu.memory_space<vmem>>, vector<224x256xf32>,
    %c0_16 = arith.constant 0 : index
    %c16 = arith.constant 16 : index
    %c0_17 = arith.constant 0 : index
    %14 = vector.load %arg1[%c0_16, %c16, %c0_17] : memref<1x256x32xf32, #tpu.memory_space<vmem>>, vector<1x224x32xf32>
    %15 = vector.shape_cast %14 : vector<1x224x32xf32> to vector<224x32xf32>
    %c2 = arith.constant 2 : index
    %c0_18 = arith.constant 0 : index
    %c0_19 = arith.constant 0 : index
    %16 = vector.load %arg2[%c2, %c0_18, %c0_19] : memref<5x32x256xf32, #tpu.memory_space<vmem>>, vector<1x32x256xf32>
    %17 = vector.shape_cast %16 : vector<1x32x256xf32> to vector<32x256xf32>
    %cst_20 = arith.constant dense<0.000000e+00> : vector<224x256xf32>
    %18 = tpu.matmul %15, %17, %cst_20 {dimension_numbers = #tpu.dot_dimension_numbers<[1], [0], [0], [1], [0, 0, 1, 1], [], []>} : vector<224x32xf32>, vector<32x256xf32>, vector<224x256xf32> -> vector<224x256xf32>
    %c0_21 = arith.constant 0 : index
    %c0_22 = arith.constant 0 : index
    %19 = vector.load %arg13[%c0_21, %c0_22] : memref<224x256xf32, #tpu.memory_space<vmem>>, vector<224x256xf32>
    %20 = arith.addf %19, %18 : vector<224x256xf32>
    %c0_23 = arith.constant 0 : index
    %c0_24 = arith.constant 0 : index
    %21 = vector.load %arg13[%c0_23, %c0_24] : memref<224x256xf32, #tpu.memory_space<vmem>>, vector<224x256xf32>
    tpu.vector_store %arg13[%c0_23, %c0_24], %20 {strides = array<i32>} : memref<224x256xf32, #tpu.memory_space<vmem>>, vector<224x256xf32>,
    %c0_25 = arith.constant 0 : index
    %c24 = arith.constant 24 : index
    %c0_26 = arith.constant 0 : index
    %22 = vector.load %arg1[%c0_25, %c24, %c0_26] : memref<1x256x32xf32, #tpu.memory_space<vmem>>, vector<1x224x32xf32>
    %23 = vector.shape_cast %22 : vector<1x224x32xf32> to vector<224x32xf32>
    %c3 = arith.constant 3 : index
    %c0_27 = arith.constant 0 : index
    %c0_28 = arith.constant 0 : index
    %24 = vector.load %arg2[%c3, %c0_27, %c0_28] : memref<5x32x256xf32, #tpu.memory_space<vmem>>, vector<1x32x256xf32>
    %25 = vector.shape_cast %24 : vector<1x32x256xf32> to vector<32x256xf32>
    %cst_29 = arith.constant dense<0.000000e+00> : vector<224x256xf32>
    %26 = tpu.matmul %23, %25, %cst_29 {dimension_numbers = #tpu.dot_dimension_numbers<[1], [0], [0], [1], [0, 0, 1, 1], [], []>} : vector<224x32xf32>, vector<32x256xf32>, vector<224x256xf32> -> vector<224x256xf32>
    %c0_30 = arith.constant 0 : index
    %c0_31 = arith.constant 0 : index
    %27 = vector.load %arg13[%c0_30, %c0_31] : memref<224x256xf32, #tpu.memory_space<vmem>>, vector<224x256xf32>
    %28 = arith.addf %27, %26 : vector<224x256xf32>
    %c0_32 = arith.constant 0 : index
    %c0_33 = arith.constant 0 : index
    %29 = vector.load %arg13[%c0_32, %c0_33] : memref<224x256xf32, #tpu.memory_space<vmem>>, vector<224x256xf32>
    tpu.vector_store %arg13[%c0_32, %c0_33], %28 {strides = array<i32>} : memref<224x256xf32, #tpu.memory_space<vmem>>, vector<224x256xf32>,
    %c0_34 = arith.constant 0 : index
    %c32 = arith.constant 32 : index
    %c0_35 = arith.constant 0 : index
    %30 = vector.load %arg1[%c0_34, %c32, %c0_35] : memref<1x256x32xf32, #tpu.memory_space<vmem>>, vector<1x224x32xf32>
    %31 = vector.shape_cast %30 : vector<1x224x32xf32> to vector<224x32xf32>
    %c4 = arith.constant 4 : index
    %c0_36 = arith.constant 0 : index
    %c0_37 = arith.constant 0 : index
    %32 = vector.load %arg2[%c4, %c0_36, %c0_37] : memref<5x32x256xf32, #tpu.memory_space<vmem>>, vector<1x32x256xf32>
    %33 = vector.shape_cast %32 : vector<1x32x256xf32> to vector<32x256xf32>
    %cst_38 = arith.constant dense<0.000000e+00> : vector<224x256xf32>
    %34 = tpu.matmul %31, %33, %cst_38 {dimension_numbers = #tpu.dot_dimension_numbers<[1], [0], [0], [1], [0, 0, 1, 1], [], []>} : vector<224x32xf32>, vector<32x256xf32>, vector<224x256xf32> -> vector<224x256xf32>
    %c0_39 = arith.constant 0 : index
    %c0_40 = arith.constant 0 : index
    %35 = vector.load %arg13[%c0_39, %c0_40] : memref<224x256xf32, #tpu.memory_space<vmem>>, vector<224x256xf32>
    %36 = arith.addf %35, %34 : vector<224x256xf32>
    %c0_41 = arith.constant 0 : index
    %c0_42 = arith.constant 0 : index
    %37 = vector.load %arg13[%c0_41, %c0_42] : memref<224x256xf32, #tpu.memory_space<vmem>>, vector<224x256xf32>
    tpu.vector_store %arg13[%c0_41, %c0_42], %36 {strides = array<i32>} : memref<224x256xf32, #tpu.memory_space<vmem>>, vector<224x256xf32>,
    %c0_43 = arith.constant 0 : index
    %c0_44 = arith.constant 0 : index
    %38 = vector.load %arg3[%c0_43, %c0_44] : memref<1x256xf32, #tpu.memory_space<vmem>>, vector<1x256xf32>
    %c0_45 = arith.constant 0 : index
    %c0_46 = arith.constant 0 : index
    %39 = vector.load %arg13[%c0_45, %c0_46] : memref<224x256xf32, #tpu.memory_space<vmem>>, vector<16x256xf32>
    %40 = vector.broadcast %38 : vector<1x256xf32> to vector<16x256xf32>
    %41 = arith.addf %39, %40 : vector<16x256xf32>
    %cst_47 = arith.constant 0.000000e+00 : f32
    %42 = vector.broadcast %cst_47 : f32 to vector<16x256xf32>
    %43 = arith.maximumf %41, %42 : vector<16x256xf32>
    %44 = vector.extract_strided_slice %43 {offsets = [0, 0], sizes = [16, 128], strides = [1, 1]} : vector<16x256xf32> to vector<16x128xf32>
    %45 = vector.extract_strided_slice %43 {offsets = [0, 128], sizes = [16, 128], strides = [1, 1]} : vector<16x256xf32> to vector<16x128xf32>
    %46 = arith.maximumf %44, %45 : vector<16x128xf32>
    %47 = vector.extract_strided_slice %46 {offsets = [0, 0], sizes = [8, 128], strides = [1, 1]} : vector<16x128xf32> to vector<8x128xf32>
    %48 = vector.extract_strided_slice %46 {offsets = [8, 0], sizes = [8, 128], strides = [1, 1]} : vector<16x128xf32> to vector<8x128xf32>
    %49 = arith.maximumf %47, %48 : vector<8x128xf32>
    %c0_48 = arith.constant 0 : index
    %c0_49 = arith.constant 0 : index
    %50 = vector.load %arg15[%c0_48, %c0_49] : memref<112x128xf32, #tpu.memory_space<vmem>>, vector<8x128xf32>
    tpu.vector_store %arg15[%c0_48, %c0_49], %49 {strides = array<i32>} : memref<112x128xf32, #tpu.memory_space<vmem>>, vector<8x128xf32>,
    %c16_50 = arith.constant 16 : index
    %c0_51 = arith.constant 0 : index
    %51 = vector.load %arg13[%c16_50, %c0_51] : memref<224x256xf32, #tpu.memory_space<vmem>>, vector<16x256xf32>
    %52 = vector.broadcast %38 : vector<1x256xf32> to vector<16x256xf32>
    %53 = arith.addf %51, %52 : vector<16x256xf32>
    %cst_52 = arith.constant 0.000000e+00 : f32
    %54 = vector.broadcast %cst_52 : f32 to vector<16x256xf32>
    %55 = arith.maximumf %53, %54 : vector<16x256xf32>
    %56 = vector.extract_strided_slice %55 {offsets = [0, 0], sizes = [16, 128], strides = [1, 1]} : vector<16x256xf32> to vector<16x128xf32>
    %57 = vector.extract_strided_slice %55 {offsets = [0, 128], sizes = [16, 128], strides = [1, 1]} : vector<16x256xf32> to vector<16x128xf32>
    %58 = arith.maximumf %56, %57 : vector<16x128xf32>
    %59 = vector.extract_strided_slice %58 {offsets = [0, 0], sizes = [8, 128], strides = [1, 1]} : vector<16x128xf32> to vector<8x128xf32>
    %60 = vector.extract_strided_slice %58 {offsets = [8, 0], sizes = [8, 128], strides = [1, 1]} : vector<16x128xf32> to vector<8x128xf32>
    %61 = arith.maximumf %59, %60 : vector<8x128xf32>
    %c8_53 = arith.constant 8 : index
    %c0_54 = arith.constant 0 : index
    %62 = vector.load %arg15[%c8_53, %c0_54] : memref<112x128xf32, #tpu.memory_space<vmem>>, vector<8x128xf32>
    tpu.vector_store %arg15[%c8_53, %c0_54], %61 {strides = array<i32>} : memref<112x128xf32, #tpu.memory_space<vmem>>, vector<8x128xf32>,
    %c32_55 = arith.constant 32 : index
    %c0_56 = arith.constant 0 : index
    %63 = vector.load %arg13[%c32_55, %c0_56] : memref<224x256xf32, #tpu.memory_space<vmem>>, vector<16x256xf32>
    %64 = vector.broadcast %38 : vector<1x256xf32> to vector<16x256xf32>
    %65 = arith.addf %63, %64 : vector<16x256xf32>
    %cst_57 = arith.constant 0.000000e+00 : f32
    %66 = vector.broadcast %cst_57 : f32 to vector<16x256xf32>
    %67 = arith.maximumf %65, %66 : vector<16x256xf32>
    %68 = vector.extract_strided_slice %67 {offsets = [0, 0], sizes = [16, 128], strides = [1, 1]} : vector<16x256xf32> to vector<16x128xf32>
    %69 = vector.extract_strided_slice %67 {offsets = [0, 128], sizes = [16, 128], strides = [1, 1]} : vector<16x256xf32> to vector<16x128xf32>
    %70 = arith.maximumf %68, %69 : vector<16x128xf32>
    %71 = vector.extract_strided_slice %70 {offsets = [0, 0], sizes = [8, 128], strides = [1, 1]} : vector<16x128xf32> to vector<8x128xf32>
    %72 = vector.extract_strided_slice %70 {offsets = [8, 0], sizes = [8, 128], strides = [1, 1]} : vector<16x128xf32> to vector<8x128xf32>
    %73 = arith.maximumf %71, %72 : vector<8x128xf32>
    %c16_58 = arith.constant 16 : index
    %c0_59 = arith.constant 0 : index
    %74 = vector.load %arg15[%c16_58, %c0_59] : memref<112x128xf32, #tpu.memory_space<vmem>>, vector<8x128xf32>
    tpu.vector_store %arg15[%c16_58, %c0_59], %73 {strides = array<i32>} : memref<112x128xf32, #tpu.memory_space<vmem>>, vector<8x128xf32>,
    %c48 = arith.constant 48 : index
    %c0_60 = arith.constant 0 : index
    %75 = vector.load %arg13[%c48, %c0_60] : memref<224x256xf32, #tpu.memory_space<vmem>>, vector<16x256xf32>
    %76 = vector.broadcast %38 : vector<1x256xf32> to vector<16x256xf32>
    %77 = arith.addf %75, %76 : vector<16x256xf32>
    %cst_61 = arith.constant 0.000000e+00 : f32
    %78 = vector.broadcast %cst_61 : f32 to vector<16x256xf32>
    %79 = arith.maximumf %77, %78 : vector<16x256xf32>
    %80 = vector.extract_strided_slice %79 {offsets = [0, 0], sizes = [16, 128], strides = [1, 1]} : vector<16x256xf32> to vector<16x128xf32>
    %81 = vector.extract_strided_slice %79 {offsets = [0, 128], sizes = [16, 128], strides = [1, 1]} : vector<16x256xf32> to vector<16x128xf32>
    %82 = arith.maximumf %80, %81 : vector<16x128xf32>
    %83 = vector.extract_strided_slice %82 {offsets = [0, 0], sizes = [8, 128], strides = [1, 1]} : vector<16x128xf32> to vector<8x128xf32>
    %84 = vector.extract_strided_slice %82 {offsets = [8, 0], sizes = [8, 128], strides = [1, 1]} : vector<16x128xf32> to vector<8x128xf32>
    %85 = arith.maximumf %83, %84 : vector<8x128xf32>
    %c24_62 = arith.constant 24 : index
    %c0_63 = arith.constant 0 : index
    %86 = vector.load %arg15[%c24_62, %c0_63] : memref<112x128xf32, #tpu.memory_space<vmem>>, vector<8x128xf32>
    tpu.vector_store %arg15[%c24_62, %c0_63], %85 {strides = array<i32>} : memref<112x128xf32, #tpu.memory_space<vmem>>, vector<8x128xf32>,
    %c64 = arith.constant 64 : index
    %c0_64 = arith.constant 0 : index
    %87 = vector.load %arg13[%c64, %c0_64] : memref<224x256xf32, #tpu.memory_space<vmem>>, vector<16x256xf32>
    %88 = vector.broadcast %38 : vector<1x256xf32> to vector<16x256xf32>
    %89 = arith.addf %87, %88 : vector<16x256xf32>
    %cst_65 = arith.constant 0.000000e+00 : f32
    %90 = vector.broadcast %cst_65 : f32 to vector<16x256xf32>
    %91 = arith.maximumf %89, %90 : vector<16x256xf32>
    %92 = vector.extract_strided_slice %91 {offsets = [0, 0], sizes = [16, 128], strides = [1, 1]} : vector<16x256xf32> to vector<16x128xf32>
    %93 = vector.extract_strided_slice %91 {offsets = [0, 128], sizes = [16, 128], strides = [1, 1]} : vector<16x256xf32> to vector<16x128xf32>
    %94 = arith.maximumf %92, %93 : vector<16x128xf32>
    %95 = vector.extract_strided_slice %94 {offsets = [0, 0], sizes = [8, 128], strides = [1, 1]} : vector<16x128xf32> to vector<8x128xf32>
    %96 = vector.extract_strided_slice %94 {offsets = [8, 0], sizes = [8, 128], strides = [1, 1]} : vector<16x128xf32> to vector<8x128xf32>
    %97 = arith.maximumf %95, %96 : vector<8x128xf32>
    %c32_66 = arith.constant 32 : index
    %c0_67 = arith.constant 0 : index
    %98 = vector.load %arg15[%c32_66, %c0_67] : memref<112x128xf32, #tpu.memory_space<vmem>>, vector<8x128xf32>
    tpu.vector_store %arg15[%c32_66, %c0_67], %97 {strides = array<i32>} : memref<112x128xf32, #tpu.memory_space<vmem>>, vector<8x128xf32>,
    %c80 = arith.constant 80 : index
    %c0_68 = arith.constant 0 : index
    %99 = vector.load %arg13[%c80, %c0_68] : memref<224x256xf32, #tpu.memory_space<vmem>>, vector<16x256xf32>
    %100 = vector.broadcast %38 : vector<1x256xf32> to vector<16x256xf32>
    %101 = arith.addf %99, %100 : vector<16x256xf32>
    %cst_69 = arith.constant 0.000000e+00 : f32
    %102 = vector.broadcast %cst_69 : f32 to vector<16x256xf32>
    %103 = arith.maximumf %101, %102 : vector<16x256xf32>
    %104 = vector.extract_strided_slice %103 {offsets = [0, 0], sizes = [16, 128], strides = [1, 1]} : vector<16x256xf32> to vector<16x128xf32>
    %105 = vector.extract_strided_slice %103 {offsets = [0, 128], sizes = [16, 128], strides = [1, 1]} : vector<16x256xf32> to vector<16x128xf32>
    %106 = arith.maximumf %104, %105 : vector<16x128xf32>
    %107 = vector.extract_strided_slice %106 {offsets = [0, 0], sizes = [8, 128], strides = [1, 1]} : vector<16x128xf32> to vector<8x128xf32>
    %108 = vector.extract_strided_slice %106 {offsets = [8, 0], sizes = [8, 128], strides = [1, 1]} : vector<16x128xf32> to vector<8x128xf32>
    %109 = arith.maximumf %107, %108 : vector<8x128xf32>
    %c40 = arith.constant 40 : index
    %c0_70 = arith.constant 0 : index
    %110 = vector.load %arg15[%c40, %c0_70] : memref<112x128xf32, #tpu.memory_space<vmem>>, vector<8x128xf32>
    tpu.vector_store %arg15[%c40, %c0_70], %109 {strides = array<i32>} : memref<112x128xf32, #tpu.memory_space<vmem>>, vector<8x128xf32>,
    %c96 = arith.constant 96 : index
    %c0_71 = arith.constant 0 : index
    %111 = vector.load %arg13[%c96, %c0_71] : memref<224x256xf32, #tpu.memory_space<vmem>>, vector<16x256xf32>
    %112 = vector.broadcast %38 : vector<1x256xf32> to vector<16x256xf32>
    %113 = arith.addf %111, %112 : vector<16x256xf32>
    %cst_72 = arith.constant 0.000000e+00 : f32
    %114 = vector.broadcast %cst_72 : f32 to vector<16x256xf32>
    %115 = arith.maximumf %113, %114 : vector<16x256xf32>
    %116 = vector.extract_strided_slice %115 {offsets = [0, 0], sizes = [16, 128], strides = [1, 1]} : vector<16x256xf32> to vector<16x128xf32>
    %117 = vector.extract_strided_slice %115 {offsets = [0, 128], sizes = [16, 128], strides = [1, 1]} : vector<16x256xf32> to vector<16x128xf32>
    %118 = arith.maximumf %116, %117 : vector<16x128xf32>
    %119 = vector.extract_strided_slice %118 {offsets = [0, 0], sizes = [8, 128], strides = [1, 1]} : vector<16x128xf32> to vector<8x128xf32>
    %120 = vector.extract_strided_slice %118 {offsets = [8, 0], sizes = [8, 128], strides = [1, 1]} : vector<16x128xf32> to vector<8x128xf32>
    %121 = arith.maximumf %119, %120 : vector<8x128xf32>
    %c48_73 = arith.constant 48 : index
    %c0_74 = arith.constant 0 : index
    %122 = vector.load %arg15[%c48_73, %c0_74] : memref<112x128xf32, #tpu.memory_space<vmem>>, vector<8x128xf32>
    tpu.vector_store %arg15[%c48_73, %c0_74], %121 {strides = array<i32>} : memref<112x128xf32, #tpu.memory_space<vmem>>, vector<8x128xf32>,
    %c112 = arith.constant 112 : index
    %c0_75 = arith.constant 0 : index
    %123 = vector.load %arg13[%c112, %c0_75] : memref<224x256xf32, #tpu.memory_space<vmem>>, vector<16x256xf32>
    %124 = vector.broadcast %38 : vector<1x256xf32> to vector<16x256xf32>
    %125 = arith.addf %123, %124 : vector<16x256xf32>
    %cst_76 = arith.constant 0.000000e+00 : f32
    %126 = vector.broadcast %cst_76 : f32 to vector<16x256xf32>
    %127 = arith.maximumf %125, %126 : vector<16x256xf32>
    %128 = vector.extract_strided_slice %127 {offsets = [0, 0], sizes = [16, 128], strides = [1, 1]} : vector<16x256xf32> to vector<16x128xf32>
    %129 = vector.extract_strided_slice %127 {offsets = [0, 128], sizes = [16, 128], strides = [1, 1]} : vector<16x256xf32> to vector<16x128xf32>
    %130 = arith.maximumf %128, %129 : vector<16x128xf32>
    %131 = vector.extract_strided_slice %130 {offsets = [0, 0], sizes = [8, 128], strides = [1, 1]} : vector<16x128xf32> to vector<8x128xf32>
    %132 = vector.extract_strided_slice %130 {offsets = [8, 0], sizes = [8, 128], strides = [1, 1]} : vector<16x128xf32> to vector<8x128xf32>
    %133 = arith.maximumf %131, %132 : vector<8x128xf32>
    %c56 = arith.constant 56 : index
    %c0_77 = arith.constant 0 : index
    %134 = vector.load %arg15[%c56, %c0_77] : memref<112x128xf32, #tpu.memory_space<vmem>>, vector<8x128xf32>
    tpu.vector_store %arg15[%c56, %c0_77], %133 {strides = array<i32>} : memref<112x128xf32, #tpu.memory_space<vmem>>, vector<8x128xf32>,
    %c128 = arith.constant 128 : index
    %c0_78 = arith.constant 0 : index
    %135 = vector.load %arg13[%c128, %c0_78] : memref<224x256xf32, #tpu.memory_space<vmem>>, vector<16x256xf32>
    %136 = vector.broadcast %38 : vector<1x256xf32> to vector<16x256xf32>
    %137 = arith.addf %135, %136 : vector<16x256xf32>
    %cst_79 = arith.constant 0.000000e+00 : f32
    %138 = vector.broadcast %cst_79 : f32 to vector<16x256xf32>
    %139 = arith.maximumf %137, %138 : vector<16x256xf32>
    %140 = vector.extract_strided_slice %139 {offsets = [0, 0], sizes = [16, 128], strides = [1, 1]} : vector<16x256xf32> to vector<16x128xf32>
    %141 = vector.extract_strided_slice %139 {offsets = [0, 128], sizes = [16, 128], strides = [1, 1]} : vector<16x256xf32> to vector<16x128xf32>
    %142 = arith.maximumf %140, %141 : vector<16x128xf32>
    %143 = vector.extract_strided_slice %142 {offsets = [0, 0], sizes = [8, 128], strides = [1, 1]} : vector<16x128xf32> to vector<8x128xf32>
    %144 = vector.extract_strided_slice %142 {offsets = [8, 0], sizes = [8, 128], strides = [1, 1]} : vector<16x128xf32> to vector<8x128xf32>
    %145 = arith.maximumf %143, %144 : vector<8x128xf32>
    %c64_80 = arith.constant 64 : index
    %c0_81 = arith.constant 0 : index
    %146 = vector.load %arg15[%c64_80, %c0_81] : memref<112x128xf32, #tpu.memory_space<vmem>>, vector<8x128xf32>
    tpu.vector_store %arg15[%c64_80, %c0_81], %145 {strides = array<i32>} : memref<112x128xf32, #tpu.memory_space<vmem>>, vector<8x128xf32>,
    %c144 = arith.constant 144 : index
    %c0_82 = arith.constant 0 : index
    %147 = vector.load %arg13[%c144, %c0_82] : memref<224x256xf32, #tpu.memory_space<vmem>>, vector<16x256xf32>
    %148 = vector.broadcast %38 : vector<1x256xf32> to vector<16x256xf32>
    %149 = arith.addf %147, %148 : vector<16x256xf32>
    %cst_83 = arith.constant 0.000000e+00 : f32
    %150 = vector.broadcast %cst_83 : f32 to vector<16x256xf32>
    %151 = arith.maximumf %149, %150 : vector<16x256xf32>
    %152 = vector.extract_strided_slice %151 {offsets = [0, 0], sizes = [16, 128], strides = [1, 1]} : vector<16x256xf32> to vector<16x128xf32>
    %153 = vector.extract_strided_slice %151 {offsets = [0, 128], sizes = [16, 128], strides = [1, 1]} : vector<16x256xf32> to vector<16x128xf32>
    %154 = arith.maximumf %152, %153 : vector<16x128xf32>
    %155 = vector.extract_strided_slice %154 {offsets = [0, 0], sizes = [8, 128], strides = [1, 1]} : vector<16x128xf32> to vector<8x128xf32>
    %156 = vector.extract_strided_slice %154 {offsets = [8, 0], sizes = [8, 128], strides = [1, 1]} : vector<16x128xf32> to vector<8x128xf32>
    %157 = arith.maximumf %155, %156 : vector<8x128xf32>
    %c72 = arith.constant 72 : index
    %c0_84 = arith.constant 0 : index
    %158 = vector.load %arg15[%c72, %c0_84] : memref<112x128xf32, #tpu.memory_space<vmem>>, vector<8x128xf32>
    tpu.vector_store %arg15[%c72, %c0_84], %157 {strides = array<i32>} : memref<112x128xf32, #tpu.memory_space<vmem>>, vector<8x128xf32>,
    %c160 = arith.constant 160 : index
    %c0_85 = arith.constant 0 : index
    %159 = vector.load %arg13[%c160, %c0_85] : memref<224x256xf32, #tpu.memory_space<vmem>>, vector<16x256xf32>
    %160 = vector.broadcast %38 : vector<1x256xf32> to vector<16x256xf32>
    %161 = arith.addf %159, %160 : vector<16x256xf32>
    %cst_86 = arith.constant 0.000000e+00 : f32
    %162 = vector.broadcast %cst_86 : f32 to vector<16x256xf32>
    %163 = arith.maximumf %161, %162 : vector<16x256xf32>
    %164 = vector.extract_strided_slice %163 {offsets = [0, 0], sizes = [16, 128], strides = [1, 1]} : vector<16x256xf32> to vector<16x128xf32>
    %165 = vector.extract_strided_slice %163 {offsets = [0, 128], sizes = [16, 128], strides = [1, 1]} : vector<16x256xf32> to vector<16x128xf32>
    %166 = arith.maximumf %164, %165 : vector<16x128xf32>
    %167 = vector.extract_strided_slice %166 {offsets = [0, 0], sizes = [8, 128], strides = [1, 1]} : vector<16x128xf32> to vector<8x128xf32>
    %168 = vector.extract_strided_slice %166 {offsets = [8, 0], sizes = [8, 128], strides = [1, 1]} : vector<16x128xf32> to vector<8x128xf32>
    %169 = arith.maximumf %167, %168 : vector<8x128xf32>
    %c80_87 = arith.constant 80 : index
    %c0_88 = arith.constant 0 : index
    %170 = vector.load %arg15[%c80_87, %c0_88] : memref<112x128xf32, #tpu.memory_space<vmem>>, vector<8x128xf32>
    tpu.vector_store %arg15[%c80_87, %c0_88], %169 {strides = array<i32>} : memref<112x128xf32, #tpu.memory_space<vmem>>, vector<8x128xf32>,
    %c176 = arith.constant 176 : index
    %c0_89 = arith.constant 0 : index
    %171 = vector.load %arg13[%c176, %c0_89] : memref<224x256xf32, #tpu.memory_space<vmem>>, vector<16x256xf32>
    %172 = vector.broadcast %38 : vector<1x256xf32> to vector<16x256xf32>
    %173 = arith.addf %171, %172 : vector<16x256xf32>
    %cst_90 = arith.constant 0.000000e+00 : f32
    %174 = vector.broadcast %cst_90 : f32 to vector<16x256xf32>
    %175 = arith.maximumf %173, %174 : vector<16x256xf32>
    %176 = vector.extract_strided_slice %175 {offsets = [0, 0], sizes = [16, 128], strides = [1, 1]} : vector<16x256xf32> to vector<16x128xf32>
    %177 = vector.extract_strided_slice %175 {offsets = [0, 128], sizes = [16, 128], strides = [1, 1]} : vector<16x256xf32> to vector<16x128xf32>
    %178 = arith.maximumf %176, %177 : vector<16x128xf32>
    %179 = vector.extract_strided_slice %178 {offsets = [0, 0], sizes = [8, 128], strides = [1, 1]} : vector<16x128xf32> to vector<8x128xf32>
    %180 = vector.extract_strided_slice %178 {offsets = [8, 0], sizes = [8, 128], strides = [1, 1]} : vector<16x128xf32> to vector<8x128xf32>
    %181 = arith.maximumf %179, %180 : vector<8x128xf32>
    %c88 = arith.constant 88 : index
    %c0_91 = arith.constant 0 : index
    %182 = vector.load %arg15[%c88, %c0_91] : memref<112x128xf32, #tpu.memory_space<vmem>>, vector<8x128xf32>
    tpu.vector_store %arg15[%c88, %c0_91], %181 {strides = array<i32>} : memref<112x128xf32, #tpu.memory_space<vmem>>, vector<8x128xf32>,
    %c192 = arith.constant 192 : index
    %c0_92 = arith.constant 0 : index
    %183 = vector.load %arg13[%c192, %c0_92] : memref<224x256xf32, #tpu.memory_space<vmem>>, vector<16x256xf32>
    %184 = vector.broadcast %38 : vector<1x256xf32> to vector<16x256xf32>
    %185 = arith.addf %183, %184 : vector<16x256xf32>
    %cst_93 = arith.constant 0.000000e+00 : f32
    %186 = vector.broadcast %cst_93 : f32 to vector<16x256xf32>
    %187 = arith.maximumf %185, %186 : vector<16x256xf32>
    %188 = vector.extract_strided_slice %187 {offsets = [0, 0], sizes = [16, 128], strides = [1, 1]} : vector<16x256xf32> to vector<16x128xf32>
    %189 = vector.extract_strided_slice %187 {offsets = [0, 128], sizes = [16, 128], strides = [1, 1]} : vector<16x256xf32> to vector<16x128xf32>
    %190 = arith.maximumf %188, %189 : vector<16x128xf32>
    %191 = vector.extract_strided_slice %190 {offsets = [0, 0], sizes = [8, 128], strides = [1, 1]} : vector<16x128xf32> to vector<8x128xf32>
    %192 = vector.extract_strided_slice %190 {offsets = [8, 0], sizes = [8, 128], strides = [1, 1]} : vector<16x128xf32> to vector<8x128xf32>
    %193 = arith.maximumf %191, %192 : vector<8x128xf32>
    %c96_94 = arith.constant 96 : index
    %c0_95 = arith.constant 0 : index
    %194 = vector.load %arg15[%c96_94, %c0_95] : memref<112x128xf32, #tpu.memory_space<vmem>>, vector<8x128xf32>
    tpu.vector_store %arg15[%c96_94, %c0_95], %193 {strides = array<i32>} : memref<112x128xf32, #tpu.memory_space<vmem>>, vector<8x128xf32>,
    %c208 = arith.constant 208 : index
    %c0_96 = arith.constant 0 : index
    %195 = vector.load %arg13[%c208, %c0_96] : memref<224x256xf32, #tpu.memory_space<vmem>>, vector<16x256xf32>
    %196 = vector.broadcast %38 : vector<1x256xf32> to vector<16x256xf32>
    %197 = arith.addf %195, %196 : vector<16x256xf32>
    %cst_97 = arith.constant 0.000000e+00 : f32
    %198 = vector.broadcast %cst_97 : f32 to vector<16x256xf32>
    %199 = arith.maximumf %197, %198 : vector<16x256xf32>
    %200 = vector.extract_strided_slice %199 {offsets = [0, 0], sizes = [16, 128], strides = [1, 1]} : vector<16x256xf32> to vector<16x128xf32>
    %201 = vector.extract_strided_slice %199 {offsets = [0, 128], sizes = [16, 128], strides = [1, 1]} : vector<16x256xf32> to vector<16x128xf32>
    %202 = arith.maximumf %200, %201 : vector<16x128xf32>
    %203 = vector.extract_strided_slice %202 {offsets = [0, 0], sizes = [8, 128], strides = [1, 1]} : vector<16x128xf32> to vector<8x128xf32>
    %204 = vector.extract_strided_slice %202 {offsets = [8, 0], sizes = [8, 128], strides = [1, 1]} : vector<16x128xf32> to vector<8x128xf32>
    %205 = arith.maximumf %203, %204 : vector<8x128xf32>
    %c104 = arith.constant 104 : index
    %c0_98 = arith.constant 0 : index
    %206 = vector.load %arg15[%c104, %c0_98] : memref<112x128xf32, #tpu.memory_space<vmem>>, vector<8x128xf32>
    tpu.vector_store %arg15[%c104, %c0_98], %205 {strides = array<i32>} : memref<112x128xf32, #tpu.memory_space<vmem>>, vector<8x128xf32>,
    %c0_99 = arith.constant 0 : index
    %c0_100 = arith.constant 0 : index
    %207 = vector.load %arg15[%c0_99, %c0_100] : memref<112x128xf32, #tpu.memory_space<vmem>>, vector<80x128xf32>
    %c0_101 = arith.constant 0 : index
    %c0_102 = arith.constant 0 : index
    %c0_103 = arith.constant 0 : index
    %208 = vector.load %arg4[%c0_101, %c0_102, %c0_103] : memref<5x128x256xf32, #tpu.memory_space<vmem>>, vector<1x128x256xf32>
    %209 = vector.shape_cast %208 : vector<1x128x256xf32> to vector<128x256xf32>
    %cst_104 = arith.constant dense<0.000000e+00> : vector<80x256xf32>
    %210 = tpu.matmul %207, %209, %cst_104 {dimension_numbers = #tpu.dot_dimension_numbers<[1], [0], [0], [1], [0, 0, 1, 1], [], []>} : vector<80x128xf32>, vector<128x256xf32>, vector<80x256xf32> -> vector<80x256xf32>
    %c0_105 = arith.constant 0 : index
    %c0_106 = arith.constant 0 : index
    %211 = vector.load %arg14[%c0_105, %c0_106] : memref<80x256xf32, #tpu.memory_space<vmem>>, vector<80x256xf32>
    tpu.vector_store %arg14[%c0_105, %c0_106], %210 {strides = array<i32>} : memref<80x256xf32, #tpu.memory_space<vmem>>, vector<80x256xf32>,
    %c8_107 = arith.constant 8 : index
    %c0_108 = arith.constant 0 : index
    %212 = vector.load %arg15[%c8_107, %c0_108] : memref<112x128xf32, #tpu.memory_space<vmem>>, vector<80x128xf32>
    %c1_109 = arith.constant 1 : index
    %c0_110 = arith.constant 0 : index
    %c0_111 = arith.constant 0 : index
    %213 = vector.load %arg4[%c1_109, %c0_110, %c0_111] : memref<5x128x256xf32, #tpu.memory_space<vmem>>, vector<1x128x256xf32>
    %214 = vector.shape_cast %213 : vector<1x128x256xf32> to vector<128x256xf32>
    %cst_112 = arith.constant dense<0.000000e+00> : vector<80x256xf32>
    %215 = tpu.matmul %212, %214, %cst_112 {dimension_numbers = #tpu.dot_dimension_numbers<[1], [0], [0], [1], [0, 0, 1, 1], [], []>} : vector<80x128xf32>, vector<128x256xf32>, vector<80x256xf32> -> vector<80x256xf32>
    %c0_113 = arith.constant 0 : index
    %c0_114 = arith.constant 0 : index
    %216 = vector.load %arg14[%c0_113, %c0_114] : memref<80x256xf32, #tpu.memory_space<vmem>>, vector<80x256xf32>
    %217 = arith.addf %216, %215 : vector<80x256xf32>
    %c0_115 = arith.constant 0 : index
    %c0_116 = arith.constant 0 : index
    %218 = vector.load %arg14[%c0_115, %c0_116] : memref<80x256xf32, #tpu.memory_space<vmem>>, vector<80x256xf32>
    tpu.vector_store %arg14[%c0_115, %c0_116], %217 {strides = array<i32>} : memref<80x256xf32, #tpu.memory_space<vmem>>, vector<80x256xf32>,
    %c16_117 = arith.constant 16 : index
    %c0_118 = arith.constant 0 : index
    %219 = vector.load %arg15[%c16_117, %c0_118] : memref<112x128xf32, #tpu.memory_space<vmem>>, vector<80x128xf32>
    %c2_119 = arith.constant 2 : index
    %c0_120 = arith.constant 0 : index
    %c0_121 = arith.constant 0 : index
    %220 = vector.load %arg4[%c2_119, %c0_120, %c0_121] : memref<5x128x256xf32, #tpu.memory_space<vmem>>, vector<1x128x256xf32>
    %221 = vector.shape_cast %220 : vector<1x128x256xf32> to vector<128x256xf32>
    %cst_122 = arith.constant dense<0.000000e+00> : vector<80x256xf32>
    %222 = tpu.matmul %219, %221, %cst_122 {dimension_numbers = #tpu.dot_dimension_numbers<[1], [0], [0], [1], [0, 0, 1, 1], [], []>} : vector<80x128xf32>, vector<128x256xf32>, vector<80x256xf32> -> vector<80x256xf32>
    %c0_123 = arith.constant 0 : index
    %c0_124 = arith.constant 0 : index
    %223 = vector.load %arg14[%c0_123, %c0_124] : memref<80x256xf32, #tpu.memory_space<vmem>>, vector<80x256xf32>
    %224 = arith.addf %223, %222 : vector<80x256xf32>
    %c0_125 = arith.constant 0 : index
    %c0_126 = arith.constant 0 : index
    %225 = vector.load %arg14[%c0_125, %c0_126] : memref<80x256xf32, #tpu.memory_space<vmem>>, vector<80x256xf32>
    tpu.vector_store %arg14[%c0_125, %c0_126], %224 {strides = array<i32>} : memref<80x256xf32, #tpu.memory_space<vmem>>, vector<80x256xf32>,
    %c24_127 = arith.constant 24 : index
    %c0_128 = arith.constant 0 : index
    %226 = vector.load %arg15[%c24_127, %c0_128] : memref<112x128xf32, #tpu.memory_space<vmem>>, vector<80x128xf32>
    %c3_129 = arith.constant 3 : index
    %c0_130 = arith.constant 0 : index
    %c0_131 = arith.constant 0 : index
    %227 = vector.load %arg4[%c3_129, %c0_130, %c0_131] : memref<5x128x256xf32, #tpu.memory_space<vmem>>, vector<1x128x256xf32>
    %228 = vector.shape_cast %227 : vector<1x128x256xf32> to vector<128x256xf32>
    %cst_132 = arith.constant dense<0.000000e+00> : vector<80x256xf32>
    %229 = tpu.matmul %226, %228, %cst_132 {dimension_numbers = #tpu.dot_dimension_numbers<[1], [0], [0], [1], [0, 0, 1, 1], [], []>} : vector<80x128xf32>, vector<128x256xf32>, vector<80x256xf32> -> vector<80x256xf32>
    %c0_133 = arith.constant 0 : index
    %c0_134 = arith.constant 0 : index
    %230 = vector.load %arg14[%c0_133, %c0_134] : memref<80x256xf32, #tpu.memory_space<vmem>>, vector<80x256xf32>
    %231 = arith.addf %230, %229 : vector<80x256xf32>
    %c0_135 = arith.constant 0 : index
    %c0_136 = arith.constant 0 : index
    %232 = vector.load %arg14[%c0_135, %c0_136] : memref<80x256xf32, #tpu.memory_space<vmem>>, vector<80x256xf32>
    tpu.vector_store %arg14[%c0_135, %c0_136], %231 {strides = array<i32>} : memref<80x256xf32, #tpu.memory_space<vmem>>, vector<80x256xf32>,
    %c32_137 = arith.constant 32 : index
    %c0_138 = arith.constant 0 : index
    %233 = vector.load %arg15[%c32_137, %c0_138] : memref<112x128xf32, #tpu.memory_space<vmem>>, vector<80x128xf32>
    %c4_139 = arith.constant 4 : index
    %c0_140 = arith.constant 0 : index
    %c0_141 = arith.constant 0 : index
    %234 = vector.load %arg4[%c4_139, %c0_140, %c0_141] : memref<5x128x256xf32, #tpu.memory_space<vmem>>, vector<1x128x256xf32>
    %235 = vector.shape_cast %234 : vector<1x128x256xf32> to vector<128x256xf32>
    %cst_142 = arith.constant dense<0.000000e+00> : vector<80x256xf32>
    %236 = tpu.matmul %233, %235, %cst_142 {dimension_numbers = #tpu.dot_dimension_numbers<[1], [0], [0], [1], [0, 0, 1, 1], [], []>} : vector<80x128xf32>, vector<128x256xf32>, vector<80x256xf32> -> vector<80x256xf32>
    %c0_143 = arith.constant 0 : index
    %c0_144 = arith.constant 0 : index
    %237 = vector.load %arg14[%c0_143, %c0_144] : memref<80x256xf32, #tpu.memory_space<vmem>>, vector<80x256xf32>
    %238 = arith.addf %237, %236 : vector<80x256xf32>
    %c0_145 = arith.constant 0 : index
    %c0_146 = arith.constant 0 : index
    %239 = vector.load %arg14[%c0_145, %c0_146] : memref<80x256xf32, #tpu.memory_space<vmem>>, vector<80x256xf32>
    tpu.vector_store %arg14[%c0_145, %c0_146], %238 {strides = array<i32>} : memref<80x256xf32, #tpu.memory_space<vmem>>, vector<80x256xf32>,
    %c0_147 = arith.constant 0 : index
    %c0_148 = arith.constant 0 : index
    %240 = vector.load %arg5[%c0_147, %c0_148] : memref<1x256xf32, #tpu.memory_space<vmem>>, vector<1x256xf32>
    %c0_149 = arith.constant 0 : index
    %c0_150 = arith.constant 0 : index
    %241 = vector.load %arg14[%c0_149, %c0_150] : memref<80x256xf32, #tpu.memory_space<vmem>>, vector<16x256xf32>
    %242 = vector.broadcast %240 : vector<1x256xf32> to vector<16x256xf32>
    %243 = arith.addf %241, %242 : vector<16x256xf32>
    %cst_151 = arith.constant 0.000000e+00 : f32
    %244 = vector.broadcast %cst_151 : f32 to vector<16x256xf32>
    %245 = arith.maximumf %243, %244 : vector<16x256xf32>
    %246 = vector.extract_strided_slice %245 {offsets = [0, 0], sizes = [16, 128], strides = [1, 1]} : vector<16x256xf32> to vector<16x128xf32>
    %247 = vector.extract_strided_slice %245 {offsets = [0, 128], sizes = [16, 128], strides = [1, 1]} : vector<16x256xf32> to vector<16x128xf32>
    %248 = arith.maximumf %246, %247 : vector<16x128xf32>
    %249 = vector.extract_strided_slice %248 {offsets = [0, 0], sizes = [8, 128], strides = [1, 1]} : vector<16x128xf32> to vector<8x128xf32>
    %250 = vector.extract_strided_slice %248 {offsets = [8, 0], sizes = [8, 128], strides = [1, 1]} : vector<16x128xf32> to vector<8x128xf32>
    %251 = arith.maximumf %249, %250 : vector<8x128xf32>
    %c0_152 = arith.constant 0 : index
    %c0_153 = arith.constant 0 : index
    %252 = vector.load %arg16[%c0_152, %c0_153] : memref<40x128xf32, #tpu.memory_space<vmem>>, vector<8x128xf32>
    tpu.vector_store %arg16[%c0_152, %c0_153], %251 {strides = array<i32>} : memref<40x128xf32, #tpu.memory_space<vmem>>, vector<8x128xf32>,
    %c16_154 = arith.constant 16 : index
    %c0_155 = arith.constant 0 : index
    %253 = vector.load %arg14[%c16_154, %c0_155] : memref<80x256xf32, #tpu.memory_space<vmem>>, vector<16x256xf32>
    %254 = vector.broadcast %240 : vector<1x256xf32> to vector<16x256xf32>
    %255 = arith.addf %253, %254 : vector<16x256xf32>
    %cst_156 = arith.constant 0.000000e+00 : f32
    %256 = vector.broadcast %cst_156 : f32 to vector<16x256xf32>
    %257 = arith.maximumf %255, %256 : vector<16x256xf32>
    %258 = vector.extract_strided_slice %257 {offsets = [0, 0], sizes = [16, 128], strides = [1, 1]} : vector<16x256xf32> to vector<16x128xf32>
    %259 = vector.extract_strided_slice %257 {offsets = [0, 128], sizes = [16, 128], strides = [1, 1]} : vector<16x256xf32> to vector<16x128xf32>
    %260 = arith.maximumf %258, %259 : vector<16x128xf32>
    %261 = vector.extract_strided_slice %260 {offsets = [0, 0], sizes = [8, 128], strides = [1, 1]} : vector<16x128xf32> to vector<8x128xf32>
    %262 = vector.extract_strided_slice %260 {offsets = [8, 0], sizes = [8, 128], strides = [1, 1]} : vector<16x128xf32> to vector<8x128xf32>
    %263 = arith.maximumf %261, %262 : vector<8x128xf32>
    %c8_157 = arith.constant 8 : index
    %c0_158 = arith.constant 0 : index
    %264 = vector.load %arg16[%c8_157, %c0_158] : memref<40x128xf32, #tpu.memory_space<vmem>>, vector<8x128xf32>
    tpu.vector_store %arg16[%c8_157, %c0_158], %263 {strides = array<i32>} : memref<40x128xf32, #tpu.memory_space<vmem>>, vector<8x128xf32>,
    %c32_159 = arith.constant 32 : index
    %c0_160 = arith.constant 0 : index
    %265 = vector.load %arg14[%c32_159, %c0_160] : memref<80x256xf32, #tpu.memory_space<vmem>>, vector<16x256xf32>
    %266 = vector.broadcast %240 : vector<1x256xf32> to vector<16x256xf32>
    %267 = arith.addf %265, %266 : vector<16x256xf32>
    %cst_161 = arith.constant 0.000000e+00 : f32
    %268 = vector.broadcast %cst_161 : f32 to vector<16x256xf32>
    %269 = arith.maximumf %267, %268 : vector<16x256xf32>
    %270 = vector.extract_strided_slice %269 {offsets = [0, 0], sizes = [16, 128], strides = [1, 1]} : vector<16x256xf32> to vector<16x128xf32>
    %271 = vector.extract_strided_slice %269 {offsets = [0, 128], sizes = [16, 128], strides = [1, 1]} : vector<16x256xf32> to vector<16x128xf32>
    %272 = arith.maximumf %270, %271 : vector<16x128xf32>
    %273 = vector.extract_strided_slice %272 {offsets = [0, 0], sizes = [8, 128], strides = [1, 1]} : vector<16x128xf32> to vector<8x128xf32>
    %274 = vector.extract_strided_slice %272 {offsets = [8, 0], sizes = [8, 128], strides = [1, 1]} : vector<16x128xf32> to vector<8x128xf32>
    %275 = arith.maximumf %273, %274 : vector<8x128xf32>
    %c16_162 = arith.constant 16 : index
    %c0_163 = arith.constant 0 : index
    %276 = vector.load %arg16[%c16_162, %c0_163] : memref<40x128xf32, #tpu.memory_space<vmem>>, vector<8x128xf32>
    tpu.vector_store %arg16[%c16_162, %c0_163], %275 {strides = array<i32>} : memref<40x128xf32, #tpu.memory_space<vmem>>, vector<8x128xf32>,
    %c48_164 = arith.constant 48 : index
    %c0_165 = arith.constant 0 : index
    %277 = vector.load %arg14[%c48_164, %c0_165] : memref<80x256xf32, #tpu.memory_space<vmem>>, vector<16x256xf32>
    %278 = vector.broadcast %240 : vector<1x256xf32> to vector<16x256xf32>
    %279 = arith.addf %277, %278 : vector<16x256xf32>
    %cst_166 = arith.constant 0.000000e+00 : f32
    %280 = vector.broadcast %cst_166 : f32 to vector<16x256xf32>
    %281 = arith.maximumf %279, %280 : vector<16x256xf32>
    %282 = vector.extract_strided_slice %281 {offsets = [0, 0], sizes = [16, 128], strides = [1, 1]} : vector<16x256xf32> to vector<16x128xf32>
    %283 = vector.extract_strided_slice %281 {offsets = [0, 128], sizes = [16, 128], strides = [1, 1]} : vector<16x256xf32> to vector<16x128xf32>
    %284 = arith.maximumf %282, %283 : vector<16x128xf32>
    %285 = vector.extract_strided_slice %284 {offsets = [0, 0], sizes = [8, 128], strides = [1, 1]} : vector<16x128xf32> to vector<8x128xf32>
    %286 = vector.extract_strided_slice %284 {offsets = [8, 0], sizes = [8, 128], strides = [1, 1]} : vector<16x128xf32> to vector<8x128xf32>
    %287 = arith.maximumf %285, %286 : vector<8x128xf32>
    %c24_167 = arith.constant 24 : index
    %c0_168 = arith.constant 0 : index
    %288 = vector.load %arg16[%c24_167, %c0_168] : memref<40x128xf32, #tpu.memory_space<vmem>>, vector<8x128xf32>
    tpu.vector_store %arg16[%c24_167, %c0_168], %287 {strides = array<i32>} : memref<40x128xf32, #tpu.memory_space<vmem>>, vector<8x128xf32>,
    %c64_169 = arith.constant 64 : index
    %c0_170 = arith.constant 0 : index
    %289 = vector.load %arg14[%c64_169, %c0_170] : memref<80x256xf32, #tpu.memory_space<vmem>>, vector<16x256xf32>
    %290 = vector.broadcast %240 : vector<1x256xf32> to vector<16x256xf32>
    %291 = arith.addf %289, %290 : vector<16x256xf32>
    %cst_171 = arith.constant 0.000000e+00 : f32
    %292 = vector.broadcast %cst_171 : f32 to vector<16x256xf32>
    %293 = arith.maximumf %291, %292 : vector<16x256xf32>
    %294 = vector.extract_strided_slice %293 {offsets = [0, 0], sizes = [16, 128], strides = [1, 1]} : vector<16x256xf32> to vector<16x128xf32>
    %295 = vector.extract_strided_slice %293 {offsets = [0, 128], sizes = [16, 128], strides = [1, 1]} : vector<16x256xf32> to vector<16x128xf32>
    %296 = arith.maximumf %294, %295 : vector<16x128xf32>
    %297 = vector.extract_strided_slice %296 {offsets = [0, 0], sizes = [8, 128], strides = [1, 1]} : vector<16x128xf32> to vector<8x128xf32>
    %298 = vector.extract_strided_slice %296 {offsets = [8, 0], sizes = [8, 128], strides = [1, 1]} : vector<16x128xf32> to vector<8x128xf32>
    %299 = arith.maximumf %297, %298 : vector<8x128xf32>
    %c32_172 = arith.constant 32 : index
    %c0_173 = arith.constant 0 : index
    %300 = vector.load %arg16[%c32_172, %c0_173] : memref<40x128xf32, #tpu.memory_space<vmem>>, vector<8x128xf32>
    tpu.vector_store %arg16[%c32_172, %c0_173], %299 {strides = array<i32>} : memref<40x128xf32, #tpu.memory_space<vmem>>, vector<8x128xf32>,
    %cst_174 = arith.constant 0.000000e+00 : f32
    %301 = vector.broadcast %cst_174 : f32 to vector<8x120xf32>
    %c0_175 = arith.constant 0 : index
    %c0_176 = arith.constant 0 : index
    %302 = vector.load %arg16[%c0_175, %c0_176] : memref<40x128xf32, #tpu.memory_space<vmem>>, vector<8x128xf32>
    %c0_177 = arith.constant 0 : index
    %c0_178 = arith.constant 0 : index
    %c0_179 = arith.constant 0 : index
    %303 = vector.load %arg6[%c0_177, %c0_178, %c0_179] : memref<5x128x120xf32, #tpu.memory_space<vmem>>, vector<1x128x120xf32>
    %304 = vector.shape_cast %303 : vector<1x128x120xf32> to vector<128x120xf32>
    %cst_180 = arith.constant dense<0.000000e+00> : vector<8x120xf32>
    %305 = tpu.matmul %302, %304, %cst_180 {dimension_numbers = #tpu.dot_dimension_numbers<[1], [0], [0], [1], [0, 0, 1, 1], [], []>} : vector<8x128xf32>, vector<128x120xf32>, vector<8x120xf32> -> vector<8x120xf32>
    %306 = arith.addf %301, %305 : vector<8x120xf32>
    %c8_181 = arith.constant 8 : index
    %c0_182 = arith.constant 0 : index
    %307 = vector.load %arg16[%c8_181, %c0_182] : memref<40x128xf32, #tpu.memory_space<vmem>>, vector<8x128xf32>
    %c1_183 = arith.constant 1 : index
    %c0_184 = arith.constant 0 : index
    %c0_185 = arith.constant 0 : index
    %308 = vector.load %arg6[%c1_183, %c0_184, %c0_185] : memref<5x128x120xf32, #tpu.memory_space<vmem>>, vector<1x128x120xf32>
    %309 = vector.shape_cast %308 : vector<1x128x120xf32> to vector<128x120xf32>
    %cst_186 = arith.constant dense<0.000000e+00> : vector<8x120xf32>
    %310 = tpu.matmul %307, %309, %cst_186 {dimension_numbers = #tpu.dot_dimension_numbers<[1], [0], [0], [1], [0, 0, 1, 1], [], []>} : vector<8x128xf32>, vector<128x120xf32>, vector<8x120xf32> -> vector<8x120xf32>
    %311 = arith.addf %306, %310 : vector<8x120xf32>
    %c16_187 = arith.constant 16 : index
    %c0_188 = arith.constant 0 : index
    %312 = vector.load %arg16[%c16_187, %c0_188] : memref<40x128xf32, #tpu.memory_space<vmem>>, vector<8x128xf32>
    %c2_189 = arith.constant 2 : index
    %c0_190 = arith.constant 0 : index
    %c0_191 = arith.constant 0 : index
    %313 = vector.load %arg6[%c2_189, %c0_190, %c0_191] : memref<5x128x120xf32, #tpu.memory_space<vmem>>, vector<1x128x120xf32>
    %314 = vector.shape_cast %313 : vector<1x128x120xf32> to vector<128x120xf32>
    %cst_192 = arith.constant dense<0.000000e+00> : vector<8x120xf32>
    %315 = tpu.matmul %312, %314, %cst_192 {dimension_numbers = #tpu.dot_dimension_numbers<[1], [0], [0], [1], [0, 0, 1, 1], [], []>} : vector<8x128xf32>, vector<128x120xf32>, vector<8x120xf32> -> vector<8x120xf32>
    %316 = arith.addf %311, %315 : vector<8x120xf32>
    %c24_193 = arith.constant 24 : index
    %c0_194 = arith.constant 0 : index
    %317 = vector.load %arg16[%c24_193, %c0_194] : memref<40x128xf32, #tpu.memory_space<vmem>>, vector<8x128xf32>
    %c3_195 = arith.constant 3 : index
    %c0_196 = arith.constant 0 : index
    %c0_197 = arith.constant 0 : index
    %318 = vector.load %arg6[%c3_195, %c0_196, %c0_197] : memref<5x128x120xf32, #tpu.memory_space<vmem>>, vector<1x128x120xf32>
    %319 = vector.shape_cast %318 : vector<1x128x120xf32> to vector<128x120xf32>
    %cst_198 = arith.constant dense<0.000000e+00> : vector<8x120xf32>
    %320 = tpu.matmul %317, %319, %cst_198 {dimension_numbers = #tpu.dot_dimension_numbers<[1], [0], [0], [1], [0, 0, 1, 1], [], []>} : vector<8x128xf32>, vector<128x120xf32>, vector<8x120xf32> -> vector<8x120xf32>
    %321 = arith.addf %316, %320 : vector<8x120xf32>
    %c32_199 = arith.constant 32 : index
    %c0_200 = arith.constant 0 : index
    %322 = vector.load %arg16[%c32_199, %c0_200] : memref<40x128xf32, #tpu.memory_space<vmem>>, vector<8x128xf32>
    %c4_201 = arith.constant 4 : index
    %c0_202 = arith.constant 0 : index
    %c0_203 = arith.constant 0 : index
    %323 = vector.load %arg6[%c4_201, %c0_202, %c0_203] : memref<5x128x120xf32, #tpu.memory_space<vmem>>, vector<1x128x120xf32>
    %324 = vector.shape_cast %323 : vector<1x128x120xf32> to vector<128x120xf32>
    %cst_204 = arith.constant dense<0.000000e+00> : vector<8x120xf32>
    %325 = tpu.matmul %322, %324, %cst_204 {dimension_numbers = #tpu.dot_dimension_numbers<[1], [0], [0], [1], [0, 0, 1, 1], [], []>} : vector<8x128xf32>, vector<128x120xf32>, vector<8x120xf32> -> vector<8x120xf32>
    %326 = arith.addf %321, %325 : vector<8x120xf32>
    %c0_205 = arith.constant 0 : index
    %c0_206 = arith.constant 0 : index
    %327 = vector.load %arg7[%c0_205, %c0_206] : memref<1x120xf32, #tpu.memory_space<vmem>>, vector<1x120xf32>
    %328 = vector.broadcast %327 : vector<1x120xf32> to vector<8x120xf32>
    %329 = arith.addf %326, %328 : vector<8x120xf32>
    %cst_207 = arith.constant 0.000000e+00 : f32
    %330 = vector.broadcast %cst_207 : f32 to vector<8x120xf32>
    %331 = arith.maximumf %329, %330 : vector<8x120xf32>
    %c0_208 = arith.constant 0 : index
    %c0_209 = arith.constant 0 : index
    %332 = vector.load %arg8[%c0_208, %c0_209] : memref<120x84xf32, #tpu.memory_space<vmem>>, vector<120x84xf32>
    %cst_210 = arith.constant dense<0.000000e+00> : vector<8x84xf32>
    %333 = tpu.matmul %331, %332, %cst_210 {dimension_numbers = #tpu.dot_dimension_numbers<[1], [0], [0], [1], [0, 0, 1, 1], [], []>} : vector<8x120xf32>, vector<120x84xf32>, vector<8x84xf32> -> vector<8x84xf32>
    %c0_211 = arith.constant 0 : index
    %c0_212 = arith.constant 0 : index
    %334 = vector.load %arg9[%c0_211, %c0_212] : memref<1x84xf32, #tpu.memory_space<vmem>>, vector<1x84xf32>
    %335 = vector.broadcast %334 : vector<1x84xf32> to vector<8x84xf32>
    %336 = arith.addf %333, %335 : vector<8x84xf32>
    %cst_213 = arith.constant 0.000000e+00 : f32
    %337 = vector.broadcast %cst_213 : f32 to vector<8x84xf32>
    %338 = arith.maximumf %336, %337 : vector<8x84xf32>
    %c0_214 = arith.constant 0 : index
    %c0_215 = arith.constant 0 : index
    %339 = vector.load %arg10[%c0_214, %c0_215] : memref<84x10xf32, #tpu.memory_space<vmem>>, vector<84x10xf32>
    %cst_216 = arith.constant dense<0.000000e+00> : vector<8x10xf32>
    %340 = tpu.matmul %338, %339, %cst_216 {dimension_numbers = #tpu.dot_dimension_numbers<[1], [0], [0], [1], [0, 0, 1, 1], [], []>} : vector<8x84xf32>, vector<84x10xf32>, vector<8x10xf32> -> vector<8x10xf32>
    %c0_217 = arith.constant 0 : index
    %c0_218 = arith.constant 0 : index
    %341 = vector.load %arg11[%c0_217, %c0_218] : memref<1x10xf32, #tpu.memory_space<vmem>>, vector<1x10xf32>
    %342 = vector.broadcast %341 : vector<1x10xf32> to vector<8x10xf32>
    %343 = arith.addf %340, %342 : vector<8x10xf32>
    %c0_219 = arith.constant 0 : index
    %c0_220 = arith.constant 0 : index
    %344 = vector.load %arg12[%c0_219, %c0_220] : memref<8x10xf32, #tpu.memory_space<vmem>>, vector<8x10xf32>
    tpu.vector_store %arg12[%c0_219, %c0_220], %343 {strides = array<i32>} : memref<8x10xf32, #tpu.memory_space<vmem>>, vector<8x10xf32>,
    return
  }
  func.func @transform_0(%arg0: i32) -> (i32, i32, i32) {
    %c0_i32 = arith.constant 0 : i32
    %c0_i32_0 = arith.constant 0 : i32
    %c0_i32_1 = arith.constant 0 : i32
    return %arg0, %c0_i32, %c0_i32_0 : i32, i32, i32
  }
  func.func @transform_1(%arg0: i32) -> (i32, i32, i32) {
    %c0_i32 = arith.constant 0 : i32
    %c0_i32_0 = arith.constant 0 : i32
    %c0_i32_1 = arith.constant 0 : i32
    %c0_i32_2 = arith.constant 0 : i32
    return %c0_i32, %c0_i32_0, %c0_i32_1 : i32, i32, i32
  }
  func.func @transform_2(%arg0: i32) -> (i32, i32) {
    %c0_i32 = arith.constant 0 : i32
    %c0_i32_0 = arith.constant 0 : i32
    %c0_i32_1 = arith.constant 0 : i32
    return %c0_i32, %c0_i32_0 : i32, i32
  }
  func.func @transform_3(%arg0: i32) -> (i32, i32, i32) {
    %c0_i32 = arith.constant 0 : i32
    %c0_i32_0 = arith.constant 0 : i32
    %c0_i32_1 = arith.constant 0 : i32
    %c0_i32_2 = arith.constant 0 : i32
    return %c0_i32, %c0_i32_0, %c0_i32_1 : i32, i32, i32
  }
  func.func @transform_4(%arg0: i32) -> (i32, i32) {
    %c0_i32 = arith.constant 0 : i32
    %c0_i32_0 = arith.constant 0 : i32
    %c0_i32_1 = arith.constant 0 : i32
    return %c0_i32, %c0_i32_0 : i32, i32
  }
  func.func @transform_5(%arg0: i32) -> (i32, i32, i32) {
    %c0_i32 = arith.constant 0 : i32
    %c0_i32_0 = arith.constant 0 : i32
    %c0_i32_1 = arith.constant 0 : i32
    %c0_i32_2 = arith.constant 0 : i32
    return %c0_i32, %c0_i32_0, %c0_i32_1 : i32, i32, i32
  }
  func.func @transform_6(%arg0: i32) -> (i32, i32) {
    %c0_i32 = arith.constant 0 : i32
    %c0_i32_0 = arith.constant 0 : i32
    %c0_i32_1 = arith.constant 0 : i32
    return %c0_i32, %c0_i32_0 : i32, i32
  }
  func.func @transform_7(%arg0: i32) -> (i32, i32) {
    %c0_i32 = arith.constant 0 : i32
    %c0_i32_0 = arith.constant 0 : i32
    %c0_i32_1 = arith.constant 0 : i32
    return %c0_i32, %c0_i32_0 : i32, i32
  }
  func.func @transform_8(%arg0: i32) -> (i32, i32) {
    %c0_i32 = arith.constant 0 : i32
    %c0_i32_0 = arith.constant 0 : i32
    %c0_i32_1 = arith.constant 0 : i32
    return %c0_i32, %c0_i32_0 : i32, i32
  }
  func.func @transform_9(%arg0: i32) -> (i32, i32) {
    %c0_i32 = arith.constant 0 : i32
    %c0_i32_0 = arith.constant 0 : i32
    %c0_i32_1 = arith.constant 0 : i32
    return %c0_i32, %c0_i32_0 : i32, i32
  }
  func.func @transform_10(%arg0: i32) -> (i32, i32) {
    %c0_i32 = arith.constant 0 : i32
    %c0_i32_0 = arith.constant 0 : i32
    %c0_i32_1 = arith.constant 0 : i32
    return %c0_i32, %c0_i32_0 : i32, i32
  }
  func.func @transform_11(%arg0: i32) -> (i32, i32) {
    %c0_i32 = arith.constant 0 : i32
    %c0_i32_0 = arith.constant 0 : i32
    return %arg0, %c0_i32 : i32, i32
  }
}

</mosaic_0001>

<llo_original>
// kernel: lenet_forward.1
$region0: #{lenet_forward.1}
  #allocation0 [shape = 'u32[]', space=smem, size = 0x4, offset = 0x4, fixed_abs, tag = 'smem constant byte address 0x4 - core index']
  #allocation1 [shape = 'u32[144,128]{1,0:T(1,128)}', space=vmem, size = 0x12000, scoped, tag = 'internal scratch']
  #allocation2 [shape = 'f32[224,256]{1,0:T(8,128)}', space=vmem, size = 0x38000, scoped, tag = 'scratch operand']
  #allocation3 [shape = 'f32[80,256]{1,0:T(8,128)}', space=vmem, size = 0x14000, scoped, tag = 'scratch operand']
  #allocation4 [shape = 'f32[112,128]{1,0:T(8,128)}', space=vmem, size = 0xe000, scoped, tag = 'scratch operand']
  #allocation5 [shape = 'f32[40,128]{1,0:T(8,128)}', space=vmem, size = 0x5000, scoped, tag = 'scratch operand']
  %s0 = inlined_call_operand.vmem [shape: f32[2,256,32], index: 0, kind: input, shape index: {}]
  %s1 = inlined_call_operand.vmem [shape: f32[5,32,256], index: 1, kind: input, shape index: {}]
  %s2 = inlined_call_operand.vmem [shape: f32[1,256], index: 2, kind: input, shape index: {}]
  %s3 = inlined_call_operand.vmem [shape: f32[5,128,256], index: 3, kind: input, shape index: {}]
  %s4 = inlined_call_operand.vmem [shape: f32[1,256], index: 4, kind: input, shape index: {}]
  %s5 = inlined_call_operand.vmem [shape: f32[5,128,120], index: 5, kind: input, shape index: {}]
  %s6 = inlined_call_operand.vmem [shape: f32[1,120], index: 6, kind: input, shape index: {}]
  %s7 = inlined_call_operand.vmem [shape: f32[120,84], index: 7, kind: input, shape index: {}]
  %s8 = inlined_call_operand.vmem [shape: f32[1,84], index: 8, kind: input, shape index: {}]
  %s9 = inlined_call_operand.vmem [shape: f32[84,10], index: 9, kind: input, shape index: {}]
  %s10 = inlined_call_operand.vmem [shape: f32[1,10], index: 10, kind: input, shape index: {}]
  %s11 = inlined_call_operand.hbm [shape: f32[16,10], index: 11, kind: output, shape index: {}]
  %s12 = sld [smem:[#allocation0]]
  $region77: #{lenet_forward.1} parent=0
    _
  %s14 = ssub.s32 1, %s12
  %s15 = scalar_select 0, %s14, %s12
  $region1: #{lenet_forward.1} parent=0
    #allocation6 [shape = 'u8[8192]{0}', space=vmem, size = 0x2000, scoped, tag = 'output window, operand 0']
    #allocation7 [shape = 's32[2]{0}', space=sflag, size = 0x8, scoped, tag = 'scoped memory for lenet_forward.1']
    %16 = vsyncpa [#allocation7], 0
    %s17 = scalar_lea.sflag [#allocation7], 1
    %18 = vsyncpa %s17, 0
    loop: start=0, step=1, limit=4
    $region2: #{lenet_forward.1} parent=1 // loop_pre_header
      _
    $region3: #{lenet_forward.1} parent=1 // loop_header
      %s20 = sphi 0, %s24
      %p21 = scmp.ge.s32.totalorder %s20, 4
      %s30 = sphi 0, %s32
      %s33 = sphi 0, %s30
      %s34 = sphi 0, %s33
      %s50 = sphi 0, %s34
      %s54 = sphi 0, %s54
      %s56 = sphi 0, %s54
      %s57 = sphi 0, %s56
      %s71 = sphi 0, %s57
      %s75 = sphi 0, %s75
      %s77 = sphi 0, %s75
      %s78 = sphi 0, %s77
      %s92 = sphi 0, %s78
      %s96 = sphi 0, %s96
      %s98 = sphi 0, %s96
      %s99 = sphi 0, %s98
      %s113 = sphi 0, %s99
      %s117 = sphi 0, %s117
      %s119 = sphi 0, %s117
      %s120 = sphi 0, %s119
      %s134 = sphi 0, %s120
      %s138 = sphi 0, %s138
      %s140 = sphi 0, %s138
      %s141 = sphi 0, %s140
      %s155 = sphi 0, %s141
      %s159 = sphi 0, %s159
      %s161 = sphi 0, %s159
      %s162 = sphi 0, %s161
      %s176 = sphi 0, %s162
      %s180 = sphi 0, %s180
      %s182 = sphi 0, %s180
      %s183 = sphi 0, %s182
      %s197 = sphi 0, %s183
      %s201 = sphi 0, %s201
      %s203 = sphi 0, %s201
      %s204 = sphi 0, %s203
      %s218 = sphi 0, %s204
      %s222 = sphi 0, %s222
      %s224 = sphi 0, %s222
      %s225 = sphi 0, %s224
      %s239 = sphi 0, %s225
      %s243 = sphi 0, %s243
      %s245 = sphi 0, %s243
      %s246 = sphi 0, %s245
      %s260 = sphi 0, %s246
      %s266 = sphi 0, %s268
      %s269 = sphi 0, %s266
      %s270 = sphi 0, %s269
      %s286 = sphi 0, %s270
    $region4: #{lenet_forward.1} parent=1 // loop_header_branch
      %23 = sbr.rel (%p21) target = $region8
    $region5: #{lenet_forward.1} parent=1 // loop_body
      %s25 = ssub.s32 %s20, 1
      %s26 = ssub.s32 %s20, 2
      %s27 = sadd.s32 %s20, 1
      %s28 = ssub.s32 %s20, %s27
      %p29 = scmp.eq.s32.totalorder %s28, 0
      %s31 = sadd.s32 %s30, 1
      %s32 = scalar_select %p29, %s30, %s31
      %p35 = pneg %p29
      %p36 = scmp.eq.s32.totalorder %s20, 1
      %p37 = por %p35, %p36
      %p38 = scmp.ne.s32.totalorder %s30, %s33
      %p39 = scmp.eq.s32.totalorder %s20, 0
      %p40 = por %p38, %p39
      %p41 = scmp.ne.s32.totalorder %s30, %s33
      %p42 = scmp.eq.s32.totalorder %s25, 1
      %p43 = por %p41, %p42
      %p44 = scmp.ne.s32.totalorder %s33, %s34
      %p45 = scmp.eq.s32.totalorder %s25, 0
      %p46 = por %p44, %p45
      %p47 = scmp.ne.s32.totalorder %s33, %s34
      %p48 = scmp.eq.s32.totalorder %s26, 1
      %p49 = por %p47, %p48
      %p51 = scmp.ne.s32.totalorder %s34, %s50
      %p52 = scmp.eq.s32.totalorder %s26, 0
      %p53 = por %p51, %p52
      %s55 = sadd.s32 %s54, 1
      %p58 = scmp.eq.s32.totalorder %s20, 1
      %p59 = scmp.ne.s32.totalorder %s54, %s56
      %p60 = scmp.eq.s32.totalorder %s20, 0
      %p61 = por %p59, %p60
      %p62 = scmp.ne.s32.totalorder %s54, %s56
      %p63 = scmp.eq.s32.totalorder %s25, 1
      %p64 = por %p62, %p63
      %p65 = scmp.ne.s32.totalorder %s56, %s57
      %p66 = scmp.eq.s32.totalorder %s25, 0
      %p67 = por %p65, %p66
      %p68 = scmp.ne.s32.totalorder %s56, %s57
      %p69 = scmp.eq.s32.totalorder %s26, 1
      %p70 = por %p68, %p69
      %p72 = scmp.ne.s32.totalorder %s57, %s71
      %p73 = scmp.eq.s32.totalorder %s26, 0
      %p74 = por %p72, %p73
      %s76 = sadd.s32 %s75, 1
      %p79 = scmp.eq.s32.totalorder %s20, 1
      %p80 = scmp.ne.s32.totalorder %s75, %s77
      %p81 = scmp.eq.s32.totalorder %s20, 0
      %p82 = por %p80, %p81
      %p83 = scmp.ne.s32.totalorder %s75, %s77
      %p84 = scmp.eq.s32.totalorder %s25, 1
      %p85 = por %p83, %p84
      %p86 = scmp.ne.s32.totalorder %s77, %s78
      %p87 = scmp.eq.s32.totalorder %s25, 0
      %p88 = por %p86, %p87
      %p89 = scmp.ne.s32.totalorder %s77, %s78
      %p90 = scmp.eq.s32.totalorder %s26, 1
      %p91 = por %p89, %p90
      %p93 = scmp.ne.s32.totalorder %s78, %s92
      %p94 = scmp.eq.s32.totalorder %s26, 0
      %p95 = por %p93, %p94
      %s97 = sadd.s32 %s96, 1
      %p100 = scmp.eq.s32.totalorder %s20, 1
      %p101 = scmp.ne.s32.totalorder %s96, %s98
      %p102 = scmp.eq.s32.totalorder %s20, 0
      %p103 = por %p101, %p102
      %p104 = scmp.ne.s32.totalorder %s96, %s98
      %p105 = scmp.eq.s32.totalorder %s25, 1
      %p106 = por %p104, %p105
      %p107 = scmp.ne.s32.totalorder %s98, %s99
      %p108 = scmp.eq.s32.totalorder %s25, 0
      %p109 = por %p107, %p108
      %p110 = scmp.ne.s32.totalorder %s98, %s99
      %p111 = scmp.eq.s32.totalorder %s26, 1
      %p112 = por %p110, %p111
      %p114 = scmp.ne.s32.totalorder %s99, %s113
      %p115 = scmp.eq.s32.totalorder %s26, 0
      %p116 = por %p114, %p115
      %s118 = sadd.s32 %s117, 1
      %p121 = scmp.eq.s32.totalorder %s20, 1
      %p122 = scmp.ne.s32.totalorder %s117, %s119
      %p123 = scmp.eq.s32.totalorder %s20, 0
      %p124 = por %p122, %p123
      %p125 = scmp.ne.s32.totalorder %s117, %s119
      %p126 = scmp.eq.s32.totalorder %s25, 1
      %p127 = por %p125, %p126
      %p128 = scmp.ne.s32.totalorder %s119, %s120
      %p129 = scmp.eq.s32.totalorder %s25, 0
      %p130 = por %p128, %p129
      %p131 = scmp.ne.s32.totalorder %s119, %s120
      %p132 = scmp.eq.s32.totalorder %s26, 1
      %p133 = por %p131, %p132
      %p135 = scmp.ne.s32.totalorder %s120, %s134
      %p136 = scmp.eq.s32.totalorder %s26, 0
      %p137 = por %p135, %p136
      %s139 = sadd.s32 %s138, 1
      %p142 = scmp.eq.s32.totalorder %s20, 1
      %p143 = scmp.ne.s32.totalorder %s138, %s140
      %p144 = scmp.eq.s32.totalorder %s20, 0
      %p145 = por %p143, %p144
      %p146 = scmp.ne.s32.totalorder %s138, %s140
      %p147 = scmp.eq.s32.totalorder %s25, 1
      %p148 = por %p146, %p147
      %p149 = scmp.ne.s32.totalorder %s140, %s141
      %p150 = scmp.eq.s32.totalorder %s25, 0
      %p151 = por %p149, %p150
      %p152 = scmp.ne.s32.totalorder %s140, %s141
      %p153 = scmp.eq.s32.totalorder %s26, 1
      %p154 = por %p152, %p153
      %p156 = scmp.ne.s32.totalorder %s141, %s155
      %p157 = scmp.eq.s32.totalorder %s26, 0
      %p158 = por %p156, %p157
      %s160 = sadd.s32 %s159, 1
      %p163 = scmp.eq.s32.totalorder %s20, 1
      %p164 = scmp.ne.s32.totalorder %s159, %s161
      %p165 = scmp.eq.s32.totalorder %s20, 0
      %p166 = por %p164, %p165
      %p167 = scmp.ne.s32.totalorder %s159, %s161
      %p168 = scmp.eq.s32.totalorder %s25, 1
      %p169 = por %p167, %p168
      %p170 = scmp.ne.s32.totalorder %s161, %s162
      %p171 = scmp.eq.s32.totalorder %s25, 0
      %p172 = por %p170, %p171
      %p173 = scmp.ne.s32.totalorder %s161, %s162
      %p174 = scmp.eq.s32.totalorder %s26, 1
      %p175 = por %p173, %p174
      %p177 = scmp.ne.s32.totalorder %s162, %s176
      %p178 = scmp.eq.s32.totalorder %s26, 0
      %p179 = por %p177, %p178
      %s181 = sadd.s32 %s180, 1
      %p184 = scmp.eq.s32.totalorder %s20, 1
      %p185 = scmp.ne.s32.totalorder %s180, %s182
      %p186 = scmp.eq.s32.totalorder %s20, 0
      %p187 = por %p185, %p186
      %p188 = scmp.ne.s32.totalorder %s180, %s182
      %p189 = scmp.eq.s32.totalorder %s25, 1
      %p190 = por %p188, %p189
      %p191 = scmp.ne.s32.totalorder %s182, %s183
      %p192 = scmp.eq.s32.totalorder %s25, 0
      %p193 = por %p191, %p192
      %p194 = scmp.ne.s32.totalorder %s182, %s183
      %p195 = scmp.eq.s32.totalorder %s26, 1
      %p196 = por %p194, %p195
      %p198 = scmp.ne.s32.totalorder %s183, %s197
      %p199 = scmp.eq.s32.totalorder %s26, 0
      %p200 = por %p198, %p199
      %s202 = sadd.s32 %s201, 1
      %p205 = scmp.eq.s32.totalorder %s20, 1
      %p206 = scmp.ne.s32.totalorder %s201, %s203
      %p207 = scmp.eq.s32.totalorder %s20, 0
      %p208 = por %p206, %p207
      %p209 = scmp.ne.s32.totalorder %s201, %s203
      %p210 = scmp.eq.s32.totalorder %s25, 1
      %p211 = por %p209, %p210
      %p212 = scmp.ne.s32.totalorder %s203, %s204
      %p213 = scmp.eq.s32.totalorder %s25, 0
      %p214 = por %p212, %p213
      %p215 = scmp.ne.s32.totalorder %s203, %s204
      %p216 = scmp.eq.s32.totalorder %s26, 1
      %p217 = por %p215, %p216
      %p219 = scmp.ne.s32.totalorder %s204, %s218
      %p220 = scmp.eq.s32.totalorder %s26, 0
      %p221 = por %p219, %p220
      %s223 = sadd.s32 %s222, 1
      %p226 = scmp.eq.s32.totalorder %s20, 1
      %p227 = scmp.ne.s32.totalorder %s222, %s224
      %p228 = scmp.eq.s32.totalorder %s20, 0
      %p229 = por %p227, %p228
      %p230 = scmp.ne.s32.totalorder %s222, %s224
      %p231 = scmp.eq.s32.totalorder %s25, 1
      %p232 = por %p230, %p231
      %p233 = scmp.ne.s32.totalorder %s224, %s225
      %p234 = scmp.eq.s32.totalorder %s25, 0
      %p235 = por %p233, %p234
      %p236 = scmp.ne.s32.totalorder %s224, %s225
      %p237 = scmp.eq.s32.totalorder %s26, 1
      %p238 = por %p236, %p237
      %p240 = scmp.ne.s32.totalorder %s225, %s239
      %p241 = scmp.eq.s32.totalorder %s26, 0
      %p242 = por %p240, %p241
      %s244 = sadd.s32 %s243, 1
      %p247 = scmp.eq.s32.totalorder %s20, 1
      %p248 = scmp.ne.s32.totalorder %s243, %s245
      %p249 = scmp.eq.s32.totalorder %s20, 0
      %p250 = por %p248, %p249
      %p251 = scmp.ne.s32.totalorder %s243, %s245
      %p252 = scmp.eq.s32.totalorder %s25, 1
      %p253 = por %p251, %p252
      %p254 = scmp.ne.s32.totalorder %s245, %s246
      %p255 = scmp.eq.s32.totalorder %s25, 0
      %p256 = por %p254, %p255
      %p257 = scmp.ne.s32.totalorder %s245, %s246
      %p258 = scmp.eq.s32.totalorder %s26, 1
      %p259 = por %p257, %p258
      %p261 = scmp.ne.s32.totalorder %s246, %s260
      %p262 = scmp.eq.s32.totalorder %s26, 0
      %p263 = por %p261, %p262
      %s264 = ssub.s32 %s20, %s27
      %p265 = scmp.eq.s32.totalorder %s264, 0
      %s267 = sadd.s32 %s266, 1
      %s268 = scalar_select %p265, %s266, %s267
      %p271 = pneg %p265
      %p272 = scmp.eq.s32.totalorder %s20, 1
      %p273 = por %p271, %p272
      %p274 = scmp.ne.s32.totalorder %s266, %s269
      %p275 = scmp.eq.s32.totalorder %s20, 0
      %p276 = por %p274, %p275
      %p277 = scmp.ne.s32.totalorder %s266, %s269
      %p278 = scmp.eq.s32.totalorder %s25, 1
      %p279 = por %p277, %p278
      %p280 = scmp.ne.s32.totalorder %s269, %s270
      %p281 = scmp.eq.s32.totalorder %s25, 0
      %p282 = por %p280, %p281
      %p283 = scmp.ne.s32.totalorder %s269, %s270
      %p284 = scmp.eq.s32.totalorder %s26, 1
      %p285 = por %p283, %p284
      %p287 = scmp.ne.s32.totalorder %s270, %s286
      %p288 = scmp.eq.s32.totalorder %s26, 0
      %p289 = por %p287, %p288
      %p290 = scmp.le.s32.totalorder 1, %s20
      %p291 = scmp.lt.s32.totalorder %s20, 3
      %p292 = pnand %p290, %p291
      %p293 = pneg %p292
      // Predicated region
      $region9: #{lenet_forward.1} parent=5 // pred_check
        _
      $region10: #{lenet_forward.1} parent=5 // pred_check_branch
        %295 = sbr.rel (%p292) target = $region12
      $region11: #{lenet_forward.1} parent=5 // pred_region
        %s296 = ssub.s32 %s20, 1
        // Predicated region
        $region13: #{lenet_forward.1} parent=11 // pred_check
          %p297 = pneg %p67
        $region14: #{lenet_forward.1} parent=11 // pred_check_branch
          %299 = sbr.rel (%p297) target = $region16
        $region15: #{lenet_forward.1} parent=11 // pred_region
          _
        $region16: #{lenet_forward.1} parent=11 // pred_fallthru
          _
        // Predicated region
        $region17: #{lenet_forward.1} parent=11 // pred_check
          %p300 = pneg %p88
        $region18: #{lenet_forward.1} parent=11 // pred_check_branch
          %302 = sbr.rel (%p300) target = $region20
        $region19: #{lenet_forward.1} parent=11 // pred_region
          _
        $region20: #{lenet_forward.1} parent=11 // pred_fallthru
          _
        // Predicated region
        $region21: #{lenet_forward.1} parent=11 // pred_check
          %p303 = pneg %p109
        $region22: #{lenet_forward.1} parent=11 // pred_check_branch
          %305 = sbr.rel (%p303) target = $region24
        $region23: #{lenet_forward.1} parent=11 // pred_region
          _
        $region24: #{lenet_forward.1} parent=11 // pred_fallthru
          _
        // Predicated region
        $region25: #{lenet_forward.1} parent=11 // pred_check
          %p306 = pneg %p130
        $region26: #{lenet_forward.1} parent=11 // pred_check_branch
          %308 = sbr.rel (%p306) target = $region28
        $region27: #{lenet_forward.1} parent=11 // pred_region
          _
        $region28: #{lenet_forward.1} parent=11 // pred_fallthru
          _
        // Predicated region
        $region29: #{lenet_forward.1} parent=11 // pred_check
          %p309 = pneg %p151
        $region30: #{lenet_forward.1} parent=11 // pred_check_branch
          %311 = sbr.rel (%p309) target = $region32
        $region31: #{lenet_forward.1} parent=11 // pred_region
          _
        $region32: #{lenet_forward.1} parent=11 // pred_fallthru
          _
        // Predicated region
        $region33: #{lenet_forward.1} parent=11 // pred_check
          %p312 = pneg %p172
        $region34: #{lenet_forward.1} parent=11 // pred_check_branch
          %314 = sbr.rel (%p312) target = $region36
        $region35: #{lenet_forward.1} parent=11 // pred_region
          _
        $region36: #{lenet_forward.1} parent=11 // pred_fallthru
          _
        // Predicated region
        $region37: #{lenet_forward.1} parent=11 // pred_check
          %p315 = pneg %p193
        $region38: #{lenet_forward.1} parent=11 // pred_check_branch
          %317 = sbr.rel (%p315) target = $region40
        $region39: #{lenet_forward.1} parent=11 // pred_region
          _
        $region40: #{lenet_forward.1} parent=11 // pred_fallthru
          _
        // Predicated region
        $region41: #{lenet_forward.1} parent=11 // pred_check
          %p318 = pneg %p214
        $region42: #{lenet_forward.1} parent=11 // pred_check_branch
          %320 = sbr.rel (%p318) target = $region44
        $region43: #{lenet_forward.1} parent=11 // pred_region
          _
        $region44: #{lenet_forward.1} parent=11 // pred_fallthru
          _
        // Predicated region
        $region45: #{lenet_forward.1} parent=11 // pred_check
          %p321 = pneg %p235
        $region46: #{lenet_forward.1} parent=11 // pred_check_branch
          %323 = sbr.rel (%p321) target = $region48
        $region47: #{lenet_forward.1} parent=11 // pred_region
          _
        $region48: #{lenet_forward.1} parent=11 // pred_fallthru
          _
        // Predicated region
        $region49: #{lenet_forward.1} parent=11 // pred_check
          %p324 = pneg %p256
        $region50: #{lenet_forward.1} parent=11 // pred_check_branch
          %326 = sbr.rel (%p324) target = $region52
        $region51: #{lenet_forward.1} parent=11 // pred_region
          _
        $region52: #{lenet_forward.1} parent=11 // pred_fallthru
          _
      $region12: #{lenet_forward.1} parent=5 // pred_fallthru
        _
      %p327 = scmp.lt.s32.totalorder %s20, 2
      // Predicated region
      $region53: #{lenet_forward.1} parent=5 // pred_check
        %p328 = pneg %p327
      $region54: #{lenet_forward.1} parent=5 // pred_check_branch
        %330 = sbr.rel (%p328) target = $region56
      $region55: #{lenet_forward.1} parent=5 // pred_region
        // Predicated region
        $region57: #{lenet_forward.1} parent=55 // pred_check
          %p331 = pneg %p40
        $region58: #{lenet_forward.1} parent=55 // pred_check_branch
          %333 = sbr.rel (%p331) target = $region60
        $region59: #{lenet_forward.1} parent=55 // pred_region
          %p334 = scmp.lt.s32.totalorder %s20, 1
          %s335 = scalar_select %p334, %s20, 1
          %s336 = smul.addr %s335, 32
          %s337 = smul.addr %s336, 8
          %s338 = scalar_lea.vmem %s0, %s337
        $region60: #{lenet_forward.1} parent=55 // pred_fallthru
          _
      $region56: #{lenet_forward.1} parent=5 // pred_fallthru
        _
      %p339 = scmp.le.s32.totalorder 1, %s20
      %p340 = scmp.lt.s32.totalorder %s20, 3
      %p341 = pnand %p339, %p340
      %p342 = pneg %p341
      // Predicated region
      $region61: #{lenet_forward.1} parent=5 // pred_check
        _
      $region62: #{lenet_forward.1} parent=5 // pred_check_branch
        %344 = sbr.rel (%p341) target = $region64
      $region63: #{lenet_forward.1} parent=5 // pred_region
        %s345 = ssub.s32 %s20, 1
        %p346 = scmp.lt.s32.totalorder %s25, 1
        %s347 = scalar_select %p346, %s25, 1
        %s348 = smul.addr %s347, 32
        %s349 = smul.addr %s348, 8
        %s350 = scalar_lea.vmem %s0, %s349
        %p351 = pneg %p46
        %p352 = pneg %p43
        %p353 = pneg %p67
        %p354 = pneg %p64
        %p355 = pneg %p88
        %p356 = pneg %p85
        %p357 = pneg %p109
        %p358 = pneg %p106
        %p359 = pneg %p130
        %p360 = pneg %p127
        %p361 = pneg %p151
        %p362 = pneg %p148
        %p363 = pneg %p172
        %p364 = pneg %p169
        %p365 = pneg %p193
        %p366 = pneg %p190
        %p367 = pneg %p214
        %p368 = pneg %p211
        %p369 = pneg %p235
        %p370 = pneg %p232
        %p371 = pneg %p256
        %p372 = pneg %p253
        %p373 = pneg %p282
        %p374 = pneg %p279
        %s375 = sand.u32 %s269, 1
        %s376 = scalar_lea.sflag [#allocation7], %s375
        %s377 = sand.u32 %s269, 1
        %s378 = smul.addr %s377, 8
        %s379 = scalar_lea.vmem [#allocation6], %s378
        %p380 = scmp.lt.s32.totalorder %s25, 1
        %s381 = scalar_select %p380, %s25, 1
        %s382 = smul.addr %s381, 32
        %s383 = smul.addr %s382, 8
        %s384 = scalar_lea.vmem %s0, %s383
        %v385 = vld [vmem:[%s384] sm:$0xff]
        %v386 = vld [vmem:[%s384 + $0x8] sm:$0xff]
        %v387 = vld [vmem:[%s384 + $0x10] sm:$0xff]
        %v388 = vld [vmem:[%s384 + $0x18] sm:$0xff]
        %v389 = vld [vmem:[%s384 + $0x20] sm:$0xff]
        %v390 = vld [vmem:[%s384 + $0x28] sm:$0xff]
        %v391 = vld [vmem:[%s384 + $0x30] sm:$0xff]
        %v392 = vld [vmem:[%s384 + $0x38] sm:$0xff]
        %v393 = vld [vmem:[%s384 + $0x40] sm:$0xff]
        %v394 = vld [vmem:[%s384 + $0x48] sm:$0xff]
        %v395 = vld [vmem:[%s384 + $0x50] sm:$0xff]
        %v396 = vld [vmem:[%s384 + $0x58] sm:$0xff]
        %v397 = vld [vmem:[%s384 + $0x60] sm:$0xff]
        %v398 = vld [vmem:[%s384 + $0x68] sm:$0xff]
        %v399 = vld [vmem:[%s384 + $0x70] sm:$0xff]
        %v400 = vld [vmem:[%s384 + $0x78] sm:$0xff]
        %v401 = vld [vmem:[%s384 + $0x80] sm:$0xff]
        %v402 = vld [vmem:[%s384 + $0x88] sm:$0xff]
        %v403 = vld [vmem:[%s384 + $0x90] sm:$0xff]
        %v404 = vld [vmem:[%s384 + $0x98] sm:$0xff]
        %v405 = vld [vmem:[%s384 + $0xa0] sm:$0xff]
        %v406 = vld [vmem:[%s384 + $0xa8] sm:$0xff]
        %v407 = vld [vmem:[%s384 + $0xb0] sm:$0xff]
        %v408 = vld [vmem:[%s384 + $0xb8] sm:$0xff]
        %v409 = vld [vmem:[%s384 + $0xc0] sm:$0xff]
        %v410 = vld [vmem:[%s384 + $0xc8] sm:$0xff]
        %v411 = vld [vmem:[%s384 + $0xd0] sm:$0xff]
        %v412 = vld [vmem:[%s384 + $0xd8] sm:$0xff]
        %v413 = vld [vmem:[%s1] sm:$0xff]
        %v414 = vld [vmem:[%s1 + $0x8] sm:$0xff]
        %v415 = vld [vmem:[%s1 + $0x10] sm:$0xff]
        %v416 = vld [vmem:[%s1 + $0x18] sm:$0xff]
        %v417 = vld [vmem:[%s1 + $0x20] sm:$0xff]
        %v418 = vld [vmem:[%s1 + $0x28] sm:$0xff]
        %v419 = vld [vmem:[%s1 + $0x30] sm:$0xff]
        %v420 = vld [vmem:[%s1 + $0x38] sm:$0xff]
        %vm421 = vcmask 261120
        %v423 = vsel %vm421, %v385, 0
        %v426 = vsel %vm421, %v386, 0
        %v429 = vsel %vm421, %v387, 0
        %v432 = vsel %vm421, %v388, 0
        %v435 = vsel %vm421, %v389, 0
        %v438 = vsel %vm421, %v390, 0
        %v441 = vsel %vm421, %v391, 0
        %v444 = vsel %vm421, %v392, 0
        %v447 = vsel %vm421, %v393, 0
        %v450 = vsel %vm421, %v394, 0
        %v453 = vsel %vm421, %v395, 0
        %v456 = vsel %vm421, %v396, 0
        %v459 = vsel %vm421, %v397, 0
        %v462 = vsel %vm421, %v398, 0
        %v465 = vsel %vm421, %v399, 0
        %v468 = vsel %vm421, %v400, 0
        %v471 = vsel %vm421, %v401, 0
        %v474 = vsel %vm421, %v402, 0
        %v477 = vsel %vm421, %v403, 0
        %v480 = vsel %vm421, %v404, 0
        %v483 = vsel %vm421, %v405, 0
        %v486 = vsel %vm421, %v406, 0
        %v489 = vsel %vm421, %v407, 0
        %v492 = vsel %vm421, %v408, 0
        %v495 = vsel %vm421, %v409, 0
        %v498 = vsel %vm421, %v410, 0
        %v501 = vsel %vm421, %v411, 0
        %v504 = vsel %vm421, %v412, 0
        %506 = vmatprep.subr.mxu0 %v414
        %507 = vmatpush1.msra.mxu0 %v413
        %508 = vmatprep.subr.mxu0 %v416
        %509 = vmatpush1.msra.mxu0 %v415
        %510 = vmatprep.subr.mxu0 %v418
        %511 = vmatpush1.msra.mxu0 %v417
        %512 = vmatprep.subr.mxu0 %v420
        %513 = vmatpush1.msra.mxu0 %v419
        %514 = vmatprep.subr.mxu0 0.0
        %515 = vmatpush1.msra.mxu0 0.0
        %516 = vmatprep.subr.mxu0 0.0
        %517 = vmatpush1.msra.mxu0 0.0
        %518 = vmatprep.subr.mxu0 0.0
        %519 = vmatpush1.msra.mxu0 0.0
        %520 = vmatprep.subr.mxu0 0.0
        %521 = vmatpush1.msra.mxu0 0.0
        %522 = vmatprep.subr.mxu0 0.0
        %523 = vmatpush1.msra.mxu0 0.0
        %524 = vmatprep.subr.mxu0 0.0
        %525 = vmatpush1.msra.mxu0 0.0
        %526 = vmatprep.subr.mxu0 0.0
        %527 = vmatpush1.msra.mxu0 0.0
        %528 = vmatprep.subr.mxu0 0.0
        %529 = vmatpush1.msra.mxu0 0.0
        %530 = vmatprep.subr.mxu0 0.0
        %531 = vmatpush1.msra.mxu0 0.0
        %532 = vmatprep.subr.mxu0 0.0
        %533 = vmatpush1.msra.mxu0 0.0
        %534 = vmatprep.subr.mxu0 0.0
        %535 = vmatpush1.msra.mxu0 0.0
        %536 = vmatprep.subr.mxu0 0.0
        %537 = vmatpush1.msra.mxu0 0.0
        %538 = vmatprep.subr.mxu0 0.0
        %539 = vmatpush1.msra.mxu0 0.0
        %540 = vmatprep.subr.mxu0 0.0
        %541 = vmatpush1.msra.mxu0 0.0
        %542 = vmatprep.subr.mxu0 0.0
        %543 = vmatpush1.msra.mxu0 0.0
        %544 = vmatprep.subr.mxu0 0.0
        %545 = vmatpush1.msra.mxu0 0.0
        %546 = vmatprep.subr.mxu0 0.0
        %547 = vmatpush1.msra.mxu0 0.0
        %548 = vmatprep.subr.mxu0 0.0
        %549 = vmatpush1.msra.mxu0 0.0
        %550 = vmatprep.subr.mxu0 0.0
        %551 = vmatpush1.msra.mxu0 0.0
        %552 = vmatprep.subr.mxu0 0.0
        %553 = vmatpush1.msra.mxu0 0.0
        %554 = vmatprep.subr.mxu0 0.0
        %555 = vmatpush1.msra.mxu0 0.0
        %556 = vmatprep.subr.mxu0 0.0
        %557 = vmatpush1.msra.mxu0 0.0
        %558 = vmatprep.subr.mxu0 0.0
        %559 = vmatpush1.msra.mxu0 0.0
        %560 = vmatprep.subr.mxu0 0.0
        %561 = vmatpush1.msra.mxu0 0.0
        %562 = vmatprep.subr.mxu0 0.0
        %563 = vmatpush1.msra.mxu0 0.0
        %564 = vmatprep.subr.mxu0 0.0
        %565 = vmatpush1.msra.mxu0 0.0
        %566 = vmatprep.subr.mxu0 0.0
        %567 = vmatpush1.msra.mxu0 0.0
        %568 = vmatprep.subr.mxu0 0.0
        %569 = vmatpush1.msra.mxu0 0.0
        %570 = vmatprep.mubr.f32.mxu0 0.0
        %571 = vmatmul.mubr.f32.gmra.mrb[0].mxu0 %v423
        %v572 = vpop.f32.mrb[0].mxu0
        %v573 = vadd.f32 0.0, %v572
        %v574 = vpop.f32.mrb[0].mxu0
        %v575 = vadd.f32 0.0, %v574
        %576 = vmatprep.mubr.f32.mxu0 0.0
        %577 = vmatmul.mubr.f32.gmra.mrb[0].mxu0 %v426
        %v578 = vpop.f32.mrb[0].mxu0
        %v579 = vadd.f32 0.0, %v578
        %v580 = vpop.f32.mrb[0].mxu0
        %v581 = vadd.f32 0.0, %v580
        %582 = vmatprep.mubr.f32.mxu0 0.0
        %583 = vmatmul.mubr.f32.gmra.mrb[0].mxu0 %v429
        %v584 = vpop.f32.mrb[0].mxu0
        %v585 = vadd.f32 0.0, %v584
        %v586 = vpop.f32.mrb[0].mxu0
        %v587 = vadd.f32 0.0, %v586
        %588 = vmatprep.mubr.f32.mxu0 0.0
        %589 = vmatmul.mubr.f32.gmra.mrb[0].mxu0 %v432
        %v590 = vpop.f32.mrb[0].mxu0
        %v591 = vadd.f32 0.0, %v590
        %v592 = vpop.f32.mrb[0].mxu0
        %v593 = vadd.f32 0.0, %v592
        %594 = vmatprep.mubr.f32.mxu0 0.0
        %595 = vmatmul.mubr.f32.gmra.mrb[0].mxu0 %v435
        %v596 = vpop.f32.mrb[0].mxu0
        %v597 = vadd.f32 0.0, %v596
        %v598 = vpop.f32.mrb[0].mxu0
        %v599 = vadd.f32 0.0, %v598
        %600 = vmatprep.mubr.f32.mxu0 0.0
        %601 = vmatmul.mubr.f32.gmra.mrb[0].mxu0 %v438
        %v602 = vpop.f32.mrb[0].mxu0
        %v603 = vadd.f32 0.0, %v602
        %v604 = vpop.f32.mrb[0].mxu0
        %v605 = vadd.f32 0.0, %v604
        %606 = vmatprep.mubr.f32.mxu0 0.0
        %607 = vmatmul.mubr.f32.gmra.mrb[0].mxu0 %v441
        %v608 = vpop.f32.mrb[0].mxu0
        %v609 = vadd.f32 0.0, %v608
        %v610 = vpop.f32.mrb[0].mxu0
        %v611 = vadd.f32 0.0, %v610
        %612 = vmatprep.mubr.f32.mxu0 0.0
        %613 = vmatmul.mubr.f32.gmra.mrb[0].mxu0 %v444
        %v614 = vpop.f32.mrb[0].mxu0
        %v615 = vadd.f32 0.0, %v614
        %v616 = vpop.f32.mrb[0].mxu0
        %v617 = vadd.f32 0.0, %v616
        %618 = vmatprep.mubr.f32.mxu0 0.0
        %619 = vmatmul.mubr.f32.gmra.mrb[0].mxu0 %v447
        %v620 = vpop.f32.mrb[0].mxu0
        %v621 = vadd.f32 0.0, %v620
        %v622 = vpop.f32.mrb[0].mxu0
        %v623 = vadd.f32 0.0, %v622
        %624 = vmatprep.mubr.f32.mxu0 0.0
        %625 = vmatmul.mubr.f32.gmra.mrb[0].mxu0 %v450
        %v626 = vpop.f32.mrb[0].mxu0
        %v627 = vadd.f32 0.0, %v626
        %v628 = vpop.f32.mrb[0].mxu0
        %v629 = vadd.f32 0.0, %v628
        %630 = vmatprep.mubr.f32.mxu0 0.0
        %631 = vmatmul.mubr.f32.gmra.mrb[0].mxu0 %v453
        %v632 = vpop.f32.mrb[0].mxu0
        %v633 = vadd.f32 0.0, %v632
        %v634 = vpop.f32.mrb[0].mxu0
        %v635 = vadd.f32 0.0, %v634
        %636 = vmatprep.mubr.f32.mxu0 0.0
        %637 = vmatmul.mubr.f32.gmra.mrb[0].mxu0 %v456
        %v638 = vpop.f32.mrb[0].mxu0
        %v639 = vadd.f32 0.0, %v638
        %v640 = vpop.f32.mrb[0].mxu0
        %v641 = vadd.f32 0.0, %v640
        %642 = vmatprep.mubr.f32.mxu0 0.0
        %643 = vmatmul.mubr.f32.gmra.mrb[0].mxu0 %v459
        %v644 = vpop.f32.mrb[0].mxu0
        %v645 = vadd.f32 0.0, %v644
        %v646 = vpop.f32.mrb[0].mxu0
        %v647 = vadd.f32 0.0, %v646
        %648 = vmatprep.mubr.f32.mxu0 0.0
        %649 = vmatmul.mubr.f32.gmra.mrb[0].mxu0 %v462
        %v650 = vpop.f32.mrb[0].mxu0
        %v651 = vadd.f32 0.0, %v650
        %v652 = vpop.f32.mrb[0].mxu0
        %v653 = vadd.f32 0.0, %v652
        %654 = vmatprep.mubr.f32.mxu0 0.0
        %655 = vmatmul.mubr.f32.gmra.mrb[0].mxu0 %v465
        %v656 = vpop.f32.mrb[0].mxu0
        %v657 = vadd.f32 0.0, %v656
        %v658 = vpop.f32.mrb[0].mxu0
        %v659 = vadd.f32 0.0, %v658
        %660 = vmatprep.mubr.f32.mxu0 0.0
        %661 = vmatmul.mubr.f32.gmra.mrb[0].mxu0 %v468
        %v662 = vpop.f32.mrb[0].mxu0
        %v663 = vadd.f32 0.0, %v662
        %v664 = vpop.f32.mrb[0].mxu0
        %v665 = vadd.f32 0.0, %v664
        %666 = vmatprep.mubr.f32.mxu0 0.0
        %667 = vmatmul.mubr.f32.gmra.mrb[0].mxu0 %v471
        %v668 = vpop.f32.mrb[0].mxu0
        %v669 = vadd.f32 0.0, %v668
        %v670 = vpop.f32.mrb[0].mxu0
        %v671 = vadd.f32 0.0, %v670
        %672 = vmatprep.mubr.f32.mxu0 0.0
        %673 = vmatmul.mubr.f32.gmra.mrb[0].mxu0 %v474
        %v674 = vpop.f32.mrb[0].mxu0
        %v675 = vadd.f32 0.0, %v674
        %v676 = vpop.f32.mrb[0].mxu0
        %v677 = vadd.f32 0.0, %v676
        %678 = vmatprep.mubr.f32.mxu0 0.0
        %679 = vmatmul.mubr.f32.gmra.mrb[0].mxu0 %v477
        %v680 = vpop.f32.mrb[0].mxu0
        %v681 = vadd.f32 0.0, %v680
        %v682 = vpop.f32.mrb[0].mxu0
        %v683 = vadd.f32 0.0, %v682
        %684 = vmatprep.mubr.f32.mxu0 0.0
        %685 = vmatmul.mubr.f32.gmra.mrb[0].mxu0 %v480
        %v686 = vpop.f32.mrb[0].mxu0
        %v687 = vadd.f32 0.0, %v686
        %v688 = vpop.f32.mrb[0].mxu0
        %v689 = vadd.f32 0.0, %v688
        %690 = vmatprep.mubr.f32.mxu0 0.0
        %691 = vmatmul.mubr.f32.gmra.mrb[0].mxu0 %v483
        %v692 = vpop.f32.mrb[0].mxu0
        %v693 = vadd.f32 0.0, %v692
        %v694 = vpop.f32.mrb[0].mxu0
        %v695 = vadd.f32 0.0, %v694
        %696 = vmatprep.mubr.f32.mxu0 0.0
        %697 = vmatmul.mubr.f32.gmra.mrb[0].mxu0 %v486
        %v698 = vpop.f32.mrb[0].mxu0
        %v699 = vadd.f32 0.0, %v698
        %v700 = vpop.f32.mrb[0].mxu0
        %v701 = vadd.f32 0.0, %v700
        %702 = vmatprep.mubr.f32.mxu0 0.0
        %703 = vmatmul.mubr.f32.gmra.mrb[0].mxu0 %v489
        %v704 = vpop.f32.mrb[0].mxu0
        %v705 = vadd.f32 0.0, %v704
        %v706 = vpop.f32.mrb[0].mxu0
        %v707 = vadd.f32 0.0, %v706
        %708 = vmatprep.mubr.f32.mxu0 0.0
        %709 = vmatmul.mubr.f32.gmra.mrb[0].mxu0 %v492
        %v710 = vpop.f32.mrb[0].mxu0
        %v711 = vadd.f32 0.0, %v710
        %v712 = vpop.f32.mrb[0].mxu0
        %v713 = vadd.f32 0.0, %v712
        %714 = vmatprep.mubr.f32.mxu0 0.0
        %715 = vmatmul.mubr.f32.gmra.mrb[0].mxu0 %v495
        %v716 = vpop.f32.mrb[0].mxu0
        %v717 = vadd.f32 0.0, %v716
        %v718 = vpop.f32.mrb[0].mxu0
        %v719 = vadd.f32 0.0, %v718
        %720 = vmatprep.mubr.f32.mxu0 0.0
        %721 = vmatmul.mubr.f32.gmra.mrb[0].mxu0 %v498
        %v722 = vpop.f32.mrb[0].mxu0
        %v723 = vadd.f32 0.0, %v722
        %v724 = vpop.f32.mrb[0].mxu0
        %v725 = vadd.f32 0.0, %v724
        %726 = vmatprep.mubr.f32.mxu0 0.0
        %727 = vmatmul.mubr.f32.gmra.mrb[0].mxu0 %v501
        %v728 = vpop.f32.mrb[0].mxu0
        %v729 = vadd.f32 0.0, %v728
        %v730 = vpop.f32.mrb[0].mxu0
        %v731 = vadd.f32 0.0, %v730
        %732 = vmatprep.mubr.f32.mxu0 0.0
        %733 = vmatmul.mubr.f32.gmra.mrb[0].mxu0 %v504
        %v734 = vpop.f32.mrb[0].mxu0
        %v735 = vadd.f32 0.0, %v734
        %v736 = vpop.f32.mrb[0].mxu0
        %v737 = vadd.f32 0.0, %v736
        %738 = vdwg.mxu0
        %739 = vst [vmem:[#allocation2] sm:$0xff] %v573
        %740 = vst [vmem:[#allocation2 + $0x8] sm:$0xff] %v575
        %741 = vst [vmem:[#allocation2 + $0x10] sm:$0xff] %v579
        %742 = vst [vmem:[#allocation2 + $0x18] sm:$0xff] %v581
        %743 = vst [vmem:[#allocation2 + $0x20] sm:$0xff] %v585
        %744 = vst [vmem:[#allocation2 + $0x28] sm:$0xff] %v587
        %745 = vst [vmem:[#allocation2 + $0x30] sm:$0xff] %v591
        %746 = vst [vmem:[#allocation2 + $0x38] sm:$0xff] %v593
        %747 = vst [vmem:[#allocation2 + $0x40] sm:$0xff] %v597
        %748 = vst [vmem:[#allocation2 + $0x48] sm:$0xff] %v599
        %749 = vst [vmem:[#allocation2 + $0x50] sm:$0xff] %v603
        %750 = vst [vmem:[#allocation2 + $0x58] sm:$0xff] %v605
        %751 = vst [vmem:[#allocation2 + $0x60] sm:$0xff] %v609
        %752 = vst [vmem:[#allocation2 + $0x68] sm:$0xff] %v611
        %753 = vst [vmem:[#allocation2 + $0x70] sm:$0xff] %v615
        %754 = vst [vmem:[#allocation2 + $0x78] sm:$0xff] %v617
        %755 = vst [vmem:[#allocation2 + $0x80] sm:$0xff] %v621
        %756 = vst [vmem:[#allocation2 + $0x88] sm:$0xff] %v623
        %757 = vst [vmem:[#allocation2 + $0x90] sm:$0xff] %v627
        %758 = vst [vmem:[#allocation2 + $0x98] sm:$0xff] %v629
        %759 = vst [vmem:[#allocation2 + $0xa0] sm:$0xff] %v633
        %760 = vst [vmem:[#allocation2 + $0xa8] sm:$0xff] %v635
        %761 = vst [vmem:[#allocation2 + $0xb0] sm:$0xff] %v639
        %762 = vst [vmem:[#allocation2 + $0xb8] sm:$0xff] %v641
        %763 = vst [vmem:[#allocation2 + $0xc0] sm:$0xff] %v645
        %764 = vst [vmem:[#allocation2 + $0xc8] sm:$0xff] %v647
        %765 = vst [vmem:[#allocation2 + $0xd0] sm:$0xff] %v651
        %766 = vst [vmem:[#allocation2 + $0xd8] sm:$0xff] %v653
        %767 = vst [vmem:[#allocation2 + $0xe0] sm:$0xff] %v657
        %768 = vst [vmem:[#allocation2 + $0xe8] sm:$0xff] %v659
        %769 = vst [vmem:[#allocation2 + $0xf0] sm:$0xff] %v663
        %770 = vst [vmem:[#allocation2 + $0xf8] sm:$0xff] %v665
        %771 = vst [vmem:[#allocation2 + $0x100] sm:$0xff] %v669
        %772 = vst [vmem:[#allocation2 + $0x108] sm:$0xff] %v671
        %773 = vst [vmem:[#allocation2 + $0x110] sm:$0xff] %v675
        %774 = vst [vmem:[#allocation2 + $0x118] sm:$0xff] %v677
        %775 = vst [vmem:[#allocation2 + $0x120] sm:$0xff] %v681
        %776 = vst [vmem:[#allocation2 + $0x128] sm:$0xff] %v683
        %777 = vst [vmem:[#allocation2 + $0x130] sm:$0xff] %v687
        %778 = vst [vmem:[#allocation2 + $0x138] sm:$0xff] %v689
        %779 = vst [vmem:[#allocation2 + $0x140] sm:$0xff] %v693
        %780 = vst [vmem:[#allocation2 + $0x148] sm:$0xff] %v695
        %781 = vst [vmem:[#allocation2 + $0x150] sm:$0xff] %v699
        %782 = vst [vmem:[#allocation2 + $0x158] sm:$0xff] %v701
        %783 = vst [vmem:[#allocation2 + $0x160] sm:$0xff] %v705
        %784 = vst [vmem:[#allocation2 + $0x168] sm:$0xff] %v707
        %785 = vst [vmem:[#allocation2 + $0x170] sm:$0xff] %v711
        %786 = vst [vmem:[#allocation2 + $0x178] sm:$0xff] %v713
        %787 = vst [vmem:[#allocation2 + $0x180] sm:$0xff] %v717
        %788 = vst [vmem:[#allocation2 + $0x188] sm:$0xff] %v719
        %789 = vst [vmem:[#allocation2 + $0x190] sm:$0xff] %v723
        %790 = vst [vmem:[#allocation2 + $0x198] sm:$0xff] %v725
        %791 = vst [vmem:[#allocation2 + $0x1a0] sm:$0xff] %v729
        %792 = vst [vmem:[#allocation2 + $0x1a8] sm:$0xff] %v731
        %793 = vst [vmem:[#allocation2 + $0x1b0] sm:$0xff] %v735
        %794 = vst [vmem:[#allocation2 + $0x1b8] sm:$0xff] %v737
        %v795 = vld [vmem:[%s384 + $0x8] sm:$0xff]
        %v796 = vld [vmem:[%s384 + $0x10] sm:$0xff]
        %v797 = vld [vmem:[%s384 + $0x18] sm:$0xff]
        %v798 = vld [vmem:[%s384 + $0x20] sm:$0xff]
        %v799 = vld [vmem:[%s384 + $0x28] sm:$0xff]
        %v800 = vld [vmem:[%s384 + $0x30] sm:$0xff]
        %v801 = vld [vmem:[%s384 + $0x38] sm:$0xff]
        %v802 = vld [vmem:[%s384 + $0x40] sm:$0xff]
        %v803 = vld [vmem:[%s384 + $0x48] sm:$0xff]
        %v804 = vld [vmem:[%s384 + $0x50] sm:$0xff]
        %v805 = vld [vmem:[%s384 + $0x58] sm:$0xff]
        %v806 = vld [vmem:[%s384 + $0x60] sm:$0xff]
        %v807 = vld [vmem:[%s384 + $0x68] sm:$0xff]
        %v808 = vld [vmem:[%s384 + $0x70] sm:$0xff]
        %v809 = vld [vmem:[%s384 + $0x78] sm:$0xff]
        %v810 = vld [vmem:[%s384 + $0x80] sm:$0xff]
        %v811 = vld [vmem:[%s384 + $0x88] sm:$0xff]
        %v812 = vld [vmem:[%s384 + $0x90] sm:$0xff]
        %v813 = vld [vmem:[%s384 + $0x98] sm:$0xff]
        %v814 = vld [vmem:[%s384 + $0xa0] sm:$0xff]
        %v815 = vld [vmem:[%s384 + $0xa8] sm:$0xff]
        %v816 = vld [vmem:[%s384 + $0xb0] sm:$0xff]
        %v817 = vld [vmem:[%s384 + $0xb8] sm:$0xff]
        %v818 = vld [vmem:[%s384 + $0xc0] sm:$0xff]
        %v819 = vld [vmem:[%s384 + $0xc8] sm:$0xff]
        %v820 = vld [vmem:[%s384 + $0xd0] sm:$0xff]
        %v821 = vld [vmem:[%s384 + $0xd8] sm:$0xff]
        %v822 = vld [vmem:[%s384 + $0xe0] sm:$0xff]
        %s823 = scalar_lea.vmem %s1, 64
        %v824 = vld [vmem:[%s823] sm:$0xff]
        %v825 = vld [vmem:[%s823 + $0x8] sm:$0xff]
        %v826 = vld [vmem:[%s823 + $0x10] sm:$0xff]
        %v827 = vld [vmem:[%s823 + $0x18] sm:$0xff]
        %v828 = vld [vmem:[%s823 + $0x20] sm:$0xff]
        %v829 = vld [vmem:[%s823 + $0x28] sm:$0xff]
        %v830 = vld [vmem:[%s823 + $0x30] sm:$0xff]
        %v831 = vld [vmem:[%s823 + $0x38] sm:$0xff]
        %v833 = vsel %vm421, %v795, 0
        %v836 = vsel %vm421, %v796, 0
        %v839 = vsel %vm421, %v797, 0
        %v842 = vsel %vm421, %v798, 0
        %v845 = vsel %vm421, %v799, 0
        %v848 = vsel %vm421, %v800, 0
        %v851 = vsel %vm421, %v801, 0
        %v854 = vsel %vm421, %v802, 0
        %v857 = vsel %vm421, %v803, 0
        %v860 = vsel %vm421, %v804, 0
        %v863 = vsel %vm421, %v805, 0
        %v866 = vsel %vm421, %v806, 0
        %v869 = vsel %vm421, %v807, 0
        %v872 = vsel %vm421, %v808, 0
        %v875 = vsel %vm421, %v809, 0
        %v878 = vsel %vm421, %v810, 0
        %v881 = vsel %vm421, %v811, 0
        %v884 = vsel %vm421, %v812, 0
        %v887 = vsel %vm421, %v813, 0
        %v890 = vsel %vm421, %v814, 0
        %v893 = vsel %vm421, %v815, 0
        %v896 = vsel %vm421, %v816, 0
        %v899 = vsel %vm421, %v817, 0
        %v902 = vsel %vm421, %v818, 0
        %v905 = vsel %vm421, %v819, 0
        %v908 = vsel %vm421, %v820, 0
        %v911 = vsel %vm421, %v821, 0
        %v914 = vsel %vm421, %v822, 0
        %916 = vmatprep.subr.mxu0 %v825
        %917 = vmatpush1.msra.mxu0 %v824
        %918 = vmatprep.subr.mxu0 %v827
        %919 = vmatpush1.msra.mxu0 %v826
        %920 = vmatprep.subr.mxu0 %v829
        %921 = vmatpush1.msra.mxu0 %v828
        %922 = vmatprep.subr.mxu0 %v831
        %923 = vmatpush1.msra.mxu0 %v830
        %924 = vmatprep.subr.mxu0 0.0
        %925 = vmatpush1.msra.mxu0 0.0
        %926 = vmatprep.subr.mxu0 0.0
        %927 = vmatpush1.msra.mxu0 0.0
        %928 = vmatprep.subr.mxu0 0.0
        %929 = vmatpush1.msra.mxu0 0.0
        %930 = vmatprep.subr.mxu0 0.0
        %931 = vmatpush1.msra.mxu0 0.0
        %932 = vmatprep.subr.mxu0 0.0
        %933 = vmatpush1.msra.mxu0 0.0
        %934 = vmatprep.subr.mxu0 0.0
        %935 = vmatpush1.msra.mxu0 0.0
        %936 = vmatprep.subr.mxu0 0.0
        %937 = vmatpush1.msra.mxu0 0.0
        %938 = vmatprep.subr.mxu0 0.0
        %939 = vmatpush1.msra.mxu0 0.0
        %940 = vmatprep.subr.mxu0 0.0
        %941 = vmatpush1.msra.mxu0 0.0
        %942 = vmatprep.subr.mxu0 0.0
        %943 = vmatpush1.msra.mxu0 0.0
        %944 = vmatprep.subr.mxu0 0.0
        %945 = vmatpush1.msra.mxu0 0.0
        %946 = vmatprep.subr.mxu0 0.0
        %947 = vmatpush1.msra.mxu0 0.0
        %948 = vmatprep.subr.mxu0 0.0
        %949 = vmatpush1.msra.mxu0 0.0
        %950 = vmatprep.subr.mxu0 0.0
        %951 = vmatpush1.msra.mxu0 0.0
        %952 = vmatprep.subr.mxu0 0.0
        %953 = vmatpush1.msra.mxu0 0.0
        %954 = vmatprep.subr.mxu0 0.0
        %955 = vmatpush1.msra.mxu0 0.0
        %956 = vmatprep.subr.mxu0 0.0
        %957 = vmatpush1.msra.mxu0 0.0
        %958 = vmatprep.subr.mxu0 0.0
        %959 = vmatpush1.msra.mxu0 0.0
        %960 = vmatprep.subr.mxu0 0.0
        %961 = vmatpush1.msra.mxu0 0.0
        %962 = vmatprep.subr.mxu0 0.0
        %963 = vmatpush1.msra.mxu0 0.0
        %964 = vmatprep.subr.mxu0 0.0
        %965 = vmatpush1.msra.mxu0 0.0
        %966 = vmatprep.subr.mxu0 0.0
        %967 = vmatpush1.msra.mxu0 0.0
        %968 = vmatprep.subr.mxu0 0.0
        %969 = vmatpush1.msra.mxu0 0.0
        %970 = vmatprep.subr.mxu0 0.0
        %971 = vmatpush1.msra.mxu0 0.0
        %972 = vmatprep.subr.mxu0 0.0
        %973 = vmatpush1.msra.mxu0 0.0
        %974 = vmatprep.subr.mxu0 0.0
        %975 = vmatpush1.msra.mxu0 0.0
        %976 = vmatprep.subr.mxu0 0.0
        %977 = vmatpush1.msra.mxu0 0.0
        %978 = vmatprep.subr.mxu0 0.0
        %979 = vmatpush1.msra.mxu0 0.0
        %980 = vmatprep.mubr.f32.mxu0 0.0
        %981 = vmatmul.mubr.f32.gmra.mrb[0].mxu0 %v833
        %v982 = vpop.f32.mrb[0].mxu0
        %v983 = vadd.f32 0.0, %v982
        %v984 = vpop.f32.mrb[0].mxu0
        %v985 = vadd.f32 0.0, %v984
        %986 = vmatprep.mubr.f32.mxu0 0.0
        %987 = vmatmul.mubr.f32.gmra.mrb[0].mxu0 %v836
        %v988 = vpop.f32.mrb[0].mxu0
        %v989 = vadd.f32 0.0, %v988
        %v990 = vpop.f32.mrb[0].mxu0
        %v991 = vadd.f32 0.0, %v990
        %992 = vmatprep.mubr.f32.mxu0 0.0
        %993 = vmatmul.mubr.f32.gmra.mrb[0].mxu0 %v839
        %v994 = vpop.f32.mrb[0].mxu0
        %v995 = vadd.f32 0.0, %v994
        %v996 = vpop.f32.mrb[0].mxu0
        %v997 = vadd.f32 0.0, %v996
        %998 = vmatprep.mubr.f32.mxu0 0.0
        %999 = vmatmul.mubr.f32.gmra.mrb[0].mxu0 %v842
        %v1000 = vpop.f32.mrb[0].mxu0
        %v1001 = vadd.f32 0.0, %v1000
        %v1002 = vpop.f32.mrb[0].mxu0
        %v1003 = vadd.f32 0.0, %v1002
        %1004 = vmatprep.mubr.f32.mxu0 0.0
        %1005 = vmatmul.mubr.f32.gmra.mrb[0].mxu0 %v845
        %v1006 = vpop.f32.mrb[0].mxu0
        %v1007 = vadd.f32 0.0, %v1006
        %v1008 = vpop.f32.mrb[0].mxu0
        %v1009 = vadd.f32 0.0, %v1008
        %1010 = vmatprep.mubr.f32.mxu0 0.0
        %1011 = vmatmul.mubr.f32.gmra.mrb[0].mxu0 %v848
        %v1012 = vpop.f32.mrb[0].mxu0
        %v1013 = vadd.f32 0.0, %v1012
        %v1014 = vpop.f32.mrb[0].mxu0
        %v1015 = vadd.f32 0.0, %v1014
        %1016 = vmatprep.mubr.f32.mxu0 0.0
        %1017 = vmatmul.mubr.f32.gmra.mrb[0].mxu0 %v851
        %v1018 = vpop.f32.mrb[0].mxu0
        %v1019 = vadd.f32 0.0, %v1018
        %v1020 = vpop.f32.mrb[0].mxu0
        %v1021 = vadd.f32 0.0, %v1020
        %1022 = vmatprep.mubr.f32.mxu0 0.0
        %1023 = vmatmul.mubr.f32.gmra.mrb[0].mxu0 %v854
        %v1024 = vpop.f32.mrb[0].mxu0
        %v1025 = vadd.f32 0.0, %v1024
        %v1026 = vpop.f32.mrb[0].mxu0
        %v1027 = vadd.f32 0.0, %v1026
        %1028 = vmatprep.mubr.f32.mxu0 0.0
        %1029 = vmatmul.mubr.f32.gmra.mrb[0].mxu0 %v857
        %v1030 = vpop.f32.mrb[0].mxu0
        %v1031 = vadd.f32 0.0, %v1030
        %v1032 = vpop.f32.mrb[0].mxu0
        %v1033 = vadd.f32 0.0, %v1032
        %1034 = vmatprep.mubr.f32.mxu0 0.0
        %1035 = vmatmul.mubr.f32.gmra.mrb[0].mxu0 %v860
        %v1036 = vpop.f32.mrb[0].mxu0
        %v1037 = vadd.f32 0.0, %v1036
        %v1038 = vpop.f32.mrb[0].mxu0
        %v1039 = vadd.f32 0.0, %v1038
        %1040 = vmatprep.mubr.f32.mxu0 0.0
        %1041 = vmatmul.mubr.f32.gmra.mrb[0].mxu0 %v863
        %v1042 = vpop.f32.mrb[0].mxu0
        %v1043 = vadd.f32 0.0, %v1042
        %v1044 = vpop.f32.mrb[0].mxu0
        %v1045 = vadd.f32 0.0, %v1044
        %1046 = vmatprep.mubr.f32.mxu0 0.0
        %1047 = vmatmul.mubr.f32.gmra.mrb[0].mxu0 %v866
        %v1048 = vpop.f32.mrb[0].mxu0
        %v1049 = vadd.f32 0.0, %v1048
        %v1050 = vpop.f32.mrb[0].mxu0
        %v1051 = vadd.f32 0.0, %v1050
        %1052 = vmatprep.mubr.f32.mxu0 0.0
        %1053 = vmatmul.mubr.f32.gmra.mrb[0].mxu0 %v869
        %v1054 = vpop.f32.mrb[0].mxu0
        %v1055 = vadd.f32 0.0, %v1054
        %v1056 = vpop.f32.mrb[0].mxu0
        %v1057 = vadd.f32 0.0, %v1056
        %1058 = vmatprep.mubr.f32.mxu0 0.0
        %1059 = vmatmul.mubr.f32.gmra.mrb[0].mxu0 %v872
        %v1060 = vpop.f32.mrb[0].mxu0
        %v1061 = vadd.f32 0.0, %v1060
        %v1062 = vpop.f32.mrb[0].mxu0
        %v1063 = vadd.f32 0.0, %v1062
        %1064 = vmatprep.mubr.f32.mxu0 0.0
        %1065 = vmatmul.mubr.f32.gmra.mrb[0].mxu0 %v875
        %v1066 = vpop.f32.mrb[0].mxu0
        %v1067 = vadd.f32 0.0, %v1066
        %v1068 = vpop.f32.mrb[0].mxu0
        %v1069 = vadd.f32 0.0, %v1068
        %1070 = vmatprep.mubr.f32.mxu0 0.0
        %1071 = vmatmul.mubr.f32.gmra.mrb[0].mxu0 %v878
        %v1072 = vpop.f32.mrb[0].mxu0
        %v1073 = vadd.f32 0.0, %v1072
        %v1074 = vpop.f32.mrb[0].mxu0
        %v1075 = vadd.f32 0.0, %v1074
        %1076 = vmatprep.mubr.f32.mxu0 0.0
        %1077 = vmatmul.mubr.f32.gmra.mrb[0].mxu0 %v881
        %v1078 = vpop.f32.mrb[0].mxu0
        %v1079 = vadd.f32 0.0, %v1078
        %v1080 = vpop.f32.mrb[0].mxu0
        %v1081 = vadd.f32 0.0, %v1080
        %1082 = vmatprep.mubr.f32.mxu0 0.0
        %1083 = vmatmul.mubr.f32.gmra.mrb[0].mxu0 %v884
        %v1084 = vpop.f32.mrb[0].mxu0
        %v1085 = vadd.f32 0.0, %v1084
        %v1086 = vpop.f32.mrb[0].mxu0
        %v1087 = vadd.f32 0.0, %v1086
        %1088 = vmatprep.mubr.f32.mxu0 0.0
        %1089 = vmatmul.mubr.f32.gmra.mrb[0].mxu0 %v887
        %v1090 = vpop.f32.mrb[0].mxu0
        %v1091 = vadd.f32 0.0, %v1090
        %v1092 = vpop.f32.mrb[0].mxu0
        %v1093 = vadd.f32 0.0, %v1092
        %1094 = vmatprep.mubr.f32.mxu0 0.0
        %1095 = vmatmul.mubr.f32.gmra.mrb[0].mxu0 %v890
        %v1096 = vpop.f32.mrb[0].mxu0
        %v1097 = vadd.f32 0.0, %v1096
        %v1098 = vpop.f32.mrb[0].mxu0
        %v1099 = vadd.f32 0.0, %v1098
        %1100 = vmatprep.mubr.f32.mxu0 0.0
        %1101 = vmatmul.mubr.f32.gmra.mrb[0].mxu0 %v893
        %v1102 = vpop.f32.mrb[0].mxu0
        %v1103 = vadd.f32 0.0, %v1102
        %v1104 = vpop.f32.mrb[0].mxu0
        %v1105 = vadd.f32 0.0, %v1104
        %1106 = vmatprep.mubr.f32.mxu0 0.0
        %1107 = vmatmul.mubr.f32.gmra.mrb[0].mxu0 %v896
        %v1108 = vpop.f32.mrb[0].mxu0
        %v1109 = vadd.f32 0.0, %v1108
        %v1110 = vpop.f32.mrb[0].mxu0
        %v1111 = vadd.f32 0.0, %v1110
        %1112 = vmatprep.mubr.f32.mxu0 0.0
        %1113 = vmatmul.mubr.f32.gmra.mrb[0].mxu0 %v899
        %v1114 = vpop.f32.mrb[0].mxu0
        %v1115 = vadd.f32 0.0, %v1114
        %v1116 = vpop.f32.mrb[0].mxu0
        %v1117 = vadd.f32 0.0, %v1116
        %1118 = vmatprep.mubr.f32.mxu0 0.0
        %1119 = vmatmul.mubr.f32.gmra.mrb[0].mxu0 %v902
        %v1120 = vpop.f32.mrb[0].mxu0
        %v1121 = vadd.f32 0.0, %v1120
        %v1122 = vpop.f32.mrb[0].mxu0
        %v1123 = vadd.f32 0.0, %v1122
        %1124 = vmatprep.mubr.f32.mxu0 0.0
        %1125 = vmatmul.mubr.f32.gmra.mrb[0].mxu0 %v905
        %v1126 = vpop.f32.mrb[0].mxu0
        %v1127 = vadd.f32 0.0, %v1126
        %v1128 = vpop.f32.mrb[0].mxu0
        %v1129 = vadd.f32 0.0, %v1128
        %1130 = vmatprep.mubr.f32.mxu0 0.0
        %1131 = vmatmul.mubr.f32.gmra.mrb[0].mxu0 %v908
        %v1132 = vpop.f32.mrb[0].mxu0
        %v1133 = vadd.f32 0.0, %v1132
        %v1134 = vpop.f32.mrb[0].mxu0
        %v1135 = vadd.f32 0.0, %v1134
        %1136 = vmatprep.mubr.f32.mxu0 0.0
        %1137 = vmatmul.mubr.f32.gmra.mrb[0].mxu0 %v911
        %v1138 = vpop.f32.mrb[0].mxu0
        %v1139 = vadd.f32 0.0, %v1138
        %v1140 = vpop.f32.mrb[0].mxu0
        %v1141 = vadd.f32 0.0, %v1140
        %1142 = vmatprep.mubr.f32.mxu0 0.0
        %1143 = vmatmul.mubr.f32.gmra.mrb[0].mxu0 %v914
        %v1144 = vpop.f32.mrb[0].mxu0
        %v1145 = vadd.f32 0.0, %v1144
        %v1146 = vpop.f32.mrb[0].mxu0
        %v1147 = vadd.f32 0.0, %v1146
        %1148 = vdwg.mxu0
        %v1149 = vld [vmem:[#allocation2] sm:$0xff]
        %v1150 = vld [vmem:[#allocation2 + $0x8] sm:$0xff]
        %v1151 = vld [vmem:[#allocation2 + $0x10] sm:$0xff]
        %v1152 = vld [vmem:[#allocation2 + $0x18] sm:$0xff]
        %v1153 = vld [vmem:[#allocation2 + $0x20] sm:$0xff]
        %v1154 = vld [vmem:[#allocation2 + $0x28] sm:$0xff]
        %v1155 = vld [vmem:[#allocation2 + $0x30] sm:$0xff]
        %v1156 = vld [vmem:[#allocation2 + $0x38] sm:$0xff]
        %v1157 = vld [vmem:[#allocation2 + $0x40] sm:$0xff]
        %v1158 = vld [vmem:[#allocation2 + $0x48] sm:$0xff]
        %v1159 = vld [vmem:[#allocation2 + $0x50] sm:$0xff]
        %v1160 = vld [vmem:[#allocation2 + $0x58] sm:$0xff]
        %v1161 = vld [vmem:[#allocation2 + $0x60] sm:$0xff]
        %v1162 = vld [vmem:[#allocation2 + $0x68] sm:$0xff]
        %v1163 = vld [vmem:[#allocation2 + $0x70] sm:$0xff]
        %v1164 = vld [vmem:[#allocation2 + $0x78] sm:$0xff]
        %v1165 = vld [vmem:[#allocation2 + $0x80] sm:$0xff]
        %v1166 = vld [vmem:[#allocation2 + $0x88] sm:$0xff]
        %v1167 = vld [vmem:[#allocation2 + $0x90] sm:$0xff]
        %v1168 = vld [vmem:[#allocation2 + $0x98] sm:$0xff]
        %v1169 = vld [vmem:[#allocation2 + $0xa0] sm:$0xff]
        %v1170 = vld [vmem:[#allocation2 + $0xa8] sm:$0xff]
        %v1171 = vld [vmem:[#allocation2 + $0xb0] sm:$0xff]
        %v1172 = vld [vmem:[#allocation2 + $0xb8] sm:$0xff]
        %v1173 = vld [vmem:[#allocation2 + $0xc0] sm:$0xff]
        %v1174 = vld [vmem:[#allocation2 + $0xc8] sm:$0xff]
        %v1175 = vld [vmem:[#allocation2 + $0xd0] sm:$0xff]
        %v1176 = vld [vmem:[#allocation2 + $0xd8] sm:$0xff]
        %v1177 = vld [vmem:[#allocation2 + $0xe0] sm:$0xff]
        %v1178 = vld [vmem:[#allocation2 + $0xe8] sm:$0xff]
        %v1179 = vld [vmem:[#allocation2 + $0xf0] sm:$0xff]
        %v1180 = vld [vmem:[#allocation2 + $0xf8] sm:$0xff]
        %v1181 = vld [vmem:[#allocation2 + $0x100] sm:$0xff]
        %v1182 = vld [vmem:[#allocation2 + $0x108] sm:$0xff]
        %v1183 = vld [vmem:[#allocation2 + $0x110] sm:$0xff]
        %v1184 = vld [vmem:[#allocation2 + $0x118] sm:$0xff]
        %v1185 = vld [vmem:[#allocation2 + $0x120] sm:$0xff]
        %v1186 = vld [vmem:[#allocation2 + $0x128] sm:$0xff]
        %v1187 = vld [vmem:[#allocation2 + $0x130] sm:$0xff]
        %v1188 = vld [vmem:[#allocation2 + $0x138] sm:$0xff]
        %v1189 = vld [vmem:[#allocation2 + $0x140] sm:$0xff]
        %v1190 = vld [vmem:[#allocation2 + $0x148] sm:$0xff]
        %v1191 = vld [vmem:[#allocation2 + $0x150] sm:$0xff]
        %v1192 = vld [vmem:[#allocation2 + $0x158] sm:$0xff]
        %v1193 = vld [vmem:[#allocation2 + $0x160] sm:$0xff]
        %v1194 = vld [vmem:[#allocation2 + $0x168] sm:$0xff]
        %v1195 = vld [vmem:[#allocation2 + $0x170] sm:$0xff]
        %v1196 = vld [vmem:[#allocation2 + $0x178] sm:$0xff]
        %v1197 = vld [vmem:[#allocation2 + $0x180] sm:$0xff]
        %v1198 = vld [vmem:[#allocation2 + $0x188] sm:$0xff]
        %v1199 = vld [vmem:[#allocation2 + $0x190] sm:$0xff]
        %v1200 = vld [vmem:[#allocation2 + $0x198] sm:$0xff]
        %v1201 = vld [vmem:[#allocation2 + $0x1a0] sm:$0xff]
        %v1202 = vld [vmem:[#allocation2 + $0x1a8] sm:$0xff]
        %v1203 = vld [vmem:[#allocation2 + $0x1b0] sm:$0xff]
        %v1204 = vld [vmem:[#allocation2 + $0x1b8] sm:$0xff]
        %v1205 = vadd.f32 %v1149, %v983
        %v1206 = vadd.f32 %v1150, %v985
        %v1207 = vadd.f32 %v1151, %v989
        %v1208 = vadd.f32 %v1152, %v991
        %v1209 = vadd.f32 %v1153, %v995
        %v1210 = vadd.f32 %v1154, %v997
        %v1211 = vadd.f32 %v1155, %v1001
        %v1212 = vadd.f32 %v1156, %v1003
        %v1213 = vadd.f32 %v1157, %v1007
        %v1214 = vadd.f32 %v1158, %v1009
        %v1215 = vadd.f32 %v1159, %v1013
        %v1216 = vadd.f32 %v1160, %v1015
        %v1217 = vadd.f32 %v1161, %v1019
        %v1218 = vadd.f32 %v1162, %v1021
        %v1219 = vadd.f32 %v1163, %v1025
        %v1220 = vadd.f32 %v1164, %v1027
        %v1221 = vadd.f32 %v1165, %v1031
        %v1222 = vadd.f32 %v1166, %v1033
        %v1223 = vadd.f32 %v1167, %v1037
        %v1224 = vadd.f32 %v1168, %v1039
        %v1225 = vadd.f32 %v1169, %v1043
        %v1226 = vadd.f32 %v1170, %v1045
        %v1227 = vadd.f32 %v1171, %v1049
        %v1228 = vadd.f32 %v1172, %v1051
        %v1229 = vadd.f32 %v1173, %v1055
        %v1230 = vadd.f32 %v1174, %v1057
        %v1231 = vadd.f32 %v1175, %v1061
        %v1232 = vadd.f32 %v1176, %v1063
        %v1233 = vadd.f32 %v1177, %v1067
        %v1234 = vadd.f32 %v1178, %v1069
        %v1235 = vadd.f32 %v1179, %v1073
        %v1236 = vadd.f32 %v1180, %v1075
        %v1237 = vadd.f32 %v1181, %v1079
        %v1238 = vadd.f32 %v1182, %v1081
        %v1239 = vadd.f32 %v1183, %v1085
        %v1240 = vadd.f32 %v1184, %v1087
        %v1241 = vadd.f32 %v1185, %v1091
        %v1242 = vadd.f32 %v1186, %v1093
        %v1243 = vadd.f32 %v1187, %v1097
        %v1244 = vadd.f32 %v1188, %v1099
        %v1245 = vadd.f32 %v1189, %v1103
        %v1246 = vadd.f32 %v1190, %v1105
        %v1247 = vadd.f32 %v1191, %v1109
        %v1248 = vadd.f32 %v1192, %v1111
        %v1249 = vadd.f32 %v1193, %v1115
        %v1250 = vadd.f32 %v1194, %v1117
        %v1251 = vadd.f32 %v1195, %v1121
        %v1252 = vadd.f32 %v1196, %v1123
        %v1253 = vadd.f32 %v1197, %v1127
        %v1254 = vadd.f32 %v1198, %v1129
        %v1255 = vadd.f32 %v1199, %v1133
        %v1256 = vadd.f32 %v1200, %v1135
        %v1257 = vadd.f32 %v1201, %v1139
        %v1258 = vadd.f32 %v1202, %v1141
        %v1259 = vadd.f32 %v1203, %v1145
        %v1260 = vadd.f32 %v1204, %v1147
        %1261 = vst [vmem:[#allocation2] sm:$0xff] %v1205
        %1262 = vst [vmem:[#allocation2 + $0x8] sm:$0xff] %v1206
        %1263 = vst [vmem:[#allocation2 + $0x10] sm:$0xff] %v1207
        %1264 = vst [vmem:[#allocation2 + $0x18] sm:$0xff] %v1208
        %1265 = vst [vmem:[#allocation2 + $0x20] sm:$0xff] %v1209
        %1266 = vst [vmem:[#allocation2 + $0x28] sm:$0xff] %v1210
        %1267 = vst [vmem:[#allocation2 + $0x30] sm:$0xff] %v1211
        %1268 = vst [vmem:[#allocation2 + $0x38] sm:$0xff] %v1212
        %1269 = vst [vmem:[#allocation2 + $0x40] sm:$0xff] %v1213
        %1270 = vst [vmem:[#allocation2 + $0x48] sm:$0xff] %v1214
        %1271 = vst [vmem:[#allocation2 + $0x50] sm:$0xff] %v1215
        %1272 = vst [vmem:[#allocation2 + $0x58] sm:$0xff] %v1216
        %1273 = vst [vmem:[#allocation2 + $0x60] sm:$0xff] %v1217
        %1274 = vst [vmem:[#allocation2 + $0x68] sm:$0xff] %v1218
        %1275 = vst [vmem:[#allocation2 + $0x70] sm:$0xff] %v1219
        %1276 = vst [vmem:[#allocation2 + $0x78] sm:$0xff] %v1220
        %1277 = vst [vmem:[#allocation2 + $0x80] sm:$0xff] %v1221
        %1278 = vst [vmem:[#allocation2 + $0x88] sm:$0xff] %v1222
        %1279 = vst [vmem:[#allocation2 + $0x90] sm:$0xff] %v1223
        %1280 = vst [vmem:[#allocation2 + $0x98] sm:$0xff] %v1224
        %1281 = vst [vmem:[#allocation2 + $0xa0] sm:$0xff] %v1225
        %1282 = vst [vmem:[#allocation2 + $0xa8] sm:$0xff] %v1226
        %1283 = vst [vmem:[#allocation2 + $0xb0] sm:$0xff] %v1227
        %1284 = vst [vmem:[#allocation2 + $0xb8] sm:$0xff] %v1228
        %1285 = vst [vmem:[#allocation2 + $0xc0] sm:$0xff] %v1229
        %1286 = vst [vmem:[#allocation2 + $0xc8] sm:$0xff] %v1230
        %1287 = vst [vmem:[#allocation2 + $0xd0] sm:$0xff] %v1231
        %1288 = vst [vmem:[#allocation2 + $0xd8] sm:$0xff] %v1232
        %1289 = vst [vmem:[#allocation2 + $0xe0] sm:$0xff] %v1233
        %1290 = vst [vmem:[#allocation2 + $0xe8] sm:$0xff] %v1234
        %1291 = vst [vmem:[#allocation2 + $0xf0] sm:$0xff] %v1235
        %1292 = vst [vmem:[#allocation2 + $0xf8] sm:$0xff] %v1236
        %1293 = vst [vmem:[#allocation2 + $0x100] sm:$0xff] %v1237
        %1294 = vst [vmem:[#allocation2 + $0x108] sm:$0xff] %v1238
        %1295 = vst [vmem:[#allocation2 + $0x110] sm:$0xff] %v1239
        %1296 = vst [vmem:[#allocation2 + $0x118] sm:$0xff] %v1240
        %1297 = vst [vmem:[#allocation2 + $0x120] sm:$0xff] %v1241
        %1298 = vst [vmem:[#allocation2 + $0x128] sm:$0xff] %v1242
        %1299 = vst [vmem:[#allocation2 + $0x130] sm:$0xff] %v1243
        %1300 = vst [vmem:[#allocation2 + $0x138] sm:$0xff] %v1244
        %1301 = vst [vmem:[#allocation2 + $0x140] sm:$0xff] %v1245
        %1302 = vst [vmem:[#allocation2 + $0x148] sm:$0xff] %v1246
        %1303 = vst [vmem:[#allocation2 + $0x150] sm:$0xff] %v1247
        %1304 = vst [vmem:[#allocation2 + $0x158] sm:$0xff] %v1248
        %1305 = vst [vmem:[#allocation2 + $0x160] sm:$0xff] %v1249
        %1306 = vst [vmem:[#allocation2 + $0x168] sm:$0xff] %v1250
        %1307 = vst [vmem:[#allocation2 + $0x170] sm:$0xff] %v1251
        %1308 = vst [vmem:[#allocation2 + $0x178] sm:$0xff] %v1252
        %1309 = vst [vmem:[#allocation2 + $0x180] sm:$0xff] %v1253
        %1310 = vst [vmem:[#allocation2 + $0x188] sm:$0xff] %v1254
        %1311 = vst [vmem:[#allocation2 + $0x190] sm:$0xff] %v1255
        %1312 = vst [vmem:[#allocation2 + $0x198] sm:$0xff] %v1256
        %1313 = vst [vmem:[#allocation2 + $0x1a0] sm:$0xff] %v1257
        %1314 = vst [vmem:[#allocation2 + $0x1a8] sm:$0xff] %v1258
        %1315 = vst [vmem:[#allocation2 + $0x1b0] sm:$0xff] %v1259
        %1316 = vst [vmem:[#allocation2 + $0x1b8] sm:$0xff] %v1260
        %v1317 = vld [vmem:[%s384 + $0x10] sm:$0xff]
        %v1318 = vld [vmem:[%s384 + $0x18] sm:$0xff]
        %v1319 = vld [vmem:[%s384 + $0x20] sm:$0xff]
        %v1320 = vld [vmem:[%s384 + $0x28] sm:$0xff]
        %v1321 = vld [vmem:[%s384 + $0x30] sm:$0xff]
        %v1322 = vld [vmem:[%s384 + $0x38] sm:$0xff]
        %v1323 = vld [vmem:[%s384 + $0x40] sm:$0xff]
        %v1324 = vld [vmem:[%s384 + $0x48] sm:$0xff]
        %v1325 = vld [vmem:[%s384 + $0x50] sm:$0xff]
        %v1326 = vld [vmem:[%s384 + $0x58] sm:$0xff]
        %v1327 = vld [vmem:[%s384 + $0x60] sm:$0xff]
        %v1328 = vld [vmem:[%s384 + $0x68] sm:$0xff]
        %v1329 = vld [vmem:[%s384 + $0x70] sm:$0xff]
        %v1330 = vld [vmem:[%s384 + $0x78] sm:$0xff]
        %v1331 = vld [vmem:[%s384 + $0x80] sm:$0xff]
        %v1332 = vld [vmem:[%s384 + $0x88] sm:$0xff]
        %v1333 = vld [vmem:[%s384 + $0x90] sm:$0xff]
        %v1334 = vld [vmem:[%s384 + $0x98] sm:$0xff]
        %v1335 = vld [vmem:[%s384 + $0xa0] sm:$0xff]
        %v1336 = vld [vmem:[%s384 + $0xa8] sm:$0xff]
        %v1337 = vld [vmem:[%s384 + $0xb0] sm:$0xff]
        %v1338 = vld [vmem:[%s384 + $0xb8] sm:$0xff]
        %v1339 = vld [vmem:[%s384 + $0xc0] sm:$0xff]
        %v1340 = vld [vmem:[%s384 + $0xc8] sm:$0xff]
        %v1341 = vld [vmem:[%s384 + $0xd0] sm:$0xff]
        %v1342 = vld [vmem:[%s384 + $0xd8] sm:$0xff]
        %v1343 = vld [vmem:[%s384 + $0xe0] sm:$0xff]
        %v1344 = vld [vmem:[%s384 + $0xe8] sm:$0xff]
        %s1345 = scalar_lea.vmem %s1, 128
        %v1346 = vld [vmem:[%s1345] sm:$0xff]
        %v1347 = vld [vmem:[%s1345 + $0x8] sm:$0xff]
        %v1348 = vld [vmem:[%s1345 + $0x10] sm:$0xff]
        %v1349 = vld [vmem:[%s1345 + $0x18] sm:$0xff]
        %v1350 = vld [vmem:[%s1345 + $0x20] sm:$0xff]
        %v1351 = vld [vmem:[%s1345 + $0x28] sm:$0xff]
        %v1352 = vld [vmem:[%s1345 + $0x30] sm:$0xff]
        %v1353 = vld [vmem:[%s1345 + $0x38] sm:$0xff]
        %v1355 = vsel %vm421, %v1317, 0
        %v1358 = vsel %vm421, %v1318, 0
        %v1361 = vsel %vm421, %v1319, 0
        %v1364 = vsel %vm421, %v1320, 0
        %v1367 = vsel %vm421, %v1321, 0
        %v1370 = vsel %vm421, %v1322, 0
        %v1373 = vsel %vm421, %v1323, 0
        %v1376 = vsel %vm421, %v1324, 0
        %v1379 = vsel %vm421, %v1325, 0
        %v1382 = vsel %vm421, %v1326, 0
        %v1385 = vsel %vm421, %v1327, 0
        %v1388 = vsel %vm421, %v1328, 0
        %v1391 = vsel %vm421, %v1329, 0
        %v1394 = vsel %vm421, %v1330, 0
        %v1397 = vsel %vm421, %v1331, 0
        %v1400 = vsel %vm421, %v1332, 0
        %v1403 = vsel %vm421, %v1333, 0
        %v1406 = vsel %vm421, %v1334, 0
        %v1409 = vsel %vm421, %v1335, 0
        %v1412 = vsel %vm421, %v1336, 0
        %v1415 = vsel %vm421, %v1337, 0
        %v1418 = vsel %vm421, %v1338, 0
        %v1421 = vsel %vm421, %v1339, 0
        %v1424 = vsel %vm421, %v1340, 0
        %v1427 = vsel %vm421, %v1341, 0
        %v1430 = vsel %vm421, %v1342, 0
        %v1433 = vsel %vm421, %v1343, 0
        %v1436 = vsel %vm421, %v1344, 0
        %1438 = vmatprep.subr.mxu0 %v1347
        %1439 = vmatpush1.msra.mxu0 %v1346
        %1440 = vmatprep.subr.mxu0 %v1349
        %1441 = vmatpush1.msra.mxu0 %v1348
        %1442 = vmatprep.subr.mxu0 %v1351
        %1443 = vmatpush1.msra.mxu0 %v1350
        %1444 = vmatprep.subr.mxu0 %v1353
        %1445 = vmatpush1.msra.mxu0 %v1352
        %1446 = vmatprep.subr.mxu0 0.0
        %1447 = vmatpush1.msra.mxu0 0.0
        %1448 = vmatprep.subr.mxu0 0.0
        %1449 = vmatpush1.msra.mxu0 0.0
        %1450 = vmatprep.subr.mxu0 0.0
        %1451 = vmatpush1.msra.mxu0 0.0
        %1452 = vmatprep.subr.mxu0 0.0
        %1453 = vmatpush1.msra.mxu0 0.0
        %1454 = vmatprep.subr.mxu0 0.0
        %1455 = vmatpush1.msra.mxu0 0.0
        %1456 = vmatprep.subr.mxu0 0.0
        %1457 = vmatpush1.msra.mxu0 0.0
        %1458 = vmatprep.subr.mxu0 0.0
        %1459 = vmatpush1.msra.mxu0 0.0
        %1460 = vmatprep.subr.mxu0 0.0
        %1461 = vmatpush1.msra.mxu0 0.0
        %1462 = vmatprep.subr.mxu0 0.0
        %1463 = vmatpush1.msra.mxu0 0.0
        %1464 = vmatprep.subr.mxu0 0.0
        %1465 = vmatpush1.msra.mxu0 0.0
        %1466 = vmatprep.subr.mxu0 0.0
        %1467 = vmatpush1.msra.mxu0 0.0
        %1468 = vmatprep.subr.mxu0 0.0
        %1469 = vmatpush1.msra.mxu0 0.0
        %1470 = vmatprep.subr.mxu0 0.0
        %1471 = vmatpush1.msra.mxu0 0.0
        %1472 = vmatprep.subr.mxu0 0.0
        %1473 = vmatpush1.msra.mxu0 0.0
        %1474 = vmatprep.subr.mxu0 0.0
        %1475 = vmatpush1.msra.mxu0 0.0
        %1476 = vmatprep.subr.mxu0 0.0
        %1477 = vmatpush1.msra.mxu0 0.0
        %1478 = vmatprep.subr.mxu0 0.0
        %1479 = vmatpush1.msra.mxu0 0.0
        %1480 = vmatprep.subr.mxu0 0.0
        %1481 = vmatpush1.msra.mxu0 0.0
        %1482 = vmatprep.subr.mxu0 0.0
        %1483 = vmatpush1.msra.mxu0 0.0
        %1484 = vmatprep.subr.mxu0 0.0
        %1485 = vmatpush1.msra.mxu0 0.0
        %1486 = vmatprep.subr.mxu0 0.0
        %1487 = vmatpush1.msra.mxu0 0.0
        %1488 = vmatprep.subr.mxu0 0.0
        %1489 = vmatpush1.msra.mxu0 0.0
        %1490 = vmatprep.subr.mxu0 0.0
        %1491 = vmatpush1.msra.mxu0 0.0
        %1492 = vmatprep.subr.mxu0 0.0
        %1493 = vmatpush1.msra.mxu0 0.0
        %1494 = vmatprep.subr.mxu0 0.0
        %1495 = vmatpush1.msra.mxu0 0.0
        %1496 = vmatprep.subr.mxu0 0.0
        %1497 = vmatpush1.msra.mxu0 0.0
        %1498 = vmatprep.subr.mxu0 0.0
        %1499 = vmatpush1.msra.mxu0 0.0
        %1500 = vmatprep.subr.mxu0 0.0
        %1501 = vmatpush1.msra.mxu0 0.0
        %1502 = vmatprep.mubr.f32.mxu0 0.0
        %1503 = vmatmul.mubr.f32.gmra.mrb[0].mxu0 %v1355
        %v1504 = vpop.f32.mrb[0].mxu0
        %v1505 = vadd.f32 0.0, %v1504
        %v1506 = vpop.f32.mrb[0].mxu0
        %v1507 = vadd.f32 0.0, %v1506
        %1508 = vmatprep.mubr.f32.mxu0 0.0
        %1509 = vmatmul.mubr.f32.gmra.mrb[0].mxu0 %v1358
        %v1510 = vpop.f32.mrb[0].mxu0
        %v1511 = vadd.f32 0.0, %v1510
        %v1512 = vpop.f32.mrb[0].mxu0
        %v1513 = vadd.f32 0.0, %v1512
        %1514 = vmatprep.mubr.f32.mxu0 0.0
        %1515 = vmatmul.mubr.f32.gmra.mrb[0].mxu0 %v1361
        %v1516 = vpop.f32.mrb[0].mxu0
        %v1517 = vadd.f32 0.0, %v1516
        %v1518 = vpop.f32.mrb[0].mxu0
        %v1519 = vadd.f32 0.0, %v1518
        %1520 = vmatprep.mubr.f32.mxu0 0.0
        %1521 = vmatmul.mubr.f32.gmra.mrb[0].mxu0 %v1364
        %v1522 = vpop.f32.mrb[0].mxu0
        %v1523 = vadd.f32 0.0, %v1522
        %v1524 = vpop.f32.mrb[0].mxu0
        %v1525 = vadd.f32 0.0, %v1524
        %1526 = vmatprep.mubr.f32.mxu0 0.0
        %1527 = vmatmul.mubr.f32.gmra.mrb[0].mxu0 %v1367
        %v1528 = vpop.f32.mrb[0].mxu0
        %v1529 = vadd.f32 0.0, %v1528
        %v1530 = vpop.f32.mrb[0].mxu0
        %v1531 = vadd.f32 0.0, %v1530
        %1532 = vmatprep.mubr.f32.mxu0 0.0
        %1533 = vmatmul.mubr.f32.gmra.mrb[0].mxu0 %v1370
        %v1534 = vpop.f32.mrb[0].mxu0
        %v1535 = vadd.f32 0.0, %v1534
        %v1536 = vpop.f32.mrb[0].mxu0
        %v1537 = vadd.f32 0.0, %v1536
        %1538 = vmatprep.mubr.f32.mxu0 0.0
        %1539 = vmatmul.mubr.f32.gmra.mrb[0].mxu0 %v1373
        %v1540 = vpop.f32.mrb[0].mxu0
        %v1541 = vadd.f32 0.0, %v1540
        %v1542 = vpop.f32.mrb[0].mxu0
        %v1543 = vadd.f32 0.0, %v1542
        %1544 = vmatprep.mubr.f32.mxu0 0.0
        %1545 = vmatmul.mubr.f32.gmra.mrb[0].mxu0 %v1376
        %v1546 = vpop.f32.mrb[0].mxu0
        %v1547 = vadd.f32 0.0, %v1546
        %v1548 = vpop.f32.mrb[0].mxu0
        %v1549 = vadd.f32 0.0, %v1548
        %1550 = vmatprep.mubr.f32.mxu0 0.0
        %1551 = vmatmul.mubr.f32.gmra.mrb[0].mxu0 %v1379
        %v1552 = vpop.f32.mrb[0].mxu0
        %v1553 = vadd.f32 0.0, %v1552
        %v1554 = vpop.f32.mrb[0].mxu0
        %v1555 = vadd.f32 0.0, %v1554
        %1556 = vmatprep.mubr.f32.mxu0 0.0
        %1557 = vmatmul.mubr.f32.gmra.mrb[0].mxu0 %v1382
        %v1558 = vpop.f32.mrb[0].mxu0
        %v1559 = vadd.f32 0.0, %v1558
        %v1560 = vpop.f32.mrb[0].mxu0
        %v1561 = vadd.f32 0.0, %v1560
        %1562 = vmatprep.mubr.f32.mxu0 0.0
        %1563 = vmatmul.mubr.f32.gmra.mrb[0].mxu0 %v1385
        %v1564 = vpop.f32.mrb[0].mxu0
        %v1565 = vadd.f32 0.0, %v1564
        %v1566 = vpop.f32.mrb[0].mxu0
        %v1567 = vadd.f32 0.0, %v1566
        %1568 = vmatprep.mubr.f32.mxu0 0.0
        %1569 = vmatmul.mubr.f32.gmra.mrb[0].mxu0 %v1388
        %v1570 = vpop.f32.mrb[0].mxu0
        %v1571 = vadd.f32 0.0, %v1570
        %v1572 = vpop.f32.mrb[0].mxu0
        %v1573 = vadd.f32 0.0, %v1572
        %1574 = vmatprep.mubr.f32.mxu0 0.0
        %1575 = vmatmul.mubr.f32.gmra.mrb[0].mxu0 %v1391
        %v1576 = vpop.f32.mrb[0].mxu0
        %v1577 = vadd.f32 0.0, %v1576
        %v1578 = vpop.f32.mrb[0].mxu0
        %v1579 = vadd.f32 0.0, %v1578
        %1580 = vmatprep.mubr.f32.mxu0 0.0
        %1581 = vmatmul.mubr.f32.gmra.mrb[0].mxu0 %v1394
        %v1582 = vpop.f32.mrb[0].mxu0
        %v1583 = vadd.f32 0.0, %v1582
        %v1584 = vpop.f32.mrb[0].mxu0
        %v1585 = vadd.f32 0.0, %v1584
        %1586 = vmatprep.mubr.f32.mxu0 0.0
        %1587 = vmatmul.mubr.f32.gmra.mrb[0].mxu0 %v1397
        %v1588 = vpop.f32.mrb[0].mxu0
        %v1589 = vadd.f32 0.0, %v1588
        %v1590 = vpop.f32.mrb[0].mxu0
        %v1591 = vadd.f32 0.0, %v1590
        %1592 = vmatprep.mubr.f32.mxu0 0.0
        %1593 = vmatmul.mubr.f32.gmra.mrb[0].mxu0 %v1400
        %v1594 = vpop.f32.mrb[0].mxu0
        %v1595 = vadd.f32 0.0, %v1594
        %v1596 = vpop.f32.mrb[0].mxu0
        %v1597 = vadd.f32 0.0, %v1596
        %1598 = vmatprep.mubr.f32.mxu0 0.0
        %1599 = vmatmul.mubr.f32.gmra.mrb[0].mxu0 %v1403
        %v1600 = vpop.f32.mrb[0].mxu0
        %v1601 = vadd.f32 0.0, %v1600
        %v1602 = vpop.f32.mrb[0].mxu0
        %v1603 = vadd.f32 0.0, %v1602
        %1604 = vmatprep.mubr.f32.mxu0 0.0
        %1605 = vmatmul.mubr.f32.gmra.mrb[0].mxu0 %v1406
        %v1606 = vpop.f32.mrb[0].mxu0
        %v1607 = vadd.f32 0.0, %v1606
        %v1608 = vpop.f32.mrb[0].mxu0
        %v1609 = vadd.f32 0.0, %v1608
        %1610 = vmatprep.mubr.f32.mxu0 0.0
        %1611 = vmatmul.mubr.f32.gmra.mrb[0].mxu0 %v1409
        %v1612 = vpop.f32.mrb[0].mxu0
        %v1613 = vadd.f32 0.0, %v1612
        %v1614 = vpop.f32.mrb[0].mxu0
        %v1615 = vadd.f32 0.0, %v1614
        %1616 = vmatprep.mubr.f32.mxu0 0.0
        %1617 = vmatmul.mubr.f32.gmra.mrb[0].mxu0 %v1412
        %v1618 = vpop.f32.mrb[0].mxu0
        %v1619 = vadd.f32 0.0, %v1618
        %v1620 = vpop.f32.mrb[0].mxu0
        %v1621 = vadd.f32 0.0, %v1620
        %1622 = vmatprep.mubr.f32.mxu0 0.0
        %1623 = vmatmul.mubr.f32.gmra.mrb[0].mxu0 %v1415
        %v1624 = vpop.f32.mrb[0].mxu0
        %v1625 = vadd.f32 0.0, %v1624
        %v1626 = vpop.f32.mrb[0].mxu0
        %v1627 = vadd.f32 0.0, %v1626
        %1628 = vmatprep.mubr.f32.mxu0 0.0
        %1629 = vmatmul.mubr.f32.gmra.mrb[0].mxu0 %v1418
        %v1630 = vpop.f32.mrb[0].mxu0
        %v1631 = vadd.f32 0.0, %v1630
        %v1632 = vpop.f32.mrb[0].mxu0
        %v1633 = vadd.f32 0.0, %v1632
        %1634 = vmatprep.mubr.f32.mxu0 0.0
        %1635 = vmatmul.mubr.f32.gmra.mrb[0].mxu0 %v1421
        %v1636 = vpop.f32.mrb[0].mxu0
        %v1637 = vadd.f32 0.0, %v1636
        %v1638 = vpop.f32.mrb[0].mxu0
        %v1639 = vadd.f32 0.0, %v1638
        %1640 = vmatprep.mubr.f32.mxu0 0.0
        %1641 = vmatmul.mubr.f32.gmra.mrb[0].mxu0 %v1424
        %v1642 = vpop.f32.mrb[0].mxu0
        %v1643 = vadd.f32 0.0, %v1642
        %v1644 = vpop.f32.mrb[0].mxu0
        %v1645 = vadd.f32 0.0, %v1644
        %1646 = vmatprep.mubr.f32.mxu0 0.0
        %1647 = vmatmul.mubr.f32.gmra.mrb[0].mxu0 %v1427
        %v1648 = vpop.f32.mrb[0].mxu0
        %v1649 = vadd.f32 0.0, %v1648
        %v1650 = vpop.f32.mrb[0].mxu0
        %v1651 = vadd.f32 0.0, %v1650
        %1652 = vmatprep.mubr.f32.mxu0 0.0
        %1653 = vmatmul.mubr.f32.gmra.mrb[0].mxu0 %v1430
        %v1654 = vpop.f32.mrb[0].mxu0
        %v1655 = vadd.f32 0.0, %v1654
        %v1656 = vpop.f32.mrb[0].mxu0
        %v1657 = vadd.f32 0.0, %v1656
        %1658 = vmatprep.mubr.f32.mxu0 0.0
        %1659 = vmatmul.mubr.f32.gmra.mrb[0].mxu0 %v1433
        %v1660 = vpop.f32.mrb[0].mxu0
        %v1661 = vadd.f32 0.0, %v1660
        %v1662 = vpop.f32.mrb[0].mxu0
        %v1663 = vadd.f32 0.0, %v1662
        %1664 = vmatprep.mubr.f32.mxu0 0.0
        %1665 = vmatmul.mubr.f32.gmra.mrb[0].mxu0 %v1436
        %v1666 = vpop.f32.mrb[0].mxu0
        %v1667 = vadd.f32 0.0, %v1666
        %v1668 = vpop.f32.mrb[0].mxu0
        %v1669 = vadd.f32 0.0, %v1668
        %1670 = vdwg.mxu0
        %v1671 = vld [vmem:[#allocation2] sm:$0xff]
        %v1672 = vld [vmem:[#allocation2 + $0x8] sm:$0xff]
        %v1673 = vld [vmem:[#allocation2 + $0x10] sm:$0xff]
        %v1674 = vld [vmem:[#allocation2 + $0x18] sm:$0xff]
        %v1675 = vld [vmem:[#allocation2 + $0x20] sm:$0xff]
        %v1676 = vld [vmem:[#allocation2 + $0x28] sm:$0xff]
        %v1677 = vld [vmem:[#allocation2 + $0x30] sm:$0xff]
        %v1678 = vld [vmem:[#allocation2 + $0x38] sm:$0xff]
        %v1679 = vld [vmem:[#allocation2 + $0x40] sm:$0xff]
        %v1680 = vld [vmem:[#allocation2 + $0x48] sm:$0xff]
        %v1681 = vld [vmem:[#allocation2 + $0x50] sm:$0xff]
        %v1682 = vld [vmem:[#allocation2 + $0x58] sm:$0xff]
        %v1683 = vld [vmem:[#allocation2 + $0x60] sm:$0xff]
        %v1684 = vld [vmem:[#allocation2 + $0x68] sm:$0xff]
        %v1685 = vld [vmem:[#allocation2 + $0x70] sm:$0xff]
        %v1686 = vld [vmem:[#allocation2 + $0x78] sm:$0xff]
        %v1687 = vld [vmem:[#allocation2 + $0x80] sm:$0xff]
        %v1688 = vld [vmem:[#allocation2 + $0x88] sm:$0xff]
        %v1689 = vld [vmem:[#allocation2 + $0x90] sm:$0xff]
        %v1690 = vld [vmem:[#allocation2 + $0x98] sm:$0xff]
        %v1691 = vld [vmem:[#allocation2 + $0xa0] sm:$0xff]
        %v1692 = vld [vmem:[#allocation2 + $0xa8] sm:$0xff]
        %v1693 = vld [vmem:[#allocation2 + $0xb0] sm:$0xff]
        %v1694 = vld [vmem:[#allocation2 + $0xb8] sm:$0xff]
        %v1695 = vld [vmem:[#allocation2 + $0xc0] sm:$0xff]
        %v1696 = vld [vmem:[#allocation2 + $0xc8] sm:$0xff]
        %v1697 = vld [vmem:[#allocation2 + $0xd0] sm:$0xff]
        %v1698 = vld [vmem:[#allocation2 + $0xd8] sm:$0xff]
        %v1699 = vld [vmem:[#allocation2 + $0xe0] sm:$0xff]
        %v1700 = vld [vmem:[#allocation2 + $0xe8] sm:$0xff]
        %v1701 = vld [vmem:[#allocation2 + $0xf0] sm:$0xff]
        %v1702 = vld [vmem:[#allocation2 + $0xf8] sm:$0xff]
        %v1703 = vld [vmem:[#allocation2 + $0x100] sm:$0xff]
        %v1704 = vld [vmem:[#allocation2 + $0x108] sm:$0xff]
        %v1705 = vld [vmem:[#allocation2 + $0x110] sm:$0xff]
        %v1706 = vld [vmem:[#allocation2 + $0x118] sm:$0xff]
        %v1707 = vld [vmem:[#allocation2 + $0x120] sm:$0xff]
        %v1708 = vld [vmem:[#allocation2 + $0x128] sm:$0xff]
        %v1709 = vld [vmem:[#allocation2 + $0x130] sm:$0xff]
        %v1710 = vld [vmem:[#allocation2 + $0x138] sm:$0xff]
        %v1711 = vld [vmem:[#allocation2 + $0x140] sm:$0xff]
        %v1712 = vld [vmem:[#allocation2 + $0x148] sm:$0xff]
        %v1713 = vld [vmem:[#allocation2 + $0x150] sm:$0xff]
        %v1714 = vld [vmem:[#allocation2 + $0x158] sm:$0xff]
        %v1715 = vld [vmem:[#allocation2 + $0x160] sm:$0xff]
        %v1716 = vld [vmem:[#allocation2 + $0x168] sm:$0xff]
        %v1717 = vld [vmem:[#allocation2 + $0x170] sm:$0xff]
        %v1718 = vld [vmem:[#allocation2 + $0x178] sm:$0xff]
        %v1719 = vld [vmem:[#allocation2 + $0x180] sm:$0xff]
        %v1720 = vld [vmem:[#allocation2 + $0x188] sm:$0xff]
        %v1721 = vld [vmem:[#allocation2 + $0x190] sm:$0xff]
        %v1722 = vld [vmem:[#allocation2 + $0x198] sm:$0xff]
        %v1723 = vld [vmem:[#allocation2 + $0x1a0] sm:$0xff]
        %v1724 = vld [vmem:[#allocation2 + $0x1a8] sm:$0xff]
        %v1725 = vld [vmem:[#allocation2 + $0x1b0] sm:$0xff]
        %v1726 = vld [vmem:[#allocation2 + $0x1b8] sm:$0xff]
        %v1727 = vadd.f32 %v1671, %v1505
        %v1728 = vadd.f32 %v1672, %v1507
        %v1729 = vadd.f32 %v1673, %v1511
        %v1730 = vadd.f32 %v1674, %v1513
        %v1731 = vadd.f32 %v1675, %v1517
        %v1732 = vadd.f32 %v1676, %v1519
        %v1733 = vadd.f32 %v1677, %v1523
        %v1734 = vadd.f32 %v1678, %v1525
        %v1735 = vadd.f32 %v1679, %v1529
        %v1736 = vadd.f32 %v1680, %v1531
        %v1737 = vadd.f32 %v1681, %v1535
        %v1738 = vadd.f32 %v1682, %v1537
        %v1739 = vadd.f32 %v1683, %v1541
        %v1740 = vadd.f32 %v1684, %v1543
        %v1741 = vadd.f32 %v1685, %v1547
        %v1742 = vadd.f32 %v1686, %v1549
        %v1743 = vadd.f32 %v1687, %v1553
        %v1744 = vadd.f32 %v1688, %v1555
        %v1745 = vadd.f32 %v1689, %v1559
        %v1746 = vadd.f32 %v1690, %v1561
        %v1747 = vadd.f32 %v1691, %v1565
        %v1748 = vadd.f32 %v1692, %v1567
        %v1749 = vadd.f32 %v1693, %v1571
        %v1750 = vadd.f32 %v1694, %v1573
        %v1751 = vadd.f32 %v1695, %v1577
        %v1752 = vadd.f32 %v1696, %v1579
        %v1753 = vadd.f32 %v1697, %v1583
        %v1754 = vadd.f32 %v1698, %v1585
        %v1755 = vadd.f32 %v1699, %v1589
        %v1756 = vadd.f32 %v1700, %v1591
        %v1757 = vadd.f32 %v1701, %v1595
        %v1758 = vadd.f32 %v1702, %v1597
        %v1759 = vadd.f32 %v1703, %v1601
        %v1760 = vadd.f32 %v1704, %v1603
        %v1761 = vadd.f32 %v1705, %v1607
        %v1762 = vadd.f32 %v1706, %v1609
        %v1763 = vadd.f32 %v1707, %v1613
        %v1764 = vadd.f32 %v1708, %v1615
        %v1765 = vadd.f32 %v1709, %v1619
        %v1766 = vadd.f32 %v1710, %v1621
        %v1767 = vadd.f32 %v1711, %v1625
        %v1768 = vadd.f32 %v1712, %v1627
        %v1769 = vadd.f32 %v1713, %v1631
        %v1770 = vadd.f32 %v1714, %v1633
        %v1771 = vadd.f32 %v1715, %v1637
        %v1772 = vadd.f32 %v1716, %v1639
        %v1773 = vadd.f32 %v1717, %v1643
        %v1774 = vadd.f32 %v1718, %v1645
        %v1775 = vadd.f32 %v1719, %v1649
        %v1776 = vadd.f32 %v1720, %v1651
        %v1777 = vadd.f32 %v1721, %v1655
        %v1778 = vadd.f32 %v1722, %v1657
        %v1779 = vadd.f32 %v1723, %v1661
        %v1780 = vadd.f32 %v1724, %v1663
        %v1781 = vadd.f32 %v1725, %v1667
        %v1782 = vadd.f32 %v1726, %v1669
        %1783 = vst [vmem:[#allocation2] sm:$0xff] %v1727
        %1784 = vst [vmem:[#allocation2 + $0x8] sm:$0xff] %v1728
        %1785 = vst [vmem:[#allocation2 + $0x10] sm:$0xff] %v1729
        %1786 = vst [vmem:[#allocation2 + $0x18] sm:$0xff] %v1730
        %1787 = vst [vmem:[#allocation2 + $0x20] sm:$0xff] %v1731
        %1788 = vst [vmem:[#allocation2 + $0x28] sm:$0xff] %v1732
        %1789 = vst [vmem:[#allocation2 + $0x30] sm:$0xff] %v1733
        %1790 = vst [vmem:[#allocation2 + $0x38] sm:$0xff] %v1734
        %1791 = vst [vmem:[#allocation2 + $0x40] sm:$0xff] %v1735
        %1792 = vst [vmem:[#allocation2 + $0x48] sm:$0xff] %v1736
        %1793 = vst [vmem:[#allocation2 + $0x50] sm:$0xff] %v1737
        %1794 = vst [vmem:[#allocation2 + $0x58] sm:$0xff] %v1738
        %1795 = vst [vmem:[#allocation2 + $0x60] sm:$0xff] %v1739
        %1796 = vst [vmem:[#allocation2 + $0x68] sm:$0xff] %v1740
        %1797 = vst [vmem:[#allocation2 + $0x70] sm:$0xff] %v1741
        %1798 = vst [vmem:[#allocation2 + $0x78] sm:$0xff] %v1742
        %1799 = vst [vmem:[#allocation2 + $0x80] sm:$0xff] %v1743
        %1800 = vst [vmem:[#allocation2 + $0x88] sm:$0xff] %v1744
        %1801 = vst [vmem:[#allocation2 + $0x90] sm:$0xff] %v1745
        %1802 = vst [vmem:[#allocation2 + $0x98] sm:$0xff] %v1746
        %1803 = vst [vmem:[#allocation2 + $0xa0] sm:$0xff] %v1747
        %1804 = vst [vmem:[#allocation2 + $0xa8] sm:$0xff] %v1748
        %1805 = vst [vmem:[#allocation2 + $0xb0] sm:$0xff] %v1749
        %1806 = vst [vmem:[#allocation2 + $0xb8] sm:$0xff] %v1750
        %1807 = vst [vmem:[#allocation2 + $0xc0] sm:$0xff] %v1751
        %1808 = vst [vmem:[#allocation2 + $0xc8] sm:$0xff] %v1752
        %1809 = vst [vmem:[#allocation2 + $0xd0] sm:$0xff] %v1753
        %1810 = vst [vmem:[#allocation2 + $0xd8] sm:$0xff] %v1754
        %1811 = vst [vmem:[#allocation2 + $0xe0] sm:$0xff] %v1755
        %1812 = vst [vmem:[#allocation2 + $0xe8] sm:$0xff] %v1756
        %1813 = vst [vmem:[#allocation2 + $0xf0] sm:$0xff] %v1757
        %1814 = vst [vmem:[#allocation2 + $0xf8] sm:$0xff] %v1758
        %1815 = vst [vmem:[#allocation2 + $0x100] sm:$0xff] %v1759
        %1816 = vst [vmem:[#allocation2 + $0x108] sm:$0xff] %v1760
        %1817 = vst [vmem:[#allocation2 + $0x110] sm:$0xff] %v1761
        %1818 = vst [vmem:[#allocation2 + $0x118] sm:$0xff] %v1762
        %1819 = vst [vmem:[#allocation2 + $0x120] sm:$0xff] %v1763
        %1820 = vst [vmem:[#allocation2 + $0x128] sm:$0xff] %v1764
        %1821 = vst [vmem:[#allocation2 + $0x130] sm:$0xff] %v1765
        %1822 = vst [vmem:[#allocation2 + $0x138] sm:$0xff] %v1766
        %1823 = vst [vmem:[#allocation2 + $0x140] sm:$0xff] %v1767
        %1824 = vst [vmem:[#allocation2 + $0x148] sm:$0xff] %v1768
        %1825 = vst [vmem:[#allocation2 + $0x150] sm:$0xff] %v1769
        %1826 = vst [vmem:[#allocation2 + $0x158] sm:$0xff] %v1770
        %1827 = vst [vmem:[#allocation2 + $0x160] sm:$0xff] %v1771
        %1828 = vst [vmem:[#allocation2 + $0x168] sm:$0xff] %v1772
        %1829 = vst [vmem:[#allocation2 + $0x170] sm:$0xff] %v1773
        %1830 = vst [vmem:[#allocation2 + $0x178] sm:$0xff] %v1774
        %1831 = vst [vmem:[#allocation2 + $0x180] sm:$0xff] %v1775
        %1832 = vst [vmem:[#allocation2 + $0x188] sm:$0xff] %v1776
        %1833 = vst [vmem:[#allocation2 + $0x190] sm:$0xff] %v1777
        %1834 = vst [vmem:[#allocation2 + $0x198] sm:$0xff] %v1778
        %1835 = vst [vmem:[#allocation2 + $0x1a0] sm:$0xff] %v1779
        %1836 = vst [vmem:[#allocation2 + $0x1a8] sm:$0xff] %v1780
        %1837 = vst [vmem:[#allocation2 + $0x1b0] sm:$0xff] %v1781
        %1838 = vst [vmem:[#allocation2 + $0x1b8] sm:$0xff] %v1782
        %v1839 = vld [vmem:[%s384 + $0x18] sm:$0xff]
        %v1840 = vld [vmem:[%s384 + $0x20] sm:$0xff]
        %v1841 = vld [vmem:[%s384 + $0x28] sm:$0xff]
        %v1842 = vld [vmem:[%s384 + $0x30] sm:$0xff]
        %v1843 = vld [vmem:[%s384 + $0x38] sm:$0xff]
        %v1844 = vld [vmem:[%s384 + $0x40] sm:$0xff]
        %v1845 = vld [vmem:[%s384 + $0x48] sm:$0xff]
        %v1846 = vld [vmem:[%s384 + $0x50] sm:$0xff]
        %v1847 = vld [vmem:[%s384 + $0x58] sm:$0xff]
        %v1848 = vld [vmem:[%s384 + $0x60] sm:$0xff]
        %v1849 = vld [vmem:[%s384 + $0x68] sm:$0xff]
        %v1850 = vld [vmem:[%s384 + $0x70] sm:$0xff]
        %v1851 = vld [vmem:[%s384 + $0x78] sm:$0xff]
        %v1852 = vld [vmem:[%s384 + $0x80] sm:$0xff]
        %v1853 = vld [vmem:[%s384 + $0x88] sm:$0xff]
        %v1854 = vld [vmem:[%s384 + $0x90] sm:$0xff]
        %v1855 = vld [vmem:[%s384 + $0x98] sm:$0xff]
        %v1856 = vld [vmem:[%s384 + $0xa0] sm:$0xff]
        %v1857 = vld [vmem:[%s384 + $0xa8] sm:$0xff]
        %v1858 = vld [vmem:[%s384 + $0xb0] sm:$0xff]
        %v1859 = vld [vmem:[%s384 + $0xb8] sm:$0xff]
        %v1860 = vld [vmem:[%s384 + $0xc0] sm:$0xff]
        %v1861 = vld [vmem:[%s384 + $0xc8] sm:$0xff]
        %v1862 = vld [vmem:[%s384 + $0xd0] sm:$0xff]
        %v1863 = vld [vmem:[%s384 + $0xd8] sm:$0xff]
        %v1864 = vld [vmem:[%s384 + $0xe0] sm:$0xff]
        %v1865 = vld [vmem:[%s384 + $0xe8] sm:$0xff]
        %v1866 = vld [vmem:[%s384 + $0xf0] sm:$0xff]
        %s1867 = scalar_lea.vmem %s1, 192
        %v1868 = vld [vmem:[%s1867] sm:$0xff]
        %v1869 = vld [vmem:[%s1867 + $0x8] sm:$0xff]
        %v1870 = vld [vmem:[%s1867 + $0x10] sm:$0xff]
        %v1871 = vld [vmem:[%s1867 + $0x18] sm:$0xff]
        %v1872 = vld [vmem:[%s1867 + $0x20] sm:$0xff]
        %v1873 = vld [vmem:[%s1867 + $0x28] sm:$0xff]
        %v1874 = vld [vmem:[%s1867 + $0x30] sm:$0xff]
        %v1875 = vld [vmem:[%s1867 + $0x38] sm:$0xff]
        %v1877 = vsel %vm421, %v1839, 0
        %v1880 = vsel %vm421, %v1840, 0
        %v1883 = vsel %vm421, %v1841, 0
        %v1886 = vsel %vm421, %v1842, 0
        %v1889 = vsel %vm421, %v1843, 0
        %v1892 = vsel %vm421, %v1844, 0
        %v1895 = vsel %vm421, %v1845, 0
        %v1898 = vsel %vm421, %v1846, 0
        %v1901 = vsel %vm421, %v1847, 0
        %v1904 = vsel %vm421, %v1848, 0
        %v1907 = vsel %vm421, %v1849, 0
        %v1910 = vsel %vm421, %v1850, 0
        %v1913 = vsel %vm421, %v1851, 0
        %v1916 = vsel %vm421, %v1852, 0
        %v1919 = vsel %vm421, %v1853, 0
        %v1922 = vsel %vm421, %v1854, 0
        %v1925 = vsel %vm421, %v1855, 0
        %v1928 = vsel %vm421, %v1856, 0
        %v1931 = vsel %vm421, %v1857, 0
        %v1934 = vsel %vm421, %v1858, 0
        %v1937 = vsel %vm421, %v1859, 0
        %v1940 = vsel %vm421, %v1860, 0
        %v1943 = vsel %vm421, %v1861, 0
        %v1946 = vsel %vm421, %v1862, 0
        %v1949 = vsel %vm421, %v1863, 0
        %v1952 = vsel %vm421, %v1864, 0
        %v1955 = vsel %vm421, %v1865, 0
        %v1958 = vsel %vm421, %v1866, 0
        %1960 = vmatprep.subr.mxu0 %v1869
        %1961 = vmatpush1.msra.mxu0 %v1868
        %1962 = vmatprep.subr.mxu0 %v1871
        %1963 = vmatpush1.msra.mxu0 %v1870
        %1964 = vmatprep.subr.mxu0 %v1873
        %1965 = vmatpush1.msra.mxu0 %v1872
        %1966 = vmatprep.subr.mxu0 %v1875
        %1967 = vmatpush1.msra.mxu0 %v1874
        %1968 = vmatprep.subr.mxu0 0.0
        %1969 = vmatpush1.msra.mxu0 0.0
        %1970 = vmatprep.subr.mxu0 0.0
        %1971 = vmatpush1.msra.mxu0 0.0
        %1972 = vmatprep.subr.mxu0 0.0
        %1973 = vmatpush1.msra.mxu0 0.0
        %1974 = vmatprep.subr.mxu0 0.0
        %1975 = vmatpush1.msra.mxu0 0.0
        %1976 = vmatprep.subr.mxu0 0.0
        %1977 = vmatpush1.msra.mxu0 0.0
        %1978 = vmatprep.subr.mxu0 0.0
        %1979 = vmatpush1.msra.mxu0 0.0
        %1980 = vmatprep.subr.mxu0 0.0
        %1981 = vmatpush1.msra.mxu0 0.0
        %1982 = vmatprep.subr.mxu0 0.0
        %1983 = vmatpush1.msra.mxu0 0.0
        %1984 = vmatprep.subr.mxu0 0.0
        %1985 = vmatpush1.msra.mxu0 0.0
        %1986 = vmatprep.subr.mxu0 0.0
        %1987 = vmatpush1.msra.mxu0 0.0
        %1988 = vmatprep.subr.mxu0 0.0
        %1989 = vmatpush1.msra.mxu0 0.0
        %1990 = vmatprep.subr.mxu0 0.0
        %1991 = vmatpush1.msra.mxu0 0.0
        %1992 = vmatprep.subr.mxu0 0.0
        %1993 = vmatpush1.msra.mxu0 0.0
        %1994 = vmatprep.subr.mxu0 0.0
        %1995 = vmatpush1.msra.mxu0 0.0
        %1996 = vmatprep.subr.mxu0 0.0
        %1997 = vmatpush1.msra.mxu0 0.0
        %1998 = vmatprep.subr.mxu0 0.0
        %1999 = vmatpush1.msra.mxu0 0.0
        %2000 = vmatprep.subr.mxu0 0.0
        %2001 = vmatpush1.msra.mxu0 0.0
        %2002 = vmatprep.subr.mxu0 0.0
        %2003 = vmatpush1.msra.mxu0 0.0
        %2004 = vmatprep.subr.mxu0 0.0
        %2005 = vmatpush1.msra.mxu0 0.0
        %2006 = vmatprep.subr.mxu0 0.0
        %2007 = vmatpush1.msra.mxu0 0.0
        %2008 = vmatprep.subr.mxu0 0.0
        %2009 = vmatpush1.msra.mxu0 0.0
        %2010 = vmatprep.subr.mxu0 0.0
        %2011 = vmatpush1.msra.mxu0 0.0
        %2012 = vmatprep.subr.mxu0 0.0
        %2013 = vmatpush1.msra.mxu0 0.0
        %2014 = vmatprep.subr.mxu0 0.0
        %2015 = vmatpush1.msra.mxu0 0.0
        %2016 = vmatprep.subr.mxu0 0.0
        %2017 = vmatpush1.msra.mxu0 0.0
        %2018 = vmatprep.subr.mxu0 0.0
        %2019 = vmatpush1.msra.mxu0 0.0
        %2020 = vmatprep.subr.mxu0 0.0
        %2021 = vmatpush1.msra.mxu0 0.0
        %2022 = vmatprep.subr.mxu0 0.0
        %2023 = vmatpush1.msra.mxu0 0.0
        %2024 = vmatprep.mubr.f32.mxu0 0.0
        %2025 = vmatmul.mubr.f32.gmra.mrb[0].mxu0 %v1877
        %v2026 = vpop.f32.mrb[0].mxu0
        %v2027 = vadd.f32 0.0, %v2026
        %v2028 = vpop.f32.mrb[0].mxu0
        %v2029 = vadd.f32 0.0, %v2028
        %2030 = vmatprep.mubr.f32.mxu0 0.0
        %2031 = vmatmul.mubr.f32.gmra.mrb[0].mxu0 %v1880
        %v2032 = vpop.f32.mrb[0].mxu0
        %v2033 = vadd.f32 0.0, %v2032
        %v2034 = vpop.f32.mrb[0].mxu0
        %v2035 = vadd.f32 0.0, %v2034
        %2036 = vmatprep.mubr.f32.mxu0 0.0
        %2037 = vmatmul.mubr.f32.gmra.mrb[0].mxu0 %v1883
        %v2038 = vpop.f32.mrb[0].mxu0
        %v2039 = vadd.f32 0.0, %v2038
        %v2040 = vpop.f32.mrb[0].mxu0
        %v2041 = vadd.f32 0.0, %v2040
        %2042 = vmatprep.mubr.f32.mxu0 0.0
        %2043 = vmatmul.mubr.f32.gmra.mrb[0].mxu0 %v1886
        %v2044 = vpop.f32.mrb[0].mxu0
        %v2045 = vadd.f32 0.0, %v2044
        %v2046 = vpop.f32.mrb[0].mxu0
        %v2047 = vadd.f32 0.0, %v2046
        %2048 = vmatprep.mubr.f32.mxu0 0.0
        %2049 = vmatmul.mubr.f32.gmra.mrb[0].mxu0 %v1889
        %v2050 = vpop.f32.mrb[0].mxu0
        %v2051 = vadd.f32 0.0, %v2050
        %v2052 = vpop.f32.mrb[0].mxu0
        %v2053 = vadd.f32 0.0, %v2052
        %2054 = vmatprep.mubr.f32.mxu0 0.0
        %2055 = vmatmul.mubr.f32.gmra.mrb[0].mxu0 %v1892
        %v2056 = vpop.f32.mrb[0].mxu0
        %v2057 = vadd.f32 0.0, %v2056
        %v2058 = vpop.f32.mrb[0].mxu0
        %v2059 = vadd.f32 0.0, %v2058
        %2060 = vmatprep.mubr.f32.mxu0 0.0
        %2061 = vmatmul.mubr.f32.gmra.mrb[0].mxu0 %v1895
        %v2062 = vpop.f32.mrb[0].mxu0
        %v2063 = vadd.f32 0.0, %v2062
        %v2064 = vpop.f32.mrb[0].mxu0
        %v2065 = vadd.f32 0.0, %v2064
        %2066 = vmatprep.mubr.f32.mxu0 0.0
        %2067 = vmatmul.mubr.f32.gmra.mrb[0].mxu0 %v1898
        %v2068 = vpop.f32.mrb[0].mxu0
        %v2069 = vadd.f32 0.0, %v2068
        %v2070 = vpop.f32.mrb[0].mxu0
        %v2071 = vadd.f32 0.0, %v2070
        %2072 = vmatprep.mubr.f32.mxu0 0.0
        %2073 = vmatmul.mubr.f32.gmra.mrb[0].mxu0 %v1901
        %v2074 = vpop.f32.mrb[0].mxu0
        %v2075 = vadd.f32 0.0, %v2074
        %v2076 = vpop.f32.mrb[0].mxu0
        %v2077 = vadd.f32 0.0, %v2076
        %2078 = vmatprep.mubr.f32.mxu0 0.0
        %2079 = vmatmul.mubr.f32.gmra.mrb[0].mxu0 %v1904
        %v2080 = vpop.f32.mrb[0].mxu0
        %v2081 = vadd.f32 0.0, %v2080
        %v2082 = vpop.f32.mrb[0].mxu0
        %v2083 = vadd.f32 0.0, %v2082
        %2084 = vmatprep.mubr.f32.mxu0 0.0
        %2085 = vmatmul.mubr.f32.gmra.mrb[0].mxu0 %v1907
        %v2086 = vpop.f32.mrb[0].mxu0
        %v2087 = vadd.f32 0.0, %v2086
        %v2088 = vpop.f32.mrb[0].mxu0
        %v2089 = vadd.f32 0.0, %v2088
        %2090 = vmatprep.mubr.f32.mxu0 0.0
        %2091 = vmatmul.mubr.f32.gmra.mrb[0].mxu0 %v1910
        %v2092 = vpop.f32.mrb[0].mxu0
        %v2093 = vadd.f32 0.0, %v2092
        %v2094 = vpop.f32.mrb[0].mxu0
        %v2095 = vadd.f32 0.0, %v2094
        %2096 = vmatprep.mubr.f32.mxu0 0.0
        %2097 = vmatmul.mubr.f32.gmra.mrb[0].mxu0 %v1913
        %v2098 = vpop.f32.mrb[0].mxu0
        %v2099 = vadd.f32 0.0, %v2098
        %v2100 = vpop.f32.mrb[0].mxu0
        %v2101 = vadd.f32 0.0, %v2100
        %2102 = vmatprep.mubr.f32.mxu0 0.0
        %2103 = vmatmul.mubr.f32.gmra.mrb[0].mxu0 %v1916
        %v2104 = vpop.f32.mrb[0].mxu0
        %v2105 = vadd.f32 0.0, %v2104
        %v2106 = vpop.f32.mrb[0].mxu0
        %v2107 = vadd.f32 0.0, %v2106
        %2108 = vmatprep.mubr.f32.mxu0 0.0
        %2109 = vmatmul.mubr.f32.gmra.mrb[0].mxu0 %v1919
        %v2110 = vpop.f32.mrb[0].mxu0
        %v2111 = vadd.f32 0.0, %v2110
        %v2112 = vpop.f32.mrb[0].mxu0
        %v2113 = vadd.f32 0.0, %v2112
        %2114 = vmatprep.mubr.f32.mxu0 0.0
        %2115 = vmatmul.mubr.f32.gmra.mrb[0].mxu0 %v1922
        %v2116 = vpop.f32.mrb[0].mxu0
        %v2117 = vadd.f32 0.0, %v2116
        %v2118 = vpop.f32.mrb[0].mxu0
        %v2119 = vadd.f32 0.0, %v2118
        %2120 = vmatprep.mubr.f32.mxu0 0.0
        %2121 = vmatmul.mubr.f32.gmra.mrb[0].mxu0 %v1925
        %v2122 = vpop.f32.mrb[0].mxu0
        %v2123 = vadd.f32 0.0, %v2122
        %v2124 = vpop.f32.mrb[0].mxu0
        %v2125 = vadd.f32 0.0, %v2124
        %2126 = vmatprep.mubr.f32.mxu0 0.0
        %2127 = vmatmul.mubr.f32.gmra.mrb[0].mxu0 %v1928
        %v2128 = vpop.f32.mrb[0].mxu0
        %v2129 = vadd.f32 0.0, %v2128
        %v2130 = vpop.f32.mrb[0].mxu0
        %v2131 = vadd.f32 0.0, %v2130
        %2132 = vmatprep.mubr.f32.mxu0 0.0
        %2133 = vmatmul.mubr.f32.gmra.mrb[0].mxu0 %v1931
        %v2134 = vpop.f32.mrb[0].mxu0
        %v2135 = vadd.f32 0.0, %v2134
        %v2136 = vpop.f32.mrb[0].mxu0
        %v2137 = vadd.f32 0.0, %v2136
        %2138 = vmatprep.mubr.f32.mxu0 0.0
        %2139 = vmatmul.mubr.f32.gmra.mrb[0].mxu0 %v1934
        %v2140 = vpop.f32.mrb[0].mxu0
        %v2141 = vadd.f32 0.0, %v2140
        %v2142 = vpop.f32.mrb[0].mxu0
        %v2143 = vadd.f32 0.0, %v2142
        %2144 = vmatprep.mubr.f32.mxu0 0.0
        %2145 = vmatmul.mubr.f32.gmra.mrb[0].mxu0 %v1937
        %v2146 = vpop.f32.mrb[0].mxu0
        %v2147 = vadd.f32 0.0, %v2146
        %v2148 = vpop.f32.mrb[0].mxu0
        %v2149 = vadd.f32 0.0, %v2148
        %2150 = vmatprep.mubr.f32.mxu0 0.0
        %2151 = vmatmul.mubr.f32.gmra.mrb[0].mxu0 %v1940
        %v2152 = vpop.f32.mrb[0].mxu0
        %v2153 = vadd.f32 0.0, %v2152
        %v2154 = vpop.f32.mrb[0].mxu0
        %v2155 = vadd.f32 0.0, %v2154
        %2156 = vmatprep.mubr.f32.mxu0 0.0
        %2157 = vmatmul.mubr.f32.gmra.mrb[0].mxu0 %v1943
        %v2158 = vpop.f32.mrb[0].mxu0
        %v2159 = vadd.f32 0.0, %v2158
        %v2160 = vpop.f32.mrb[0].mxu0
        %v2161 = vadd.f32 0.0, %v2160
        %2162 = vmatprep.mubr.f32.mxu0 0.0
        %2163 = vmatmul.mubr.f32.gmra.mrb[0].mxu0 %v1946
        %v2164 = vpop.f32.mrb[0].mxu0
        %v2165 = vadd.f32 0.0, %v2164
        %v2166 = vpop.f32.mrb[0].mxu0
        %v2167 = vadd.f32 0.0, %v2166
        %2168 = vmatprep.mubr.f32.mxu0 0.0
        %2169 = vmatmul.mubr.f32.gmra.mrb[0].mxu0 %v1949
        %v2170 = vpop.f32.mrb[0].mxu0
        %v2171 = vadd.f32 0.0, %v2170
        %v2172 = vpop.f32.mrb[0].mxu0
        %v2173 = vadd.f32 0.0, %v2172
        %2174 = vmatprep.mubr.f32.mxu0 0.0
        %2175 = vmatmul.mubr.f32.gmra.mrb[0].mxu0 %v1952
        %v2176 = vpop.f32.mrb[0].mxu0
        %v2177 = vadd.f32 0.0, %v2176
        %v2178 = vpop.f32.mrb[0].mxu0
        %v2179 = vadd.f32 0.0, %v2178
        %2180 = vmatprep.mubr.f32.mxu0 0.0
        %2181 = vmatmul.mubr.f32.gmra.mrb[0].mxu0 %v1955
        %v2182 = vpop.f32.mrb[0].mxu0
        %v2183 = vadd.f32 0.0, %v2182
        %v2184 = vpop.f32.mrb[0].mxu0
        %v2185 = vadd.f32 0.0, %v2184
        %2186 = vmatprep.mubr.f32.mxu0 0.0
        %2187 = vmatmul.mubr.f32.gmra.mrb[0].mxu0 %v1958
        %v2188 = vpop.f32.mrb[0].mxu0
        %v2189 = vadd.f32 0.0, %v2188
        %v2190 = vpop.f32.mrb[0].mxu0
        %v2191 = vadd.f32 0.0, %v2190
        %2192 = vdwg.mxu0
        %v2193 = vld [vmem:[#allocation2] sm:$0xff]
        %v2194 = vld [vmem:[#allocation2 + $0x8] sm:$0xff]
        %v2195 = vld [vmem:[#allocation2 + $0x10] sm:$0xff]
        %v2196 = vld [vmem:[#allocation2 + $0x18] sm:$0xff]
        %v2197 = vld [vmem:[#allocation2 + $0x20] sm:$0xff]
        %v2198 = vld [vmem:[#allocation2 + $0x28] sm:$0xff]
        %v2199 = vld [vmem:[#allocation2 + $0x30] sm:$0xff]
        %v2200 = vld [vmem:[#allocation2 + $0x38] sm:$0xff]
        %v2201 = vld [vmem:[#allocation2 + $0x40] sm:$0xff]
        %v2202 = vld [vmem:[#allocation2 + $0x48] sm:$0xff]
        %v2203 = vld [vmem:[#allocation2 + $0x50] sm:$0xff]
        %v2204 = vld [vmem:[#allocation2 + $0x58] sm:$0xff]
        %v2205 = vld [vmem:[#allocation2 + $0x60] sm:$0xff]
        %v2206 = vld [vmem:[#allocation2 + $0x68] sm:$0xff]
        %v2207 = vld [vmem:[#allocation2 + $0x70] sm:$0xff]
        %v2208 = vld [vmem:[#allocation2 + $0x78] sm:$0xff]
        %v2209 = vld [vmem:[#allocation2 + $0x80] sm:$0xff]
        %v2210 = vld [vmem:[#allocation2 + $0x88] sm:$0xff]
        %v2211 = vld [vmem:[#allocation2 + $0x90] sm:$0xff]
        %v2212 = vld [vmem:[#allocation2 + $0x98] sm:$0xff]
        %v2213 = vld [vmem:[#allocation2 + $0xa0] sm:$0xff]
        %v2214 = vld [vmem:[#allocation2 + $0xa8] sm:$0xff]
        %v2215 = vld [vmem:[#allocation2 + $0xb0] sm:$0xff]
        %v2216 = vld [vmem:[#allocation2 + $0xb8] sm:$0xff]
        %v2217 = vld [vmem:[#allocation2 + $0xc0] sm:$0xff]
        %v2218 = vld [vmem:[#allocation2 + $0xc8] sm:$0xff]
        %v2219 = vld [vmem:[#allocation2 + $0xd0] sm:$0xff]
        %v2220 = vld [vmem:[#allocation2 + $0xd8] sm:$0xff]
        %v2221 = vld [vmem:[#allocation2 + $0xe0] sm:$0xff]
        %v2222 = vld [vmem:[#allocation2 + $0xe8] sm:$0xff]
        %v2223 = vld [vmem:[#allocation2 + $0xf0] sm:$0xff]
        %v2224 = vld [vmem:[#allocation2 + $0xf8] sm:$0xff]
        %v2225 = vld [vmem:[#allocation2 + $0x100] sm:$0xff]
        %v2226 = vld [vmem:[#allocation2 + $0x108] sm:$0xff]
        %v2227 = vld [vmem:[#allocation2 + $0x110] sm:$0xff]
        %v2228 = vld [vmem:[#allocation2 + $0x118] sm:$0xff]
        %v2229 = vld [vmem:[#allocation2 + $0x120] sm:$0xff]
        %v2230 = vld [vmem:[#allocation2 + $0x128] sm:$0xff]
        %v2231 = vld [vmem:[#allocation2 + $0x130] sm:$0xff]
        %v2232 = vld [vmem:[#allocation2 + $0x138] sm:$0xff]
        %v2233 = vld [vmem:[#allocation2 + $0x140] sm:$0xff]
        %v2234 = vld [vmem:[#allocation2 + $0x148] sm:$0xff]
        %v2235 = vld [vmem:[#allocation2 + $0x150] sm:$0xff]
        %v2236 = vld [vmem:[#allocation2 + $0x158] sm:$0xff]
        %v2237 = vld [vmem:[#allocation2 + $0x160] sm:$0xff]
        %v2238 = vld [vmem:[#allocation2 + $0x168] sm:$0xff]
        %v2239 = vld [vmem:[#allocation2 + $0x170] sm:$0xff]
        %v2240 = vld [vmem:[#allocation2 + $0x178] sm:$0xff]
        %v2241 = vld [vmem:[#allocation2 + $0x180] sm:$0xff]
        %v2242 = vld [vmem:[#allocation2 + $0x188] sm:$0xff]
        %v2243 = vld [vmem:[#allocation2 + $0x190] sm:$0xff]
        %v2244 = vld [vmem:[#allocation2 + $0x198] sm:$0xff]
        %v2245 = vld [vmem:[#allocation2 + $0x1a0] sm:$0xff]
        %v2246 = vld [vmem:[#allocation2 + $0x1a8] sm:$0xff]
        %v2247 = vld [vmem:[#allocation2 + $0x1b0] sm:$0xff]
        %v2248 = vld [vmem:[#allocation2 + $0x1b8] sm:$0xff]
        %v2249 = vadd.f32 %v2193, %v2027
        %v2250 = vadd.f32 %v2194, %v2029
        %v2251 = vadd.f32 %v2195, %v2033
        %v2252 = vadd.f32 %v2196, %v2035
        %v2253 = vadd.f32 %v2197, %v2039
        %v2254 = vadd.f32 %v2198, %v2041
        %v2255 = vadd.f32 %v2199, %v2045
        %v2256 = vadd.f32 %v2200, %v2047
        %v2257 = vadd.f32 %v2201, %v2051
        %v2258 = vadd.f32 %v2202, %v2053
        %v2259 = vadd.f32 %v2203, %v2057
        %v2260 = vadd.f32 %v2204, %v2059
        %v2261 = vadd.f32 %v2205, %v2063
        %v2262 = vadd.f32 %v2206, %v2065
        %v2263 = vadd.f32 %v2207, %v2069
        %v2264 = vadd.f32 %v2208, %v2071
        %v2265 = vadd.f32 %v2209, %v2075
        %v2266 = vadd.f32 %v2210, %v2077
        %v2267 = vadd.f32 %v2211, %v2081
        %v2268 = vadd.f32 %v2212, %v2083
        %v2269 = vadd.f32 %v2213, %v2087
        %v2270 = vadd.f32 %v2214, %v2089
        %v2271 = vadd.f32 %v2215, %v2093
        %v2272 = vadd.f32 %v2216, %v2095
        %v2273 = vadd.f32 %v2217, %v2099
        %v2274 = vadd.f32 %v2218, %v2101
        %v2275 = vadd.f32 %v2219, %v2105
        %v2276 = vadd.f32 %v2220, %v2107
        %v2277 = vadd.f32 %v2221, %v2111
        %v2278 = vadd.f32 %v2222, %v2113
        %v2279 = vadd.f32 %v2223, %v2117
        %v2280 = vadd.f32 %v2224, %v2119
        %v2281 = vadd.f32 %v2225, %v2123
        %v2282 = vadd.f32 %v2226, %v2125
        %v2283 = vadd.f32 %v2227, %v2129
        %v2284 = vadd.f32 %v2228, %v2131
        %v2285 = vadd.f32 %v2229, %v2135
        %v2286 = vadd.f32 %v2230, %v2137
        %v2287 = vadd.f32 %v2231, %v2141
        %v2288 = vadd.f32 %v2232, %v2143
        %v2289 = vadd.f32 %v2233, %v2147
        %v2290 = vadd.f32 %v2234, %v2149
        %v2291 = vadd.f32 %v2235, %v2153
        %v2292 = vadd.f32 %v2236, %v2155
        %v2293 = vadd.f32 %v2237, %v2159
        %v2294 = vadd.f32 %v2238, %v2161
        %v2295 = vadd.f32 %v2239, %v2165
        %v2296 = vadd.f32 %v2240, %v2167
        %v2297 = vadd.f32 %v2241, %v2171
        %v2298 = vadd.f32 %v2242, %v2173
        %v2299 = vadd.f32 %v2243, %v2177
        %v2300 = vadd.f32 %v2244, %v2179
        %v2301 = vadd.f32 %v2245, %v2183
        %v2302 = vadd.f32 %v2246, %v2185
        %v2303 = vadd.f32 %v2247, %v2189
        %v2304 = vadd.f32 %v2248, %v2191
        %2305 = vst [vmem:[#allocation2] sm:$0xff] %v2249
        %2306 = vst [vmem:[#allocation2 + $0x8] sm:$0xff] %v2250
        %2307 = vst [vmem:[#allocation2 + $0x10] sm:$0xff] %v2251
        %2308 = vst [vmem:[#allocation2 + $0x18] sm:$0xff] %v2252
        %2309 = vst [vmem:[#allocation2 + $0x20] sm:$0xff] %v2253
        %2310 = vst [vmem:[#allocation2 + $0x28] sm:$0xff] %v2254
        %2311 = vst [vmem:[#allocation2 + $0x30] sm:$0xff] %v2255
        %2312 = vst [vmem:[#allocation2 + $0x38] sm:$0xff] %v2256
        %2313 = vst [vmem:[#allocation2 + $0x40] sm:$0xff] %v2257
        %2314 = vst [vmem:[#allocation2 + $0x48] sm:$0xff] %v2258
        %2315 = vst [vmem:[#allocation2 + $0x50] sm:$0xff] %v2259
        %2316 = vst [vmem:[#allocation2 + $0x58] sm:$0xff] %v2260
        %2317 = vst [vmem:[#allocation2 + $0x60] sm:$0xff] %v2261
        %2318 = vst [vmem:[#allocation2 + $0x68] sm:$0xff] %v2262
        %2319 = vst [vmem:[#allocation2 + $0x70] sm:$0xff] %v2263
        %2320 = vst [vmem:[#allocation2 + $0x78] sm:$0xff] %v2264
        %2321 = vst [vmem:[#allocation2 + $0x80] sm:$0xff] %v2265
        %2322 = vst [vmem:[#allocation2 + $0x88] sm:$0xff] %v2266
        %2323 = vst [vmem:[#allocation2 + $0x90] sm:$0xff] %v2267
        %2324 = vst [vmem:[#allocation2 + $0x98] sm:$0xff] %v2268
        %2325 = vst [vmem:[#allocation2 + $0xa0] sm:$0xff] %v2269
        %2326 = vst [vmem:[#allocation2 + $0xa8] sm:$0xff] %v2270
        %2327 = vst [vmem:[#allocation2 + $0xb0] sm:$0xff] %v2271
        %2328 = vst [vmem:[#allocation2 + $0xb8] sm:$0xff] %v2272
        %2329 = vst [vmem:[#allocation2 + $0xc0] sm:$0xff] %v2273
        %2330 = vst [vmem:[#allocation2 + $0xc8] sm:$0xff] %v2274
        %2331 = vst [vmem:[#allocation2 + $0xd0] sm:$0xff] %v2275
        %2332 = vst [vmem:[#allocation2 + $0xd8] sm:$0xff] %v2276
        %2333 = vst [vmem:[#allocation2 + $0xe0] sm:$0xff] %v2277
        %2334 = vst [vmem:[#allocation2 + $0xe8] sm:$0xff] %v2278
        %2335 = vst [vmem:[#allocation2 + $0xf0] sm:$0xff] %v2279
        %2336 = vst [vmem:[#allocation2 + $0xf8] sm:$0xff] %v2280
        %2337 = vst [vmem:[#allocation2 + $0x100] sm:$0xff] %v2281
        %2338 = vst [vmem:[#allocation2 + $0x108] sm:$0xff] %v2282
        %2339 = vst [vmem:[#allocation2 + $0x110] sm:$0xff] %v2283
        %2340 = vst [vmem:[#allocation2 + $0x118] sm:$0xff] %v2284
        %2341 = vst [vmem:[#allocation2 + $0x120] sm:$0xff] %v2285
        %2342 = vst [vmem:[#allocation2 + $0x128] sm:$0xff] %v2286
        %2343 = vst [vmem:[#allocation2 + $0x130] sm:$0xff] %v2287
        %2344 = vst [vmem:[#allocation2 + $0x138] sm:$0xff] %v2288
        %2345 = vst [vmem:[#allocation2 + $0x140] sm:$0xff] %v2289
        %2346 = vst [vmem:[#allocation2 + $0x148] sm:$0xff] %v2290
        %2347 = vst [vmem:[#allocation2 + $0x150] sm:$0xff] %v2291
        %2348 = vst [vmem:[#allocation2 + $0x158] sm:$0xff] %v2292
        %2349 = vst [vmem:[#allocation2 + $0x160] sm:$0xff] %v2293
        %2350 = vst [vmem:[#allocation2 + $0x168] sm:$0xff] %v2294
        %2351 = vst [vmem:[#allocation2 + $0x170] sm:$0xff] %v2295
        %2352 = vst [vmem:[#allocation2 + $0x178] sm:$0xff] %v2296
        %2353 = vst [vmem:[#allocation2 + $0x180] sm:$0xff] %v2297
        %2354 = vst [vmem:[#allocation2 + $0x188] sm:$0xff] %v2298
        %2355 = vst [vmem:[#allocation2 + $0x190] sm:$0xff] %v2299
        %2356 = vst [vmem:[#allocation2 + $0x198] sm:$0xff] %v2300
        %2357 = vst [vmem:[#allocation2 + $0x1a0] sm:$0xff] %v2301
        %2358 = vst [vmem:[#allocation2 + $0x1a8] sm:$0xff] %v2302
        %2359 = vst [vmem:[#allocation2 + $0x1b0] sm:$0xff] %v2303
        %2360 = vst [vmem:[#allocation2 + $0x1b8] sm:$0xff] %v2304
        %v2361 = vld [vmem:[%s384 + $0x20] sm:$0xff]
        %v2362 = vld [vmem:[%s384 + $0x28] sm:$0xff]
        %v2363 = vld [vmem:[%s384 + $0x30] sm:$0xff]
        %v2364 = vld [vmem:[%s384 + $0x38] sm:$0xff]
        %v2365 = vld [vmem:[%s384 + $0x40] sm:$0xff]
        %v2366 = vld [vmem:[%s384 + $0x48] sm:$0xff]
        %v2367 = vld [vmem:[%s384 + $0x50] sm:$0xff]
        %v2368 = vld [vmem:[%s384 + $0x58] sm:$0xff]
        %v2369 = vld [vmem:[%s384 + $0x60] sm:$0xff]
        %v2370 = vld [vmem:[%s384 + $0x68] sm:$0xff]
        %v2371 = vld [vmem:[%s384 + $0x70] sm:$0xff]
        %v2372 = vld [vmem:[%s384 + $0x78] sm:$0xff]
        %v2373 = vld [vmem:[%s384 + $0x80] sm:$0xff]
        %v2374 = vld [vmem:[%s384 + $0x88] sm:$0xff]
        %v2375 = vld [vmem:[%s384 + $0x90] sm:$0xff]
        %v2376 = vld [vmem:[%s384 + $0x98] sm:$0xff]
        %v2377 = vld [vmem:[%s384 + $0xa0] sm:$0xff]
        %v2378 = vld [vmem:[%s384 + $0xa8] sm:$0xff]
        %v2379 = vld [vmem:[%s384 + $0xb0] sm:$0xff]
        %v2380 = vld [vmem:[%s384 + $0xb8] sm:$0xff]
        %v2381 = vld [vmem:[%s384 + $0xc0] sm:$0xff]
        %v2382 = vld [vmem:[%s384 + $0xc8] sm:$0xff]
        %v2383 = vld [vmem:[%s384 + $0xd0] sm:$0xff]
        %v2384 = vld [vmem:[%s384 + $0xd8] sm:$0xff]
        %v2385 = vld [vmem:[%s384 + $0xe0] sm:$0xff]
        %v2386 = vld [vmem:[%s384 + $0xe8] sm:$0xff]
        %v2387 = vld [vmem:[%s384 + $0xf0] sm:$0xff]
        %v2388 = vld [vmem:[%s384 + $0xf8] sm:$0xff]
        %s2389 = scalar_lea.vmem %s1, 256
        %v2390 = vld [vmem:[%s2389] sm:$0xff]
        %v2391 = vld [vmem:[%s2389 + $0x8] sm:$0xff]
        %v2392 = vld [vmem:[%s2389 + $0x10] sm:$0xff]
        %v2393 = vld [vmem:[%s2389 + $0x18] sm:$0xff]
        %v2394 = vld [vmem:[%s2389 + $0x20] sm:$0xff]
        %v2395 = vld [vmem:[%s2389 + $0x28] sm:$0xff]
        %v2396 = vld [vmem:[%s2389 + $0x30] sm:$0xff]
        %v2397 = vld [vmem:[%s2389 + $0x38] sm:$0xff]
        %v2399 = vsel %vm421, %v2361, 0
        %v2402 = vsel %vm421, %v2362, 0
        %v2405 = vsel %vm421, %v2363, 0
        %v2408 = vsel %vm421, %v2364, 0
        %v2411 = vsel %vm421, %v2365, 0
        %v2414 = vsel %vm421, %v2366, 0
        %v2417 = vsel %vm421, %v2367, 0
        %v2420 = vsel %vm421, %v2368, 0
        %v2423 = vsel %vm421, %v2369, 0
        %v2426 = vsel %vm421, %v2370, 0
        %v2429 = vsel %vm421, %v2371, 0
        %v2432 = vsel %vm421, %v2372, 0
        %v2435 = vsel %vm421, %v2373, 0
        %v2438 = vsel %vm421, %v2374, 0
        %v2441 = vsel %vm421, %v2375, 0
        %v2444 = vsel %vm421, %v2376, 0
        %v2447 = vsel %vm421, %v2377, 0
        %v2450 = vsel %vm421, %v2378, 0
        %v2453 = vsel %vm421, %v2379, 0
        %v2456 = vsel %vm421, %v2380, 0
        %v2459 = vsel %vm421, %v2381, 0
        %v2462 = vsel %vm421, %v2382, 0
        %v2465 = vsel %vm421, %v2383, 0
        %v2468 = vsel %vm421, %v2384, 0
        %v2471 = vsel %vm421, %v2385, 0
        %v2474 = vsel %vm421, %v2386, 0
        %v2477 = vsel %vm421, %v2387, 0
        %v2480 = vsel %vm421, %v2388, 0
        %2482 = vmatprep.subr.mxu0 %v2391
        %2483 = vmatpush1.msra.mxu0 %v2390
        %2484 = vmatprep.subr.mxu0 %v2393
        %2485 = vmatpush1.msra.mxu0 %v2392
        %2486 = vmatprep.subr.mxu0 %v2395
        %2487 = vmatpush1.msra.mxu0 %v2394
        %2488 = vmatprep.subr.mxu0 %v2397
        %2489 = vmatpush1.msra.mxu0 %v2396
        %2490 = vmatprep.subr.mxu0 0.0
        %2491 = vmatpush1.msra.mxu0 0.0
        %2492 = vmatprep.subr.mxu0 0.0
        %2493 = vmatpush1.msra.mxu0 0.0
        %2494 = vmatprep.subr.mxu0 0.0
        %2495 = vmatpush1.msra.mxu0 0.0
        %2496 = vmatprep.subr.mxu0 0.0
        %2497 = vmatpush1.msra.mxu0 0.0
        %2498 = vmatprep.subr.mxu0 0.0
        %2499 = vmatpush1.msra.mxu0 0.0
        %2500 = vmatprep.subr.mxu0 0.0
        %2501 = vmatpush1.msra.mxu0 0.0
        %2502 = vmatprep.subr.mxu0 0.0
        %2503 = vmatpush1.msra.mxu0 0.0
        %2504 = vmatprep.subr.mxu0 0.0
        %2505 = vmatpush1.msra.mxu0 0.0
        %2506 = vmatprep.subr.mxu0 0.0
        %2507 = vmatpush1.msra.mxu0 0.0
        %2508 = vmatprep.subr.mxu0 0.0
        %2509 = vmatpush1.msra.mxu0 0.0
        %2510 = vmatprep.subr.mxu0 0.0
        %2511 = vmatpush1.msra.mxu0 0.0
        %2512 = vmatprep.subr.mxu0 0.0
        %2513 = vmatpush1.msra.mxu0 0.0
        %2514 = vmatprep.subr.mxu0 0.0
        %2515 = vmatpush1.msra.mxu0 0.0
        %2516 = vmatprep.subr.mxu0 0.0
        %2517 = vmatpush1.msra.mxu0 0.0
        %2518 = vmatprep.subr.mxu0 0.0
        %2519 = vmatpush1.msra.mxu0 0.0
        %2520 = vmatprep.subr.mxu0 0.0
        %2521 = vmatpush1.msra.mxu0 0.0
        %2522 = vmatprep.subr.mxu0 0.0
        %2523 = vmatpush1.msra.mxu0 0.0
        %2524 = vmatprep.subr.mxu0 0.0
        %2525 = vmatpush1.msra.mxu0 0.0
        %2526 = vmatprep.subr.mxu0 0.0
        %2527 = vmatpush1.msra.mxu0 0.0
        %2528 = vmatprep.subr.mxu0 0.0
        %2529 = vmatpush1.msra.mxu0 0.0
        %2530 = vmatprep.subr.mxu0 0.0
        %2531 = vmatpush1.msra.mxu0 0.0
        %2532 = vmatprep.subr.mxu0 0.0
        %2533 = vmatpush1.msra.mxu0 0.0
        %2534 = vmatprep.subr.mxu0 0.0
        %2535 = vmatpush1.msra.mxu0 0.0
        %2536 = vmatprep.subr.mxu0 0.0
        %2537 = vmatpush1.msra.mxu0 0.0
        %2538 = vmatprep.subr.mxu0 0.0
        %2539 = vmatpush1.msra.mxu0 0.0
        %2540 = vmatprep.subr.mxu0 0.0
        %2541 = vmatpush1.msra.mxu0 0.0
        %2542 = vmatprep.subr.mxu0 0.0
        %2543 = vmatpush1.msra.mxu0 0.0
        %2544 = vmatprep.subr.mxu0 0.0
        %2545 = vmatpush1.msra.mxu0 0.0
        %2546 = vmatprep.mubr.f32.mxu0 0.0
        %2547 = vmatmul.mubr.f32.gmra.mrb[0].mxu0 %v2399
        %v2548 = vpop.f32.mrb[0].mxu0
        %v2549 = vadd.f32 0.0, %v2548
        %v2550 = vpop.f32.mrb[0].mxu0
        %v2551 = vadd.f32 0.0, %v2550
        %2552 = vmatprep.mubr.f32.mxu0 0.0
        %2553 = vmatmul.mubr.f32.gmra.mrb[0].mxu0 %v2402
        %v2554 = vpop.f32.mrb[0].mxu0
        %v2555 = vadd.f32 0.0, %v2554
        %v2556 = vpop.f32.mrb[0].mxu0
        %v2557 = vadd.f32 0.0, %v2556
        %2558 = vmatprep.mubr.f32.mxu0 0.0
        %2559 = vmatmul.mubr.f32.gmra.mrb[0].mxu0 %v2405
        %v2560 = vpop.f32.mrb[0].mxu0
        %v2561 = vadd.f32 0.0, %v2560
        %v2562 = vpop.f32.mrb[0].mxu0
        %v2563 = vadd.f32 0.0, %v2562
        %2564 = vmatprep.mubr.f32.mxu0 0.0
        %2565 = vmatmul.mubr.f32.gmra.mrb[0].mxu0 %v2408
        %v2566 = vpop.f32.mrb[0].mxu0
        %v2567 = vadd.f32 0.0, %v2566
        %v2568 = vpop.f32.mrb[0].mxu0
        %v2569 = vadd.f32 0.0, %v2568
        %2570 = vmatprep.mubr.f32.mxu0 0.0
        %2571 = vmatmul.mubr.f32.gmra.mrb[0].mxu0 %v2411
        %v2572 = vpop.f32.mrb[0].mxu0
        %v2573 = vadd.f32 0.0, %v2572
        %v2574 = vpop.f32.mrb[0].mxu0
        %v2575 = vadd.f32 0.0, %v2574
        %2576 = vmatprep.mubr.f32.mxu0 0.0
        %2577 = vmatmul.mubr.f32.gmra.mrb[0].mxu0 %v2414
        %v2578 = vpop.f32.mrb[0].mxu0
        %v2579 = vadd.f32 0.0, %v2578
        %v2580 = vpop.f32.mrb[0].mxu0
        %v2581 = vadd.f32 0.0, %v2580
        %2582 = vmatprep.mubr.f32.mxu0 0.0
        %2583 = vmatmul.mubr.f32.gmra.mrb[0].mxu0 %v2417
        %v2584 = vpop.f32.mrb[0].mxu0
        %v2585 = vadd.f32 0.0, %v2584
        %v2586 = vpop.f32.mrb[0].mxu0
        %v2587 = vadd.f32 0.0, %v2586
        %2588 = vmatprep.mubr.f32.mxu0 0.0
        %2589 = vmatmul.mubr.f32.gmra.mrb[0].mxu0 %v2420
        %v2590 = vpop.f32.mrb[0].mxu0
        %v2591 = vadd.f32 0.0, %v2590
        %v2592 = vpop.f32.mrb[0].mxu0
        %v2593 = vadd.f32 0.0, %v2592
        %2594 = vmatprep.mubr.f32.mxu0 0.0
        %2595 = vmatmul.mubr.f32.gmra.mrb[0].mxu0 %v2423
        %v2596 = vpop.f32.mrb[0].mxu0
        %v2597 = vadd.f32 0.0, %v2596
        %v2598 = vpop.f32.mrb[0].mxu0
        %v2599 = vadd.f32 0.0, %v2598
        %2600 = vmatprep.mubr.f32.mxu0 0.0
        %2601 = vmatmul.mubr.f32.gmra.mrb[0].mxu0 %v2426
        %v2602 = vpop.f32.mrb[0].mxu0
        %v2603 = vadd.f32 0.0, %v2602
        %v2604 = vpop.f32.mrb[0].mxu0
        %v2605 = vadd.f32 0.0, %v2604
        %2606 = vmatprep.mubr.f32.mxu0 0.0
        %2607 = vmatmul.mubr.f32.gmra.mrb[0].mxu0 %v2429
        %v2608 = vpop.f32.mrb[0].mxu0
        %v2609 = vadd.f32 0.0, %v2608
        %v2610 = vpop.f32.mrb[0].mxu0
        %v2611 = vadd.f32 0.0, %v2610
        %2612 = vmatprep.mubr.f32.mxu0 0.0
        %2613 = vmatmul.mubr.f32.gmra.mrb[0].mxu0 %v2432
        %v2614 = vpop.f32.mrb[0].mxu0
        %v2615 = vadd.f32 0.0, %v2614
        %v2616 = vpop.f32.mrb[0].mxu0
        %v2617 = vadd.f32 0.0, %v2616
        %2618 = vmatprep.mubr.f32.mxu0 0.0
        %2619 = vmatmul.mubr.f32.gmra.mrb[0].mxu0 %v2435
        %v2620 = vpop.f32.mrb[0].mxu0
        %v2621 = vadd.f32 0.0, %v2620
        %v2622 = vpop.f32.mrb[0].mxu0
        %v2623 = vadd.f32 0.0, %v2622
        %2624 = vmatprep.mubr.f32.mxu0 0.0
        %2625 = vmatmul.mubr.f32.gmra.mrb[0].mxu0 %v2438
        %v2626 = vpop.f32.mrb[0].mxu0
        %v2627 = vadd.f32 0.0, %v2626
        %v2628 = vpop.f32.mrb[0].mxu0
        %v2629 = vadd.f32 0.0, %v2628
        %2630 = vmatprep.mubr.f32.mxu0 0.0
        %2631 = vmatmul.mubr.f32.gmra.mrb[0].mxu0 %v2441
        %v2632 = vpop.f32.mrb[0].mxu0
        %v2633 = vadd.f32 0.0, %v2632
        %v2634 = vpop.f32.mrb[0].mxu0
        %v2635 = vadd.f32 0.0, %v2634
        %2636 = vmatprep.mubr.f32.mxu0 0.0
        %2637 = vmatmul.mubr.f32.gmra.mrb[0].mxu0 %v2444
        %v2638 = vpop.f32.mrb[0].mxu0
        %v2639 = vadd.f32 0.0, %v2638
        %v2640 = vpop.f32.mrb[0].mxu0
        %v2641 = vadd.f32 0.0, %v2640
        %2642 = vmatprep.mubr.f32.mxu0 0.0
        %2643 = vmatmul.mubr.f32.gmra.mrb[0].mxu0 %v2447
        %v2644 = vpop.f32.mrb[0].mxu0
        %v2645 = vadd.f32 0.0, %v2644
        %v2646 = vpop.f32.mrb[0].mxu0
        %v2647 = vadd.f32 0.0, %v2646
        %2648 = vmatprep.mubr.f32.mxu0 0.0
        %2649 = vmatmul.mubr.f32.gmra.mrb[0].mxu0 %v2450
        %v2650 = vpop.f32.mrb[0].mxu0
        %v2651 = vadd.f32 0.0, %v2650
        %v2652 = vpop.f32.mrb[0].mxu0
        %v2653 = vadd.f32 0.0, %v2652
        %2654 = vmatprep.mubr.f32.mxu0 0.0
        %2655 = vmatmul.mubr.f32.gmra.mrb[0].mxu0 %v2453
        %v2656 = vpop.f32.mrb[0].mxu0
        %v2657 = vadd.f32 0.0, %v2656
        %v2658 = vpop.f32.mrb[0].mxu0
        %v2659 = vadd.f32 0.0, %v2658
        %2660 = vmatprep.mubr.f32.mxu0 0.0
        %2661 = vmatmul.mubr.f32.gmra.mrb[0].mxu0 %v2456
        %v2662 = vpop.f32.mrb[0].mxu0
        %v2663 = vadd.f32 0.0, %v2662
        %v2664 = vpop.f32.mrb[0].mxu0
        %v2665 = vadd.f32 0.0, %v2664
        %2666 = vmatprep.mubr.f32.mxu0 0.0
        %2667 = vmatmul.mubr.f32.gmra.mrb[0].mxu0 %v2459
        %v2668 = vpop.f32.mrb[0].mxu0
        %v2669 = vadd.f32 0.0, %v2668
        %v2670 = vpop.f32.mrb[0].mxu0
        %v2671 = vadd.f32 0.0, %v2670
        %2672 = vmatprep.mubr.f32.mxu0 0.0
        %2673 = vmatmul.mubr.f32.gmra.mrb[0].mxu0 %v2462
        %v2674 = vpop.f32.mrb[0].mxu0
        %v2675 = vadd.f32 0.0, %v2674
        %v2676 = vpop.f32.mrb[0].mxu0
        %v2677 = vadd.f32 0.0, %v2676
        %2678 = vmatprep.mubr.f32.mxu0 0.0
        %2679 = vmatmul.mubr.f32.gmra.mrb[0].mxu0 %v2465
        %v2680 = vpop.f32.mrb[0].mxu0
        %v2681 = vadd.f32 0.0, %v2680
        %v2682 = vpop.f32.mrb[0].mxu0
        %v2683 = vadd.f32 0.0, %v2682
        %2684 = vmatprep.mubr.f32.mxu0 0.0
        %2685 = vmatmul.mubr.f32.gmra.mrb[0].mxu0 %v2468
        %v2686 = vpop.f32.mrb[0].mxu0
        %v2687 = vadd.f32 0.0, %v2686
        %v2688 = vpop.f32.mrb[0].mxu0
        %v2689 = vadd.f32 0.0, %v2688
        %2690 = vmatprep.mubr.f32.mxu0 0.0
        %2691 = vmatmul.mubr.f32.gmra.mrb[0].mxu0 %v2471
        %v2692 = vpop.f32.mrb[0].mxu0
        %v2693 = vadd.f32 0.0, %v2692
        %v2694 = vpop.f32.mrb[0].mxu0
        %v2695 = vadd.f32 0.0, %v2694
        %2696 = vmatprep.mubr.f32.mxu0 0.0
        %2697 = vmatmul.mubr.f32.gmra.mrb[0].mxu0 %v2474
        %v2698 = vpop.f32.mrb[0].mxu0
        %v2699 = vadd.f32 0.0, %v2698
        %v2700 = vpop.f32.mrb[0].mxu0
        %v2701 = vadd.f32 0.0, %v2700
        %2702 = vmatprep.mubr.f32.mxu0 0.0
        %2703 = vmatmul.mubr.f32.gmra.mrb[0].mxu0 %v2477
        %v2704 = vpop.f32.mrb[0].mxu0
        %v2705 = vadd.f32 0.0, %v2704
        %v2706 = vpop.f32.mrb[0].mxu0
        %v2707 = vadd.f32 0.0, %v2706
        %2708 = vmatprep.mubr.f32.mxu0 0.0
        %2709 = vmatmul.mubr.f32.gmra.mrb[0].mxu0 %v2480
        %v2710 = vpop.f32.mrb[0].mxu0
        %v2711 = vadd.f32 0.0, %v2710
        %v2712 = vpop.f32.mrb[0].mxu0
        %v2713 = vadd.f32 0.0, %v2712
        %2714 = vdwg.mxu0
        %v2715 = vld [vmem:[#allocation2] sm:$0xff]
        %v2716 = vld [vmem:[#allocation2 + $0x8] sm:$0xff]
        %v2717 = vld [vmem:[#allocation2 + $0x10] sm:$0xff]
        %v2718 = vld [vmem:[#allocation2 + $0x18] sm:$0xff]
        %v2719 = vld [vmem:[#allocation2 + $0x20] sm:$0xff]
        %v2720 = vld [vmem:[#allocation2 + $0x28] sm:$0xff]
        %v2721 = vld [vmem:[#allocation2 + $0x30] sm:$0xff]
        %v2722 = vld [vmem:[#allocation2 + $0x38] sm:$0xff]
        %v2723 = vld [vmem:[#allocation2 + $0x40] sm:$0xff]
        %v2724 = vld [vmem:[#allocation2 + $0x48] sm:$0xff]
        %v2725 = vld [vmem:[#allocation2 + $0x50] sm:$0xff]
        %v2726 = vld [vmem:[#allocation2 + $0x58] sm:$0xff]
        %v2727 = vld [vmem:[#allocation2 + $0x60] sm:$0xff]
        %v2728 = vld [vmem:[#allocation2 + $0x68] sm:$0xff]
        %v2729 = vld [vmem:[#allocation2 + $0x70] sm:$0xff]
        %v2730 = vld [vmem:[#allocation2 + $0x78] sm:$0xff]
        %v2731 = vld [vmem:[#allocation2 + $0x80] sm:$0xff]
        %v2732 = vld [vmem:[#allocation2 + $0x88] sm:$0xff]
        %v2733 = vld [vmem:[#allocation2 + $0x90] sm:$0xff]
        %v2734 = vld [vmem:[#allocation2 + $0x98] sm:$0xff]
        %v2735 = vld [vmem:[#allocation2 + $0xa0] sm:$0xff]
        %v2736 = vld [vmem:[#allocation2 + $0xa8] sm:$0xff]
        %v2737 = vld [vmem:[#allocation2 + $0xb0] sm:$0xff]
        %v2738 = vld [vmem:[#allocation2 + $0xb8] sm:$0xff]
        %v2739 = vld [vmem:[#allocation2 + $0xc0] sm:$0xff]
        %v2740 = vld [vmem:[#allocation2 + $0xc8] sm:$0xff]
        %v2741 = vld [vmem:[#allocation2 + $0xd0] sm:$0xff]
        %v2742 = vld [vmem:[#allocation2 + $0xd8] sm:$0xff]
        %v2743 = vld [vmem:[#allocation2 + $0xe0] sm:$0xff]
        %v2744 = vld [vmem:[#allocation2 + $0xe8] sm:$0xff]
        %v2745 = vld [vmem:[#allocation2 + $0xf0] sm:$0xff]
        %v2746 = vld [vmem:[#allocation2 + $0xf8] sm:$0xff]
        %v2747 = vld [vmem:[#allocation2 + $0x100] sm:$0xff]
        %v2748 = vld [vmem:[#allocation2 + $0x108] sm:$0xff]
        %v2749 = vld [vmem:[#allocation2 + $0x110] sm:$0xff]
        %v2750 = vld [vmem:[#allocation2 + $0x118] sm:$0xff]
        %v2751 = vld [vmem:[#allocation2 + $0x120] sm:$0xff]
        %v2752 = vld [vmem:[#allocation2 + $0x128] sm:$0xff]
        %v2753 = vld [vmem:[#allocation2 + $0x130] sm:$0xff]
        %v2754 = vld [vmem:[#allocation2 + $0x138] sm:$0xff]
        %v2755 = vld [vmem:[#allocation2 + $0x140] sm:$0xff]
        %v2756 = vld [vmem:[#allocation2 + $0x148] sm:$0xff]
        %v2757 = vld [vmem:[#allocation2 + $0x150] sm:$0xff]
        %v2758 = vld [vmem:[#allocation2 + $0x158] sm:$0xff]
        %v2759 = vld [vmem:[#allocation2 + $0x160] sm:$0xff]
        %v2760 = vld [vmem:[#allocation2 + $0x168] sm:$0xff]
        %v2761 = vld [vmem:[#allocation2 + $0x170] sm:$0xff]
        %v2762 = vld [vmem:[#allocation2 + $0x178] sm:$0xff]
        %v2763 = vld [vmem:[#allocation2 + $0x180] sm:$0xff]
        %v2764 = vld [vmem:[#allocation2 + $0x188] sm:$0xff]
        %v2765 = vld [vmem:[#allocation2 + $0x190] sm:$0xff]
        %v2766 = vld [vmem:[#allocation2 + $0x198] sm:$0xff]
        %v2767 = vld [vmem:[#allocation2 + $0x1a0] sm:$0xff]
        %v2768 = vld [vmem:[#allocation2 + $0x1a8] sm:$0xff]
        %v2769 = vld [vmem:[#allocation2 + $0x1b0] sm:$0xff]
        %v2770 = vld [vmem:[#allocation2 + $0x1b8] sm:$0xff]
        %v2771 = vadd.f32 %v2715, %v2549
        %v2772 = vadd.f32 %v2716, %v2551
        %v2773 = vadd.f32 %v2717, %v2555
        %v2774 = vadd.f32 %v2718, %v2557
        %v2775 = vadd.f32 %v2719, %v2561
        %v2776 = vadd.f32 %v2720, %v2563
        %v2777 = vadd.f32 %v2721, %v2567
        %v2778 = vadd.f32 %v2722, %v2569
        %v2779 = vadd.f32 %v2723, %v2573
        %v2780 = vadd.f32 %v2724, %v2575
        %v2781 = vadd.f32 %v2725, %v2579
        %v2782 = vadd.f32 %v2726, %v2581
        %v2783 = vadd.f32 %v2727, %v2585
        %v2784 = vadd.f32 %v2728, %v2587
        %v2785 = vadd.f32 %v2729, %v2591
        %v2786 = vadd.f32 %v2730, %v2593
        %v2787 = vadd.f32 %v2731, %v2597
        %v2788 = vadd.f32 %v2732, %v2599
        %v2789 = vadd.f32 %v2733, %v2603
        %v2790 = vadd.f32 %v2734, %v2605
        %v2791 = vadd.f32 %v2735, %v2609
        %v2792 = vadd.f32 %v2736, %v2611
        %v2793 = vadd.f32 %v2737, %v2615
        %v2794 = vadd.f32 %v2738, %v2617
        %v2795 = vadd.f32 %v2739, %v2621
        %v2796 = vadd.f32 %v2740, %v2623
        %v2797 = vadd.f32 %v2741, %v2627
        %v2798 = vadd.f32 %v2742, %v2629
        %v2799 = vadd.f32 %v2743, %v2633
        %v2800 = vadd.f32 %v2744, %v2635
        %v2801 = vadd.f32 %v2745, %v2639
        %v2802 = vadd.f32 %v2746, %v2641
        %v2803 = vadd.f32 %v2747, %v2645
        %v2804 = vadd.f32 %v2748, %v2647
        %v2805 = vadd.f32 %v2749, %v2651
        %v2806 = vadd.f32 %v2750, %v2653
        %v2807 = vadd.f32 %v2751, %v2657
        %v2808 = vadd.f32 %v2752, %v2659
        %v2809 = vadd.f32 %v2753, %v2663
        %v2810 = vadd.f32 %v2754, %v2665
        %v2811 = vadd.f32 %v2755, %v2669
        %v2812 = vadd.f32 %v2756, %v2671
        %v2813 = vadd.f32 %v2757, %v2675
        %v2814 = vadd.f32 %v2758, %v2677
        %v2815 = vadd.f32 %v2759, %v2681
        %v2816 = vadd.f32 %v2760, %v2683
        %v2817 = vadd.f32 %v2761, %v2687
        %v2818 = vadd.f32 %v2762, %v2689
        %v2819 = vadd.f32 %v2763, %v2693
        %v2820 = vadd.f32 %v2764, %v2695
        %v2821 = vadd.f32 %v2765, %v2699
        %v2822 = vadd.f32 %v2766, %v2701
        %v2823 = vadd.f32 %v2767, %v2705
        %v2824 = vadd.f32 %v2768, %v2707
        %v2825 = vadd.f32 %v2769, %v2711
        %v2826 = vadd.f32 %v2770, %v2713
        %2827 = vst [vmem:[#allocation2] sm:$0xff] %v2771
        %2828 = vst [vmem:[#allocation2 + $0x8] sm:$0xff] %v2772
        %2829 = vst [vmem:[#allocation2 + $0x10] sm:$0xff] %v2773
        %2830 = vst [vmem:[#allocation2 + $0x18] sm:$0xff] %v2774
        %2831 = vst [vmem:[#allocation2 + $0x20] sm:$0xff] %v2775
        %2832 = vst [vmem:[#allocation2 + $0x28] sm:$0xff] %v2776
        %2833 = vst [vmem:[#allocation2 + $0x30] sm:$0xff] %v2777
        %2834 = vst [vmem:[#allocation2 + $0x38] sm:$0xff] %v2778
        %2835 = vst [vmem:[#allocation2 + $0x40] sm:$0xff] %v2779
        %2836 = vst [vmem:[#allocation2 + $0x48] sm:$0xff] %v2780
        %2837 = vst [vmem:[#allocation2 + $0x50] sm:$0xff] %v2781
        %2838 = vst [vmem:[#allocation2 + $0x58] sm:$0xff] %v2782
        %2839 = vst [vmem:[#allocation2 + $0x60] sm:$0xff] %v2783
        %2840 = vst [vmem:[#allocation2 + $0x68] sm:$0xff] %v2784
        %2841 = vst [vmem:[#allocation2 + $0x70] sm:$0xff] %v2785
        %2842 = vst [vmem:[#allocation2 + $0x78] sm:$0xff] %v2786
        %2843 = vst [vmem:[#allocation2 + $0x80] sm:$0xff] %v2787
        %2844 = vst [vmem:[#allocation2 + $0x88] sm:$0xff] %v2788
        %2845 = vst [vmem:[#allocation2 + $0x90] sm:$0xff] %v2789
        %2846 = vst [vmem:[#allocation2 + $0x98] sm:$0xff] %v2790
        %2847 = vst [vmem:[#allocation2 + $0xa0] sm:$0xff] %v2791
        %2848 = vst [vmem:[#allocation2 + $0xa8] sm:$0xff] %v2792
        %2849 = vst [vmem:[#allocation2 + $0xb0] sm:$0xff] %v2793
        %2850 = vst [vmem:[#allocation2 + $0xb8] sm:$0xff] %v2794
        %2851 = vst [vmem:[#allocation2 + $0xc0] sm:$0xff] %v2795
        %2852 = vst [vmem:[#allocation2 + $0xc8] sm:$0xff] %v2796
        %2853 = vst [vmem:[#allocation2 + $0xd0] sm:$0xff] %v2797
        %2854 = vst [vmem:[#allocation2 + $0xd8] sm:$0xff] %v2798
        %2855 = vst [vmem:[#allocation2 + $0xe0] sm:$0xff] %v2799
        %2856 = vst [vmem:[#allocation2 + $0xe8] sm:$0xff] %v2800
        %2857 = vst [vmem:[#allocation2 + $0xf0] sm:$0xff] %v2801
        %2858 = vst [vmem:[#allocation2 + $0xf8] sm:$0xff] %v2802
        %2859 = vst [vmem:[#allocation2 + $0x100] sm:$0xff] %v2803
        %2860 = vst [vmem:[#allocation2 + $0x108] sm:$0xff] %v2804
        %2861 = vst [vmem:[#allocation2 + $0x110] sm:$0xff] %v2805
        %2862 = vst [vmem:[#allocation2 + $0x118] sm:$0xff] %v2806
        %2863 = vst [vmem:[#allocation2 + $0x120] sm:$0xff] %v2807
        %2864 = vst [vmem:[#allocation2 + $0x128] sm:$0xff] %v2808
        %2865 = vst [vmem:[#allocation2 + $0x130] sm:$0xff] %v2809
        %2866 = vst [vmem:[#allocation2 + $0x138] sm:$0xff] %v2810
        %2867 = vst [vmem:[#allocation2 + $0x140] sm:$0xff] %v2811
        %2868 = vst [vmem:[#allocation2 + $0x148] sm:$0xff] %v2812
        %2869 = vst [vmem:[#allocation2 + $0x150] sm:$0xff] %v2813
        %2870 = vst [vmem:[#allocation2 + $0x158] sm:$0xff] %v2814
        %2871 = vst [vmem:[#allocation2 + $0x160] sm:$0xff] %v2815
        %2872 = vst [vmem:[#allocation2 + $0x168] sm:$0xff] %v2816
        %2873 = vst [vmem:[#allocation2 + $0x170] sm:$0xff] %v2817
        %2874 = vst [vmem:[#allocation2 + $0x178] sm:$0xff] %v2818
        %2875 = vst [vmem:[#allocation2 + $0x180] sm:$0xff] %v2819
        %2876 = vst [vmem:[#allocation2 + $0x188] sm:$0xff] %v2820
        %2877 = vst [vmem:[#allocation2 + $0x190] sm:$0xff] %v2821
        %2878 = vst [vmem:[#allocation2 + $0x198] sm:$0xff] %v2822
        %2879 = vst [vmem:[#allocation2 + $0x1a0] sm:$0xff] %v2823
        %2880 = vst [vmem:[#allocation2 + $0x1a8] sm:$0xff] %v2824
        %2881 = vst [vmem:[#allocation2 + $0x1b0] sm:$0xff] %v2825
        %2882 = vst [vmem:[#allocation2 + $0x1b8] sm:$0xff] %v2826
        %v2883 = vld [vmem:[%s2] sm:$0x3]
        %v2884 = vld [vmem:[#allocation2] sm:$0xff]
        %v2885 = vld [vmem:[#allocation2 + $0x8] sm:$0xff]
        %v2886 = vld [vmem:[#allocation2 + $0x10] sm:$0xff]
        %v2887 = vld [vmem:[#allocation2 + $0x18] sm:$0xff]
        %v2889 = vlaneseq
        %v2890 = vshrl.u32 %v2889, 7
        %v2891 = vsub.s32 0, %v2890
        %v2892 = vrot.slane %v2883, %v2891
        %v2893 = vlaneseq
        %v2894 = vshrl.u32 %v2893, 7
        %v2895 = vsub.s32 1, %v2894
        %v2896 = vrot.slane %v2883, %v2895
        %v2899 = vadd.f32 %v2884, %v2892
        %v2900 = vadd.f32 %v2885, %v2896
        %v2901 = vadd.f32 %v2886, %v2892
        %v2902 = vadd.f32 %v2887, %v2896
        %v2903 = vmax.f32 %v2899, 0.0
        %v2904 = vmax.f32 %v2900, 0.0
        %v2905 = vmax.f32 %v2901, 0.0
        %v2906 = vmax.f32 %v2902, 0.0
        %v2907 = vmax.f32 %v2903, %v2904
        %v2908 = vmax.f32 %v2905, %v2906
        %v2909 = vmax.f32 %v2907, %v2908
        %2910 = vst [vmem:[#allocation4] sm:$0xff] %v2909
        %v2911 = vld [vmem:[#allocation2 + $0x20] sm:$0xff]
        %v2912 = vld [vmem:[#allocation2 + $0x28] sm:$0xff]
        %v2913 = vld [vmem:[#allocation2 + $0x30] sm:$0xff]
        %v2914 = vld [vmem:[#allocation2 + $0x38] sm:$0xff]
        %v2915 = vadd.f32 %v2911, %v2892
        %v2916 = vadd.f32 %v2912, %v2896
        %v2917 = vadd.f32 %v2913, %v2892
        %v2918 = vadd.f32 %v2914, %v2896
        %v2919 = vmax.f32 %v2915, 0.0
        %v2920 = vmax.f32 %v2916, 0.0
        %v2921 = vmax.f32 %v2917, 0.0
        %v2922 = vmax.f32 %v2918, 0.0
        %v2923 = vmax.f32 %v2919, %v2920
        %v2924 = vmax.f32 %v2921, %v2922
        %v2925 = vmax.f32 %v2923, %v2924
        %2926 = vst [vmem:[#allocation4 + $0x8] sm:$0xff] %v2925
        %v2927 = vld [vmem:[#allocation2 + $0x40] sm:$0xff]
        %v2928 = vld [vmem:[#allocation2 + $0x48] sm:$0xff]
        %v2929 = vld [vmem:[#allocation2 + $0x50] sm:$0xff]
        %v2930 = vld [vmem:[#allocation2 + $0x58] sm:$0xff]
        %v2931 = vadd.f32 %v2927, %v2892
        %v2932 = vadd.f32 %v2928, %v2896
        %v2933 = vadd.f32 %v2929, %v2892
        %v2934 = vadd.f32 %v2930, %v2896
        %v2935 = vmax.f32 %v2931, 0.0
        %v2936 = vmax.f32 %v2932, 0.0
        %v2937 = vmax.f32 %v2933, 0.0
        %v2938 = vmax.f32 %v2934, 0.0
        %v2939 = vmax.f32 %v2935, %v2936
        %v2940 = vmax.f32 %v2937, %v2938
        %v2941 = vmax.f32 %v2939, %v2940
        %2942 = vst [vmem:[#allocation4 + $0x10] sm:$0xff] %v2941
        %v2943 = vld [vmem:[#allocation2 + $0x60] sm:$0xff]
        %v2944 = vld [vmem:[#allocation2 + $0x68] sm:$0xff]
        %v2945 = vld [vmem:[#allocation2 + $0x70] sm:$0xff]
        %v2946 = vld [vmem:[#allocation2 + $0x78] sm:$0xff]
        %v2947 = vadd.f32 %v2943, %v2892
        %v2948 = vadd.f32 %v2944, %v2896
        %v2949 = vadd.f32 %v2945, %v2892
        %v2950 = vadd.f32 %v2946, %v2896
        %v2951 = vmax.f32 %v2947, 0.0
        %v2952 = vmax.f32 %v2948, 0.0
        %v2953 = vmax.f32 %v2949, 0.0
        %v2954 = vmax.f32 %v2950, 0.0
        %v2955 = vmax.f32 %v2951, %v2952
        %v2956 = vmax.f32 %v2953, %v2954
        %v2957 = vmax.f32 %v2955, %v2956
        %2958 = vst [vmem:[#allocation4 + $0x18] sm:$0xff] %v2957
        %v2959 = vld [vmem:[#allocation2 + $0x80] sm:$0xff]
        %v2960 = vld [vmem:[#allocation2 + $0x88] sm:$0xff]
        %v2961 = vld [vmem:[#allocation2 + $0x90] sm:$0xff]
        %v2962 = vld [vmem:[#allocation2 + $0x98] sm:$0xff]
        %v2963 = vadd.f32 %v2959, %v2892
        %v2964 = vadd.f32 %v2960, %v2896
        %v2965 = vadd.f32 %v2961, %v2892
        %v2966 = vadd.f32 %v2962, %v2896
        %v2967 = vmax.f32 %v2963, 0.0
        %v2968 = vmax.f32 %v2964, 0.0
        %v2969 = vmax.f32 %v2965, 0.0
        %v2970 = vmax.f32 %v2966, 0.0
        %v2971 = vmax.f32 %v2967, %v2968
        %v2972 = vmax.f32 %v2969, %v2970
        %v2973 = vmax.f32 %v2971, %v2972
        %2974 = vst [vmem:[#allocation4 + $0x20] sm:$0xff] %v2973
        %v2975 = vld [vmem:[#allocation2 + $0xa0] sm:$0xff]
        %v2976 = vld [vmem:[#allocation2 + $0xa8] sm:$0xff]
        %v2977 = vld [vmem:[#allocation2 + $0xb0] sm:$0xff]
        %v2978 = vld [vmem:[#allocation2 + $0xb8] sm:$0xff]
        %v2979 = vadd.f32 %v2975, %v2892
        %v2980 = vadd.f32 %v2976, %v2896
        %v2981 = vadd.f32 %v2977, %v2892
        %v2982 = vadd.f32 %v2978, %v2896
        %v2983 = vmax.f32 %v2979, 0.0
        %v2984 = vmax.f32 %v2980, 0.0
        %v2985 = vmax.f32 %v2981, 0.0
        %v2986 = vmax.f32 %v2982, 0.0
        %v2987 = vmax.f32 %v2983, %v2984
        %v2988 = vmax.f32 %v2985, %v2986
        %v2989 = vmax.f32 %v2987, %v2988
        %2990 = vst [vmem:[#allocation4 + $0x28] sm:$0xff] %v2989
        %v2991 = vld [vmem:[#allocation2 + $0xc0] sm:$0xff]
        %v2992 = vld [vmem:[#allocation2 + $0xc8] sm:$0xff]
        %v2993 = vld [vmem:[#allocation2 + $0xd0] sm:$0xff]
        %v2994 = vld [vmem:[#allocation2 + $0xd8] sm:$0xff]
        %v2995 = vadd.f32 %v2991, %v2892
        %v2996 = vadd.f32 %v2992, %v2896
        %v2997 = vadd.f32 %v2993, %v2892
        %v2998 = vadd.f32 %v2994, %v2896
        %v2999 = vmax.f32 %v2995, 0.0
        %v3000 = vmax.f32 %v2996, 0.0
        %v3001 = vmax.f32 %v2997, 0.0
        %v3002 = vmax.f32 %v2998, 0.0
        %v3003 = vmax.f32 %v2999, %v3000
        %v3004 = vmax.f32 %v3001, %v3002
        %v3005 = vmax.f32 %v3003, %v3004
        %3006 = vst [vmem:[#allocation4 + $0x30] sm:$0xff] %v3005
        %v3007 = vld [vmem:[#allocation2 + $0xe0] sm:$0xff]
        %v3008 = vld [vmem:[#allocation2 + $0xe8] sm:$0xff]
        %v3009 = vld [vmem:[#allocation2 + $0xf0] sm:$0xff]
        %v3010 = vld [vmem:[#allocation2 + $0xf8] sm:$0xff]
        %v3011 = vadd.f32 %v3007, %v2892
        %v3012 = vadd.f32 %v3008, %v2896
        %v3013 = vadd.f32 %v3009, %v2892
        %v3014 = vadd.f32 %v3010, %v2896
        %v3015 = vmax.f32 %v3011, 0.0
        %v3016 = vmax.f32 %v3012, 0.0
        %v3017 = vmax.f32 %v3013, 0.0
        %v3018 = vmax.f32 %v3014, 0.0
        %v3019 = vmax.f32 %v3015, %v3016
        %v3020 = vmax.f32 %v3017, %v3018
        %v3021 = vmax.f32 %v3019, %v3020
        %3022 = vst [vmem:[#allocation4 + $0x38] sm:$0xff] %v3021
        %v3023 = vld [vmem:[#allocation2 + $0x100] sm:$0xff]
        %v3024 = vld [vmem:[#allocation2 + $0x108] sm:$0xff]
        %v3025 = vld [vmem:[#allocation2 + $0x110] sm:$0xff]
        %v3026 = vld [vmem:[#allocation2 + $0x118] sm:$0xff]
        %v3027 = vadd.f32 %v3023, %v2892
        %v3028 = vadd.f32 %v3024, %v2896
        %v3029 = vadd.f32 %v3025, %v2892
        %v3030 = vadd.f32 %v3026, %v2896
        %v3031 = vmax.f32 %v3027, 0.0
        %v3032 = vmax.f32 %v3028, 0.0
        %v3033 = vmax.f32 %v3029, 0.0
        %v3034 = vmax.f32 %v3030, 0.0
        %v3035 = vmax.f32 %v3031, %v3032
        %v3036 = vmax.f32 %v3033, %v3034
        %v3037 = vmax.f32 %v3035, %v3036
        %3038 = vst [vmem:[#allocation4 + $0x40] sm:$0xff] %v3037
        %v3039 = vld [vmem:[#allocation2 + $0x120] sm:$0xff]
        %v3040 = vld [vmem:[#allocation2 + $0x128] sm:$0xff]
        %v3041 = vld [vmem:[#allocation2 + $0x130] sm:$0xff]
        %v3042 = vld [vmem:[#allocation2 + $0x138] sm:$0xff]
        %v3043 = vadd.f32 %v3039, %v2892
        %v3044 = vadd.f32 %v3040, %v2896
        %v3045 = vadd.f32 %v3041, %v2892
        %v3046 = vadd.f32 %v3042, %v2896
        %v3047 = vmax.f32 %v3043, 0.0
        %v3048 = vmax.f32 %v3044, 0.0
        %v3049 = vmax.f32 %v3045, 0.0
        %v3050 = vmax.f32 %v3046, 0.0
        %v3051 = vmax.f32 %v3047, %v3048
        %v3052 = vmax.f32 %v3049, %v3050
        %v3053 = vmax.f32 %v3051, %v3052
        %3054 = vst [vmem:[#allocation4 + $0x48] sm:$0xff] %v3053
        %v3055 = vld [vmem:[#allocation2 + $0x140] sm:$0xff]
        %v3056 = vld [vmem:[#allocation2 + $0x148] sm:$0xff]
        %v3057 = vld [vmem:[#allocation2 + $0x150] sm:$0xff]
        %v3058 = vld [vmem:[#allocation2 + $0x158] sm:$0xff]
        %v3059 = vadd.f32 %v3055, %v2892
        %v3060 = vadd.f32 %v3056, %v2896
        %v3061 = vadd.f32 %v3057, %v2892
        %v3062 = vadd.f32 %v3058, %v2896
        %v3063 = vmax.f32 %v3059, 0.0
        %v3064 = vmax.f32 %v3060, 0.0
        %v3065 = vmax.f32 %v3061, 0.0
        %v3066 = vmax.f32 %v3062, 0.0
        %v3067 = vmax.f32 %v3063, %v3064
        %v3068 = vmax.f32 %v3065, %v3066
        %v3069 = vmax.f32 %v3067, %v3068
        %3070 = vst [vmem:[#allocation4 + $0x50] sm:$0xff] %v3069
        %v3071 = vld [vmem:[#allocation2 + $0x160] sm:$0xff]
        %v3072 = vld [vmem:[#allocation2 + $0x168] sm:$0xff]
        %v3073 = vld [vmem:[#allocation2 + $0x170] sm:$0xff]
        %v3074 = vld [vmem:[#allocation2 + $0x178] sm:$0xff]
        %v3075 = vadd.f32 %v3071, %v2892
        %v3076 = vadd.f32 %v3072, %v2896
        %v3077 = vadd.f32 %v3073, %v2892
        %v3078 = vadd.f32 %v3074, %v2896
        %v3079 = vmax.f32 %v3075, 0.0
        %v3080 = vmax.f32 %v3076, 0.0
        %v3081 = vmax.f32 %v3077, 0.0
        %v3082 = vmax.f32 %v3078, 0.0
        %v3083 = vmax.f32 %v3079, %v3080
        %v3084 = vmax.f32 %v3081, %v3082
        %v3085 = vmax.f32 %v3083, %v3084
        %3086 = vst [vmem:[#allocation4 + $0x58] sm:$0xff] %v3085
        %v3087 = vld [vmem:[#allocation2 + $0x180] sm:$0xff]
        %v3088 = vld [vmem:[#allocation2 + $0x188] sm:$0xff]
        %v3089 = vld [vmem:[#allocation2 + $0x190] sm:$0xff]
        %v3090 = vld [vmem:[#allocation2 + $0x198] sm:$0xff]
        %v3091 = vadd.f32 %v3087, %v2892
        %v3092 = vadd.f32 %v3088, %v2896
        %v3093 = vadd.f32 %v3089, %v2892
        %v3094 = vadd.f32 %v3090, %v2896
        %v3095 = vmax.f32 %v3091, 0.0
        %v3096 = vmax.f32 %v3092, 0.0
        %v3097 = vmax.f32 %v3093, 0.0
        %v3098 = vmax.f32 %v3094, 0.0
        %v3099 = vmax.f32 %v3095, %v3096
        %v3100 = vmax.f32 %v3097, %v3098
        %v3101 = vmax.f32 %v3099, %v3100
        %3102 = vst [vmem:[#allocation4 + $0x60] sm:$0xff] %v3101
        %v3103 = vld [vmem:[#allocation2 + $0x1a0] sm:$0xff]
        %v3104 = vld [vmem:[#allocation2 + $0x1a8] sm:$0xff]
        %v3105 = vld [vmem:[#allocation2 + $0x1b0] sm:$0xff]
        %v3106 = vld [vmem:[#allocation2 + $0x1b8] sm:$0xff]
        %v3107 = vadd.f32 %v3103, %v2892
        %v3108 = vadd.f32 %v3104, %v2896
        %v3109 = vadd.f32 %v3105, %v2892
        %v3110 = vadd.f32 %v3106, %v2896
        %v3111 = vmax.f32 %v3107, 0.0
        %v3112 = vmax.f32 %v3108, 0.0
        %v3113 = vmax.f32 %v3109, 0.0
        %v3114 = vmax.f32 %v3110, 0.0
        %v3115 = vmax.f32 %v3111, %v3112
        %v3116 = vmax.f32 %v3113, %v3114
        %v3117 = vmax.f32 %v3115, %v3116
        %3118 = vst [vmem:[#allocation4 + $0x68] sm:$0xff] %v3117
        %v3119 = vld [vmem:[#allocation4] sm:$0xff]
        %v3120 = vld [vmem:[#allocation4 + $0x8] sm:$0xff]
        %v3121 = vld [vmem:[#allocation4 + $0x10] sm:$0xff]
        %v3122 = vld [vmem:[#allocation4 + $0x18] sm:$0xff]
        %v3123 = vld [vmem:[#allocation4 + $0x20] sm:$0xff]
        %v3124 = vld [vmem:[#allocation4 + $0x28] sm:$0xff]
        %v3125 = vld [vmem:[#allocation4 + $0x30] sm:$0xff]
        %v3126 = vld [vmem:[#allocation4 + $0x38] sm:$0xff]
        %v3127 = vld [vmem:[#allocation4 + $0x40] sm:$0xff]
        %v3128 = vld [vmem:[#allocation4 + $0x48] sm:$0xff]
        %v3129 = vld [vmem:[%s3] sm:$0xff]
        %v3130 = vld [vmem:[%s3 + $0x8] sm:$0xff]
        %v3131 = vld [vmem:[%s3 + $0x10] sm:$0xff]
        %v3132 = vld [vmem:[%s3 + $0x18] sm:$0xff]
        %v3133 = vld [vmem:[%s3 + $0x20] sm:$0xff]
        %v3134 = vld [vmem:[%s3 + $0x28] sm:$0xff]
        %v3135 = vld [vmem:[%s3 + $0x30] sm:$0xff]
        %v3136 = vld [vmem:[%s3 + $0x38] sm:$0xff]
        %v3137 = vld [vmem:[%s3 + $0x40] sm:$0xff]
        %v3138 = vld [vmem:[%s3 + $0x48] sm:$0xff]
        %v3139 = vld [vmem:[%s3 + $0x50] sm:$0xff]
        %v3140 = vld [vmem:[%s3 + $0x58] sm:$0xff]
        %v3141 = vld [vmem:[%s3 + $0x60] sm:$0xff]
        %v3142 = vld [vmem:[%s3 + $0x68] sm:$0xff]
        %v3143 = vld [vmem:[%s3 + $0x70] sm:$0xff]
        %v3144 = vld [vmem:[%s3 + $0x78] sm:$0xff]
        %v3145 = vld [vmem:[%s3 + $0x80] sm:$0xff]
        %v3146 = vld [vmem:[%s3 + $0x88] sm:$0xff]
        %v3147 = vld [vmem:[%s3 + $0x90] sm:$0xff]
        %v3148 = vld [vmem:[%s3 + $0x98] sm:$0xff]
        %v3149 = vld [vmem:[%s3 + $0xa0] sm:$0xff]
        %v3150 = vld [vmem:[%s3 + $0xa8] sm:$0xff]
        %v3151 = vld [vmem:[%s3 + $0xb0] sm:$0xff]
        %v3152 = vld [vmem:[%s3 + $0xb8] sm:$0xff]
        %v3153 = vld [vmem:[%s3 + $0xc0] sm:$0xff]
        %v3154 = vld [vmem:[%s3 + $0xc8] sm:$0xff]
        %v3155 = vld [vmem:[%s3 + $0xd0] sm:$0xff]
        %v3156 = vld [vmem:[%s3 + $0xd8] sm:$0xff]
        %v3157 = vld [vmem:[%s3 + $0xe0] sm:$0xff]
        %v3158 = vld [vmem:[%s3 + $0xe8] sm:$0xff]
        %v3159 = vld [vmem:[%s3 + $0xf0] sm:$0xff]
        %v3160 = vld [vmem:[%s3 + $0xf8] sm:$0xff]
        %3161 = vmatprep.subr.mxu0 %v3130
        %3162 = vmatpush1.msra.mxu0 %v3129
        %3163 = vmatprep.subr.mxu0 %v3132
        %3164 = vmatpush1.msra.mxu0 %v3131
        %3165 = vmatprep.subr.mxu0 %v3134
        %3166 = vmatpush1.msra.mxu0 %v3133
        %3167 = vmatprep.subr.mxu0 %v3136
        %3168 = vmatpush1.msra.mxu0 %v3135
        %3169 = vmatprep.subr.mxu0 %v3138
        %3170 = vmatpush1.msra.mxu0 %v3137
        %3171 = vmatprep.subr.mxu0 %v3140
        %3172 = vmatpush1.msra.mxu0 %v3139
        %3173 = vmatprep.subr.mxu0 %v3142
        %3174 = vmatpush1.msra.mxu0 %v3141
        %3175 = vmatprep.subr.mxu0 %v3144
        %3176 = vmatpush1.msra.mxu0 %v3143
        %3177 = vmatprep.subr.mxu0 %v3146
        %3178 = vmatpush1.msra.mxu0 %v3145
        %3179 = vmatprep.subr.mxu0 %v3148
        %3180 = vmatpush1.msra.mxu0 %v3147
        %3181 = vmatprep.subr.mxu0 %v3150
        %3182 = vmatpush1.msra.mxu0 %v3149
        %3183 = vmatprep.subr.mxu0 %v3152
        %3184 = vmatpush1.msra.mxu0 %v3151
        %3185 = vmatprep.subr.mxu0 %v3154
        %3186 = vmatpush1.msra.mxu0 %v3153
        %3187 = vmatprep.subr.mxu0 %v3156
        %3188 = vmatpush1.msra.mxu0 %v3155
        %3189 = vmatprep.subr.mxu0 %v3158
        %3190 = vmatpush1.msra.mxu0 %v3157
        %3191 = vmatprep.subr.mxu0 %v3160
        %3192 = vmatpush1.msra.mxu0 %v3159
        %3193 = vmatprep.subr.mxu0 0.0
        %3194 = vmatpush1.msra.mxu0 0.0
        %3195 = vmatprep.subr.mxu0 0.0
        %3196 = vmatpush1.msra.mxu0 0.0
        %3197 = vmatprep.subr.mxu0 0.0
        %3198 = vmatpush1.msra.mxu0 0.0
        %3199 = vmatprep.subr.mxu0 0.0
        %3200 = vmatpush1.msra.mxu0 0.0
        %3201 = vmatprep.subr.mxu0 0.0
        %3202 = vmatpush1.msra.mxu0 0.0
        %3203 = vmatprep.subr.mxu0 0.0
        %3204 = vmatpush1.msra.mxu0 0.0
        %3205 = vmatprep.subr.mxu0 0.0
        %3206 = vmatpush1.msra.mxu0 0.0
        %3207 = vmatprep.subr.mxu0 0.0
        %3208 = vmatpush1.msra.mxu0 0.0
        %3209 = vmatprep.subr.mxu0 0.0
        %3210 = vmatpush1.msra.mxu0 0.0
        %3211 = vmatprep.subr.mxu0 0.0
        %3212 = vmatpush1.msra.mxu0 0.0
        %3213 = vmatprep.subr.mxu0 0.0
        %3214 = vmatpush1.msra.mxu0 0.0
        %3215 = vmatprep.subr.mxu0 0.0
        %3216 = vmatpush1.msra.mxu0 0.0
        %3217 = vmatprep.subr.mxu0 0.0
        %3218 = vmatpush1.msra.mxu0 0.0
        %3219 = vmatprep.subr.mxu0 0.0
        %3220 = vmatpush1.msra.mxu0 0.0
        %3221 = vmatprep.subr.mxu0 0.0
        %3222 = vmatpush1.msra.mxu0 0.0
        %3223 = vmatprep.subr.mxu0 0.0
        %3224 = vmatpush1.msra.mxu0 0.0
        %3225 = vmatprep.mubr.f32.mxu0 0.0
        %3226 = vmatmul.mubr.f32.gmra.mrb[0].mxu0 %v3119
        %v3227 = vpop.f32.mrb[0].mxu0
        %v3228 = vadd.f32 0.0, %v3227
        %v3229 = vpop.f32.mrb[0].mxu0
        %v3230 = vadd.f32 0.0, %v3229
        %3231 = vmatprep.mubr.f32.mxu0 0.0
        %3232 = vmatmul.mubr.f32.gmra.mrb[0].mxu0 %v3120
        %v3233 = vpop.f32.mrb[0].mxu0
        %v3234 = vadd.f32 0.0, %v3233
        %v3235 = vpop.f32.mrb[0].mxu0
        %v3236 = vadd.f32 0.0, %v3235
        %3237 = vmatprep.mubr.f32.mxu0 0.0
        %3238 = vmatmul.mubr.f32.gmra.mrb[0].mxu0 %v3121
        %v3239 = vpop.f32.mrb[0].mxu0
        %v3240 = vadd.f32 0.0, %v3239
        %v3241 = vpop.f32.mrb[0].mxu0
        %v3242 = vadd.f32 0.0, %v3241
        %3243 = vmatprep.mubr.f32.mxu0 0.0
        %3244 = vmatmul.mubr.f32.gmra.mrb[0].mxu0 %v3122
        %v3245 = vpop.f32.mrb[0].mxu0
        %v3246 = vadd.f32 0.0, %v3245
        %v3247 = vpop.f32.mrb[0].mxu0
        %v3248 = vadd.f32 0.0, %v3247
        %3249 = vmatprep.mubr.f32.mxu0 0.0
        %3250 = vmatmul.mubr.f32.gmra.mrb[0].mxu0 %v3123
        %v3251 = vpop.f32.mrb[0].mxu0
        %v3252 = vadd.f32 0.0, %v3251
        %v3253 = vpop.f32.mrb[0].mxu0
        %v3254 = vadd.f32 0.0, %v3253
        %3255 = vmatprep.mubr.f32.mxu0 0.0
        %3256 = vmatmul.mubr.f32.gmra.mrb[0].mxu0 %v3124
        %v3257 = vpop.f32.mrb[0].mxu0
        %v3258 = vadd.f32 0.0, %v3257
        %v3259 = vpop.f32.mrb[0].mxu0
        %v3260 = vadd.f32 0.0, %v3259
        %3261 = vmatprep.mubr.f32.mxu0 0.0
        %3262 = vmatmul.mubr.f32.gmra.mrb[0].mxu0 %v3125
        %v3263 = vpop.f32.mrb[0].mxu0
        %v3264 = vadd.f32 0.0, %v3263
        %v3265 = vpop.f32.mrb[0].mxu0
        %v3266 = vadd.f32 0.0, %v3265
        %3267 = vmatprep.mubr.f32.mxu0 0.0
        %3268 = vmatmul.mubr.f32.gmra.mrb[0].mxu0 %v3126
        %v3269 = vpop.f32.mrb[0].mxu0
        %v3270 = vadd.f32 0.0, %v3269
        %v3271 = vpop.f32.mrb[0].mxu0
        %v3272 = vadd.f32 0.0, %v3271
        %3273 = vmatprep.mubr.f32.mxu0 0.0
        %3274 = vmatmul.mubr.f32.gmra.mrb[0].mxu0 %v3127
        %v3275 = vpop.f32.mrb[0].mxu0
        %v3276 = vadd.f32 0.0, %v3275
        %v3277 = vpop.f32.mrb[0].mxu0
        %v3278 = vadd.f32 0.0, %v3277
        %3279 = vmatprep.mubr.f32.mxu0 0.0
        %3280 = vmatmul.mubr.f32.gmra.mrb[0].mxu0 %v3128
        %v3281 = vpop.f32.mrb[0].mxu0
        %v3282 = vadd.f32 0.0, %v3281
        %v3283 = vpop.f32.mrb[0].mxu0
        %v3284 = vadd.f32 0.0, %v3283
        %3285 = vdwg.mxu0
        %3286 = vst [vmem:[#allocation3] sm:$0xff] %v3228
        %3287 = vst [vmem:[#allocation3 + $0x8] sm:$0xff] %v3230
        %3288 = vst [vmem:[#allocation3 + $0x10] sm:$0xff] %v3234
        %3289 = vst [vmem:[#allocation3 + $0x18] sm:$0xff] %v3236
        %3290 = vst [vmem:[#allocation3 + $0x20] sm:$0xff] %v3240
        %3291 = vst [vmem:[#allocation3 + $0x28] sm:$0xff] %v3242
        %3292 = vst [vmem:[#allocation3 + $0x30] sm:$0xff] %v3246
        %3293 = vst [vmem:[#allocation3 + $0x38] sm:$0xff] %v3248
        %3294 = vst [vmem:[#allocation3 + $0x40] sm:$0xff] %v3252
        %3295 = vst [vmem:[#allocation3 + $0x48] sm:$0xff] %v3254
        %3296 = vst [vmem:[#allocation3 + $0x50] sm:$0xff] %v3258
        %3297 = vst [vmem:[#allocation3 + $0x58] sm:$0xff] %v3260
        %3298 = vst [vmem:[#allocation3 + $0x60] sm:$0xff] %v3264
        %3299 = vst [vmem:[#allocation3 + $0x68] sm:$0xff] %v3266
        %3300 = vst [vmem:[#allocation3 + $0x70] sm:$0xff] %v3270
        %3301 = vst [vmem:[#allocation3 + $0x78] sm:$0xff] %v3272
        %3302 = vst [vmem:[#allocation3 + $0x80] sm:$0xff] %v3276
        %3303 = vst [vmem:[#allocation3 + $0x88] sm:$0xff] %v3278
        %3304 = vst [vmem:[#allocation3 + $0x90] sm:$0xff] %v3282
        %3305 = vst [vmem:[#allocation3 + $0x98] sm:$0xff] %v3284
        %v3306 = vld [vmem:[#allocation4 + $0x8] sm:$0xff]
        %v3307 = vld [vmem:[#allocation4 + $0x10] sm:$0xff]
        %v3308 = vld [vmem:[#allocation4 + $0x18] sm:$0xff]
        %v3309 = vld [vmem:[#allocation4 + $0x20] sm:$0xff]
        %v3310 = vld [vmem:[#allocation4 + $0x28] sm:$0xff]
        %v3311 = vld [vmem:[#allocation4 + $0x30] sm:$0xff]
        %v3312 = vld [vmem:[#allocation4 + $0x38] sm:$0xff]
        %v3313 = vld [vmem:[#allocation4 + $0x40] sm:$0xff]
        %v3314 = vld [vmem:[#allocation4 + $0x48] sm:$0xff]
        %v3315 = vld [vmem:[#allocation4 + $0x50] sm:$0xff]
        %s3316 = scalar_lea.vmem %s3, 256
        %v3317 = vld [vmem:[%s3316] sm:$0xff]
        %v3318 = vld [vmem:[%s3316 + $0x8] sm:$0xff]
        %v3319 = vld [vmem:[%s3316 + $0x10] sm:$0xff]
        %v3320 = vld [vmem:[%s3316 + $0x18] sm:$0xff]
        %v3321 = vld [vmem:[%s3316 + $0x20] sm:$0xff]
        %v3322 = vld [vmem:[%s3316 + $0x28] sm:$0xff]
        %v3323 = vld [vmem:[%s3316 + $0x30] sm:$0xff]
        %v3324 = vld [vmem:[%s3316 + $0x38] sm:$0xff]
        %v3325 = vld [vmem:[%s3316 + $0x40] sm:$0xff]
        %v3326 = vld [vmem:[%s3316 + $0x48] sm:$0xff]
        %v3327 = vld [vmem:[%s3316 + $0x50] sm:$0xff]
        %v3328 = vld [vmem:[%s3316 + $0x58] sm:$0xff]
        %v3329 = vld [vmem:[%s3316 + $0x60] sm:$0xff]
        %v3330 = vld [vmem:[%s3316 + $0x68] sm:$0xff]
        %v3331 = vld [vmem:[%s3316 + $0x70] sm:$0xff]
        %v3332 = vld [vmem:[%s3316 + $0x78] sm:$0xff]
        %v3333 = vld [vmem:[%s3316 + $0x80] sm:$0xff]
        %v3334 = vld [vmem:[%s3316 + $0x88] sm:$0xff]
        %v3335 = vld [vmem:[%s3316 + $0x90] sm:$0xff]
        %v3336 = vld [vmem:[%s3316 + $0x98] sm:$0xff]
        %v3337 = vld [vmem:[%s3316 + $0xa0] sm:$0xff]
        %v3338 = vld [vmem:[%s3316 + $0xa8] sm:$0xff]
        %v3339 = vld [vmem:[%s3316 + $0xb0] sm:$0xff]
        %v3340 = vld [vmem:[%s3316 + $0xb8] sm:$0xff]
        %v3341 = vld [vmem:[%s3316 + $0xc0] sm:$0xff]
        %v3342 = vld [vmem:[%s3316 + $0xc8] sm:$0xff]
        %v3343 = vld [vmem:[%s3316 + $0xd0] sm:$0xff]
        %v3344 = vld [vmem:[%s3316 + $0xd8] sm:$0xff]
        %v3345 = vld [vmem:[%s3316 + $0xe0] sm:$0xff]
        %v3346 = vld [vmem:[%s3316 + $0xe8] sm:$0xff]
        %v3347 = vld [vmem:[%s3316 + $0xf0] sm:$0xff]
        %v3348 = vld [vmem:[%s3316 + $0xf8] sm:$0xff]
        %3349 = vmatprep.subr.mxu0 %v3318
        %3350 = vmatpush1.msra.mxu0 %v3317
        %3351 = vmatprep.subr.mxu0 %v3320
        %3352 = vmatpush1.msra.mxu0 %v3319
        %3353 = vmatprep.subr.mxu0 %v3322
        %3354 = vmatpush1.msra.mxu0 %v3321
        %3355 = vmatprep.subr.mxu0 %v3324
        %3356 = vmatpush1.msra.mxu0 %v3323
        %3357 = vmatprep.subr.mxu0 %v3326
        %3358 = vmatpush1.msra.mxu0 %v3325
        %3359 = vmatprep.subr.mxu0 %v3328
        %3360 = vmatpush1.msra.mxu0 %v3327
        %3361 = vmatprep.subr.mxu0 %v3330
        %3362 = vmatpush1.msra.mxu0 %v3329
        %3363 = vmatprep.subr.mxu0 %v3332
        %3364 = vmatpush1.msra.mxu0 %v3331
        %3365 = vmatprep.subr.mxu0 %v3334
        %3366 = vmatpush1.msra.mxu0 %v3333
        %3367 = vmatprep.subr.mxu0 %v3336
        %3368 = vmatpush1.msra.mxu0 %v3335
        %3369 = vmatprep.subr.mxu0 %v3338
        %3370 = vmatpush1.msra.mxu0 %v3337
        %3371 = vmatprep.subr.mxu0 %v3340
        %3372 = vmatpush1.msra.mxu0 %v3339
        %3373 = vmatprep.subr.mxu0 %v3342
        %3374 = vmatpush1.msra.mxu0 %v3341
        %3375 = vmatprep.subr.mxu0 %v3344
        %3376 = vmatpush1.msra.mxu0 %v3343
        %3377 = vmatprep.subr.mxu0 %v3346
        %3378 = vmatpush1.msra.mxu0 %v3345
        %3379 = vmatprep.subr.mxu0 %v3348
        %3380 = vmatpush1.msra.mxu0 %v3347
        %3381 = vmatprep.subr.mxu0 0.0
        %3382 = vmatpush1.msra.mxu0 0.0
        %3383 = vmatprep.subr.mxu0 0.0
        %3384 = vmatpush1.msra.mxu0 0.0
        %3385 = vmatprep.subr.mxu0 0.0
        %3386 = vmatpush1.msra.mxu0 0.0
        %3387 = vmatprep.subr.mxu0 0.0
        %3388 = vmatpush1.msra.mxu0 0.0
        %3389 = vmatprep.subr.mxu0 0.0
        %3390 = vmatpush1.msra.mxu0 0.0
        %3391 = vmatprep.subr.mxu0 0.0
        %3392 = vmatpush1.msra.mxu0 0.0
        %3393 = vmatprep.subr.mxu0 0.0
        %3394 = vmatpush1.msra.mxu0 0.0
        %3395 = vmatprep.subr.mxu0 0.0
        %3396 = vmatpush1.msra.mxu0 0.0
        %3397 = vmatprep.subr.mxu0 0.0
        %3398 = vmatpush1.msra.mxu0 0.0
        %3399 = vmatprep.subr.mxu0 0.0
        %3400 = vmatpush1.msra.mxu0 0.0
        %3401 = vmatprep.subr.mxu0 0.0
        %3402 = vmatpush1.msra.mxu0 0.0
        %3403 = vmatprep.subr.mxu0 0.0
        %3404 = vmatpush1.msra.mxu0 0.0
        %3405 = vmatprep.subr.mxu0 0.0
        %3406 = vmatpush1.msra.mxu0 0.0
        %3407 = vmatprep.subr.mxu0 0.0
        %3408 = vmatpush1.msra.mxu0 0.0
        %3409 = vmatprep.subr.mxu0 0.0
        %3410 = vmatpush1.msra.mxu0 0.0
        %3411 = vmatprep.subr.mxu0 0.0
        %3412 = vmatpush1.msra.mxu0 0.0
        %3413 = vmatprep.mubr.f32.mxu0 0.0
        %3414 = vmatmul.mubr.f32.gmra.mrb[0].mxu0 %v3306
        %v3415 = vpop.f32.mrb[0].mxu0
        %v3416 = vadd.f32 0.0, %v3415
        %v3417 = vpop.f32.mrb[0].mxu0
        %v3418 = vadd.f32 0.0, %v3417
        %3419 = vmatprep.mubr.f32.mxu0 0.0
        %3420 = vmatmul.mubr.f32.gmra.mrb[0].mxu0 %v3307
        %v3421 = vpop.f32.mrb[0].mxu0
        %v3422 = vadd.f32 0.0, %v3421
        %v3423 = vpop.f32.mrb[0].mxu0
        %v3424 = vadd.f32 0.0, %v3423
        %3425 = vmatprep.mubr.f32.mxu0 0.0
        %3426 = vmatmul.mubr.f32.gmra.mrb[0].mxu0 %v3308
        %v3427 = vpop.f32.mrb[0].mxu0
        %v3428 = vadd.f32 0.0, %v3427
        %v3429 = vpop.f32.mrb[0].mxu0
        %v3430 = vadd.f32 0.0, %v3429
        %3431 = vmatprep.mubr.f32.mxu0 0.0
        %3432 = vmatmul.mubr.f32.gmra.mrb[0].mxu0 %v3309
        %v3433 = vpop.f32.mrb[0].mxu0
        %v3434 = vadd.f32 0.0, %v3433
        %v3435 = vpop.f32.mrb[0].mxu0
        %v3436 = vadd.f32 0.0, %v3435
        %3437 = vmatprep.mubr.f32.mxu0 0.0
        %3438 = vmatmul.mubr.f32.gmra.mrb[0].mxu0 %v3310
        %v3439 = vpop.f32.mrb[0].mxu0
        %v3440 = vadd.f32 0.0, %v3439
        %v3441 = vpop.f32.mrb[0].mxu0
        %v3442 = vadd.f32 0.0, %v3441
        %3443 = vmatprep.mubr.f32.mxu0 0.0
        %3444 = vmatmul.mubr.f32.gmra.mrb[0].mxu0 %v3311
        %v3445 = vpop.f32.mrb[0].mxu0
        %v3446 = vadd.f32 0.0, %v3445
        %v3447 = vpop.f32.mrb[0].mxu0
        %v3448 = vadd.f32 0.0, %v3447
        %3449 = vmatprep.mubr.f32.mxu0 0.0
        %3450 = vmatmul.mubr.f32.gmra.mrb[0].mxu0 %v3312
        %v3451 = vpop.f32.mrb[0].mxu0
        %v3452 = vadd.f32 0.0, %v3451
        %v3453 = vpop.f32.mrb[0].mxu0
        %v3454 = vadd.f32 0.0, %v3453
        %3455 = vmatprep.mubr.f32.mxu0 0.0
        %3456 = vmatmul.mubr.f32.gmra.mrb[0].mxu0 %v3313
        %v3457 = vpop.f32.mrb[0].mxu0
        %v3458 = vadd.f32 0.0, %v3457
        %v3459 = vpop.f32.mrb[0].mxu0
        %v3460 = vadd.f32 0.0, %v3459
        %3461 = vmatprep.mubr.f32.mxu0 0.0
        %3462 = vmatmul.mubr.f32.gmra.mrb[0].mxu0 %v3314
        %v3463 = vpop.f32.mrb[0].mxu0
        %v3464 = vadd.f32 0.0, %v3463
        %v3465 = vpop.f32.mrb[0].mxu0
        %v3466 = vadd.f32 0.0, %v3465
        %3467 = vmatprep.mubr.f32.mxu0 0.0
        %3468 = vmatmul.mubr.f32.gmra.mrb[0].mxu0 %v3315
        %v3469 = vpop.f32.mrb[0].mxu0
        %v3470 = vadd.f32 0.0, %v3469
        %v3471 = vpop.f32.mrb[0].mxu0
        %v3472 = vadd.f32 0.0, %v3471
        %3473 = vdwg.mxu0
        %v3474 = vld [vmem:[#allocation3] sm:$0xff]
        %v3475 = vld [vmem:[#allocation3 + $0x8] sm:$0xff]
        %v3476 = vld [vmem:[#allocation3 + $0x10] sm:$0xff]
        %v3477 = vld [vmem:[#allocation3 + $0x18] sm:$0xff]
        %v3478 = vld [vmem:[#allocation3 + $0x20] sm:$0xff]
        %v3479 = vld [vmem:[#allocation3 + $0x28] sm:$0xff]
        %v3480 = vld [vmem:[#allocation3 + $0x30] sm:$0xff]
        %v3481 = vld [vmem:[#allocation3 + $0x38] sm:$0xff]
        %v3482 = vld [vmem:[#allocation3 + $0x40] sm:$0xff]
        %v3483 = vld [vmem:[#allocation3 + $0x48] sm:$0xff]
        %v3484 = vld [vmem:[#allocation3 + $0x50] sm:$0xff]
        %v3485 = vld [vmem:[#allocation3 + $0x58] sm:$0xff]
        %v3486 = vld [vmem:[#allocation3 + $0x60] sm:$0xff]
        %v3487 = vld [vmem:[#allocation3 + $0x68] sm:$0xff]
        %v3488 = vld [vmem:[#allocation3 + $0x70] sm:$0xff]
        %v3489 = vld [vmem:[#allocation3 + $0x78] sm:$0xff]
        %v3490 = vld [vmem:[#allocation3 + $0x80] sm:$0xff]
        %v3491 = vld [vmem:[#allocation3 + $0x88] sm:$0xff]
        %v3492 = vld [vmem:[#allocation3 + $0x90] sm:$0xff]
        %v3493 = vld [vmem:[#allocation3 + $0x98] sm:$0xff]
        %v3494 = vadd.f32 %v3474, %v3416
        %v3495 = vadd.f32 %v3475, %v3418
        %v3496 = vadd.f32 %v3476, %v3422
        %v3497 = vadd.f32 %v3477, %v3424
        %v3498 = vadd.f32 %v3478, %v3428
        %v3499 = vadd.f32 %v3479, %v3430
        %v3500 = vadd.f32 %v3480, %v3434
        %v3501 = vadd.f32 %v3481, %v3436
        %v3502 = vadd.f32 %v3482, %v3440
        %v3503 = vadd.f32 %v3483, %v3442
        %v3504 = vadd.f32 %v3484, %v3446
        %v3505 = vadd.f32 %v3485, %v3448
        %v3506 = vadd.f32 %v3486, %v3452
        %v3507 = vadd.f32 %v3487, %v3454
        %v3508 = vadd.f32 %v3488, %v3458
        %v3509 = vadd.f32 %v3489, %v3460
        %v3510 = vadd.f32 %v3490, %v3464
        %v3511 = vadd.f32 %v3491, %v3466
        %v3512 = vadd.f32 %v3492, %v3470
        %v3513 = vadd.f32 %v3493, %v3472
        %3514 = vst [vmem:[#allocation3] sm:$0xff] %v3494
        %3515 = vst [vmem:[#allocation3 + $0x8] sm:$0xff] %v3495
        %3516 = vst [vmem:[#allocation3 + $0x10] sm:$0xff] %v3496
        %3517 = vst [vmem:[#allocation3 + $0x18] sm:$0xff] %v3497
        %3518 = vst [vmem:[#allocation3 + $0x20] sm:$0xff] %v3498
        %3519 = vst [vmem:[#allocation3 + $0x28] sm:$0xff] %v3499
        %3520 = vst [vmem:[#allocation3 + $0x30] sm:$0xff] %v3500
        %3521 = vst [vmem:[#allocation3 + $0x38] sm:$0xff] %v3501
        %3522 = vst [vmem:[#allocation3 + $0x40] sm:$0xff] %v3502
        %3523 = vst [vmem:[#allocation3 + $0x48] sm:$0xff] %v3503
        %3524 = vst [vmem:[#allocation3 + $0x50] sm:$0xff] %v3504
        %3525 = vst [vmem:[#allocation3 + $0x58] sm:$0xff] %v3505
        %3526 = vst [vmem:[#allocation3 + $0x60] sm:$0xff] %v3506
        %3527 = vst [vmem:[#allocation3 + $0x68] sm:$0xff] %v3507
        %3528 = vst [vmem:[#allocation3 + $0x70] sm:$0xff] %v3508
        %3529 = vst [vmem:[#allocation3 + $0x78] sm:$0xff] %v3509
        %3530 = vst [vmem:[#allocation3 + $0x80] sm:$0xff] %v3510
        %3531 = vst [vmem:[#allocation3 + $0x88] sm:$0xff] %v3511
        %3532 = vst [vmem:[#allocation3 + $0x90] sm:$0xff] %v3512
        %3533 = vst [vmem:[#allocation3 + $0x98] sm:$0xff] %v3513
        %v3534 = vld [vmem:[#allocation4 + $0x10] sm:$0xff]
        %v3535 = vld [vmem:[#allocation4 + $0x18] sm:$0xff]
        %v3536 = vld [vmem:[#allocation4 + $0x20] sm:$0xff]
        %v3537 = vld [vmem:[#allocation4 + $0x28] sm:$0xff]
        %v3538 = vld [vmem:[#allocation4 + $0x30] sm:$0xff]
        %v3539 = vld [vmem:[#allocation4 + $0x38] sm:$0xff]
        %v3540 = vld [vmem:[#allocation4 + $0x40] sm:$0xff]
        %v3541 = vld [vmem:[#allocation4 + $0x48] sm:$0xff]
        %v3542 = vld [vmem:[#allocation4 + $0x50] sm:$0xff]
        %v3543 = vld [vmem:[#allocation4 + $0x58] sm:$0xff]
        %s3544 = scalar_lea.vmem %s3, 512
        %v3545 = vld [vmem:[%s3544] sm:$0xff]
        %v3546 = vld [vmem:[%s3544 + $0x8] sm:$0xff]
        %v3547 = vld [vmem:[%s3544 + $0x10] sm:$0xff]
        %v3548 = vld [vmem:[%s3544 + $0x18] sm:$0xff]
        %v3549 = vld [vmem:[%s3544 + $0x20] sm:$0xff]
        %v3550 = vld [vmem:[%s3544 + $0x28] sm:$0xff]
        %v3551 = vld [vmem:[%s3544 + $0x30] sm:$0xff]
        %v3552 = vld [vmem:[%s3544 + $0x38] sm:$0xff]
        %v3553 = vld [vmem:[%s3544 + $0x40] sm:$0xff]
        %v3554 = vld [vmem:[%s3544 + $0x48] sm:$0xff]
        %v3555 = vld [vmem:[%s3544 + $0x50] sm:$0xff]
        %v3556 = vld [vmem:[%s3544 + $0x58] sm:$0xff]
        %v3557 = vld [vmem:[%s3544 + $0x60] sm:$0xff]
        %v3558 = vld [vmem:[%s3544 + $0x68] sm:$0xff]
        %v3559 = vld [vmem:[%s3544 + $0x70] sm:$0xff]
        %v3560 = vld [vmem:[%s3544 + $0x78] sm:$0xff]
        %v3561 = vld [vmem:[%s3544 + $0x80] sm:$0xff]
        %v3562 = vld [vmem:[%s3544 + $0x88] sm:$0xff]
        %v3563 = vld [vmem:[%s3544 + $0x90] sm:$0xff]
        %v3564 = vld [vmem:[%s3544 + $0x98] sm:$0xff]
        %v3565 = vld [vmem:[%s3544 + $0xa0] sm:$0xff]
        %v3566 = vld [vmem:[%s3544 + $0xa8] sm:$0xff]
        %v3567 = vld [vmem:[%s3544 + $0xb0] sm:$0xff]
        %v3568 = vld [vmem:[%s3544 + $0xb8] sm:$0xff]
        %v3569 = vld [vmem:[%s3544 + $0xc0] sm:$0xff]
        %v3570 = vld [vmem:[%s3544 + $0xc8] sm:$0xff]
        %v3571 = vld [vmem:[%s3544 + $0xd0] sm:$0xff]
        %v3572 = vld [vmem:[%s3544 + $0xd8] sm:$0xff]
        %v3573 = vld [vmem:[%s3544 + $0xe0] sm:$0xff]
        %v3574 = vld [vmem:[%s3544 + $0xe8] sm:$0xff]
        %v3575 = vld [vmem:[%s3544 + $0xf0] sm:$0xff]
        %v3576 = vld [vmem:[%s3544 + $0xf8] sm:$0xff]
        %3577 = vmatprep.subr.mxu0 %v3546
        %3578 = vmatpush1.msra.mxu0 %v3545
        %3579 = vmatprep.subr.mxu0 %v3548
        %3580 = vmatpush1.msra.mxu0 %v3547
        %3581 = vmatprep.subr.mxu0 %v3550
        %3582 = vmatpush1.msra.mxu0 %v3549
        %3583 = vmatprep.subr.mxu0 %v3552
        %3584 = vmatpush1.msra.mxu0 %v3551
        %3585 = vmatprep.subr.mxu0 %v3554
        %3586 = vmatpush1.msra.mxu0 %v3553
        %3587 = vmatprep.subr.mxu0 %v3556
        %3588 = vmatpush1.msra.mxu0 %v3555
        %3589 = vmatprep.subr.mxu0 %v3558
        %3590 = vmatpush1.msra.mxu0 %v3557
        %3591 = vmatprep.subr.mxu0 %v3560
        %3592 = vmatpush1.msra.mxu0 %v3559
        %3593 = vmatprep.subr.mxu0 %v3562
        %3594 = vmatpush1.msra.mxu0 %v3561
        %3595 = vmatprep.subr.mxu0 %v3564
        %3596 = vmatpush1.msra.mxu0 %v3563
        %3597 = vmatprep.subr.mxu0 %v3566
        %3598 = vmatpush1.msra.mxu0 %v3565
        %3599 = vmatprep.subr.mxu0 %v3568
        %3600 = vmatpush1.msra.mxu0 %v3567
        %3601 = vmatprep.subr.mxu0 %v3570
        %3602 = vmatpush1.msra.mxu0 %v3569
        %3603 = vmatprep.subr.mxu0 %v3572
        %3604 = vmatpush1.msra.mxu0 %v3571
        %3605 = vmatprep.subr.mxu0 %v3574
        %3606 = vmatpush1.msra.mxu0 %v3573
        %3607 = vmatprep.subr.mxu0 %v3576
        %3608 = vmatpush1.msra.mxu0 %v3575
        %3609 = vmatprep.subr.mxu0 0.0
        %3610 = vmatpush1.msra.mxu0 0.0
        %3611 = vmatprep.subr.mxu0 0.0
        %3612 = vmatpush1.msra.mxu0 0.0
        %3613 = vmatprep.subr.mxu0 0.0
        %3614 = vmatpush1.msra.mxu0 0.0
        %3615 = vmatprep.subr.mxu0 0.0
        %3616 = vmatpush1.msra.mxu0 0.0
        %3617 = vmatprep.subr.mxu0 0.0
        %3618 = vmatpush1.msra.mxu0 0.0
        %3619 = vmatprep.subr.mxu0 0.0
        %3620 = vmatpush1.msra.mxu0 0.0
        %3621 = vmatprep.subr.mxu0 0.0
        %3622 = vmatpush1.msra.mxu0 0.0
        %3623 = vmatprep.subr.mxu0 0.0
        %3624 = vmatpush1.msra.mxu0 0.0
        %3625 = vmatprep.subr.mxu0 0.0
        %3626 = vmatpush1.msra.mxu0 0.0
        %3627 = vmatprep.subr.mxu0 0.0
        %3628 = vmatpush1.msra.mxu0 0.0
        %3629 = vmatprep.subr.mxu0 0.0
        %3630 = vmatpush1.msra.mxu0 0.0
        %3631 = vmatprep.subr.mxu0 0.0
        %3632 = vmatpush1.msra.mxu0 0.0
        %3633 = vmatprep.subr.mxu0 0.0
        %3634 = vmatpush1.msra.mxu0 0.0
        %3635 = vmatprep.subr.mxu0 0.0
        %3636 = vmatpush1.msra.mxu0 0.0
        %3637 = vmatprep.subr.mxu0 0.0
        %3638 = vmatpush1.msra.mxu0 0.0
        %3639 = vmatprep.subr.mxu0 0.0
        %3640 = vmatpush1.msra.mxu0 0.0
        %3641 = vmatprep.mubr.f32.mxu0 0.0
        %3642 = vmatmul.mubr.f32.gmra.mrb[0].mxu0 %v3534
        %v3643 = vpop.f32.mrb[0].mxu0
        %v3644 = vadd.f32 0.0, %v3643
        %v3645 = vpop.f32.mrb[0].mxu0
        %v3646 = vadd.f32 0.0, %v3645
        %3647 = vmatprep.mubr.f32.mxu0 0.0
        %3648 = vmatmul.mubr.f32.gmra.mrb[0].mxu0 %v3535
        %v3649 = vpop.f32.mrb[0].mxu0
        %v3650 = vadd.f32 0.0, %v3649
        %v3651 = vpop.f32.mrb[0].mxu0
        %v3652 = vadd.f32 0.0, %v3651
        %3653 = vmatprep.mubr.f32.mxu0 0.0
        %3654 = vmatmul.mubr.f32.gmra.mrb[0].mxu0 %v3536
        %v3655 = vpop.f32.mrb[0].mxu0
        %v3656 = vadd.f32 0.0, %v3655
        %v3657 = vpop.f32.mrb[0].mxu0
        %v3658 = vadd.f32 0.0, %v3657
        %3659 = vmatprep.mubr.f32.mxu0 0.0
        %3660 = vmatmul.mubr.f32.gmra.mrb[0].mxu0 %v3537
        %v3661 = vpop.f32.mrb[0].mxu0
        %v3662 = vadd.f32 0.0, %v3661
        %v3663 = vpop.f32.mrb[0].mxu0
        %v3664 = vadd.f32 0.0, %v3663
        %3665 = vmatprep.mubr.f32.mxu0 0.0
        %3666 = vmatmul.mubr.f32.gmra.mrb[0].mxu0 %v3538
        %v3667 = vpop.f32.mrb[0].mxu0
        %v3668 = vadd.f32 0.0, %v3667
        %v3669 = vpop.f32.mrb[0].mxu0
        %v3670 = vadd.f32 0.0, %v3669
        %3671 = vmatprep.mubr.f32.mxu0 0.0
        %3672 = vmatmul.mubr.f32.gmra.mrb[0].mxu0 %v3539
        %v3673 = vpop.f32.mrb[0].mxu0
        %v3674 = vadd.f32 0.0, %v3673
        %v3675 = vpop.f32.mrb[0].mxu0
        %v3676 = vadd.f32 0.0, %v3675
        %3677 = vmatprep.mubr.f32.mxu0 0.0
        %3678 = vmatmul.mubr.f32.gmra.mrb[0].mxu0 %v3540
        %v3679 = vpop.f32.mrb[0].mxu0
        %v3680 = vadd.f32 0.0, %v3679
        %v3681 = vpop.f32.mrb[0].mxu0
        %v3682 = vadd.f32 0.0, %v3681
        %3683 = vmatprep.mubr.f32.mxu0 0.0
        %3684 = vmatmul.mubr.f32.gmra.mrb[0].mxu0 %v3541
        %v3685 = vpop.f32.mrb[0].mxu0
        %v3686 = vadd.f32 0.0, %v3685
        %v3687 = vpop.f32.mrb[0].mxu0
        %v3688 = vadd.f32 0.0, %v3687
        %3689 = vmatprep.mubr.f32.mxu0 0.0
        %3690 = vmatmul.mubr.f32.gmra.mrb[0].mxu0 %v3542
        %v3691 = vpop.f32.mrb[0].mxu0
        %v3692 = vadd.f32 0.0, %v3691
        %v3693 = vpop.f32.mrb[0].mxu0
        %v3694 = vadd.f32 0.0, %v3693
        %3695 = vmatprep.mubr.f32.mxu0 0.0
        %3696 = vmatmul.mubr.f32.gmra.mrb[0].mxu0 %v3543
        %v3697 = vpop.f32.mrb[0].mxu0
        %v3698 = vadd.f32 0.0, %v3697
        %v3699 = vpop.f32.mrb[0].mxu0
        %v3700 = vadd.f32 0.0, %v3699
        %3701 = vdwg.mxu0
        %v3702 = vld [vmem:[#allocation3] sm:$0xff]
        %v3703 = vld [vmem:[#allocation3 + $0x8] sm:$0xff]
        %v3704 = vld [vmem:[#allocation3 + $0x10] sm:$0xff]
        %v3705 = vld [vmem:[#allocation3 + $0x18] sm:$0xff]
        %v3706 = vld [vmem:[#allocation3 + $0x20] sm:$0xff]
        %v3707 = vld [vmem:[#allocation3 + $0x28] sm:$0xff]
        %v3708 = vld [vmem:[#allocation3 + $0x30] sm:$0xff]
        %v3709 = vld [vmem:[#allocation3 + $0x38] sm:$0xff]
        %v3710 = vld [vmem:[#allocation3 + $0x40] sm:$0xff]
        %v3711 = vld [vmem:[#allocation3 + $0x48] sm:$0xff]
        %v3712 = vld [vmem:[#allocation3 + $0x50] sm:$0xff]
        %v3713 = vld [vmem:[#allocation3 + $0x58] sm:$0xff]
        %v3714 = vld [vmem:[#allocation3 + $0x60] sm:$0xff]
        %v3715 = vld [vmem:[#allocation3 + $0x68] sm:$0xff]
        %v3716 = vld [vmem:[#allocation3 + $0x70] sm:$0xff]
        %v3717 = vld [vmem:[#allocation3 + $0x78] sm:$0xff]
        %v3718 = vld [vmem:[#allocation3 + $0x80] sm:$0xff]
        %v3719 = vld [vmem:[#allocation3 + $0x88] sm:$0xff]
        %v3720 = vld [vmem:[#allocation3 + $0x90] sm:$0xff]
        %v3721 = vld [vmem:[#allocation3 + $0x98] sm:$0xff]
        %v3722 = vadd.f32 %v3702, %v3644
        %v3723 = vadd.f32 %v3703, %v3646
        %v3724 = vadd.f32 %v3704, %v3650
        %v3725 = vadd.f32 %v3705, %v3652
        %v3726 = vadd.f32 %v3706, %v3656
        %v3727 = vadd.f32 %v3707, %v3658
        %v3728 = vadd.f32 %v3708, %v3662
        %v3729 = vadd.f32 %v3709, %v3664
        %v3730 = vadd.f32 %v3710, %v3668
        %v3731 = vadd.f32 %v3711, %v3670
        %v3732 = vadd.f32 %v3712, %v3674
        %v3733 = vadd.f32 %v3713, %v3676
        %v3734 = vadd.f32 %v3714, %v3680
        %v3735 = vadd.f32 %v3715, %v3682
        %v3736 = vadd.f32 %v3716, %v3686
        %v3737 = vadd.f32 %v3717, %v3688
        %v3738 = vadd.f32 %v3718, %v3692
        %v3739 = vadd.f32 %v3719, %v3694
        %v3740 = vadd.f32 %v3720, %v3698
        %v3741 = vadd.f32 %v3721, %v3700
        %3742 = vst [vmem:[#allocation3] sm:$0xff] %v3722
        %3743 = vst [vmem:[#allocation3 + $0x8] sm:$0xff] %v3723
        %3744 = vst [vmem:[#allocation3 + $0x10] sm:$0xff] %v3724
        %3745 = vst [vmem:[#allocation3 + $0x18] sm:$0xff] %v3725
        %3746 = vst [vmem:[#allocation3 + $0x20] sm:$0xff] %v3726
        %3747 = vst [vmem:[#allocation3 + $0x28] sm:$0xff] %v3727
        %3748 = vst [vmem:[#allocation3 + $0x30] sm:$0xff] %v3728
        %3749 = vst [vmem:[#allocation3 + $0x38] sm:$0xff] %v3729
        %3750 = vst [vmem:[#allocation3 + $0x40] sm:$0xff] %v3730
        %3751 = vst [vmem:[#allocation3 + $0x48] sm:$0xff] %v3731
        %3752 = vst [vmem:[#allocation3 + $0x50] sm:$0xff] %v3732
        %3753 = vst [vmem:[#allocation3 + $0x58] sm:$0xff] %v3733
        %3754 = vst [vmem:[#allocation3 + $0x60] sm:$0xff] %v3734
        %3755 = vst [vmem:[#allocation3 + $0x68] sm:$0xff] %v3735
        %3756 = vst [vmem:[#allocation3 + $0x70] sm:$0xff] %v3736
        %3757 = vst [vmem:[#allocation3 + $0x78] sm:$0xff] %v3737
        %3758 = vst [vmem:[#allocation3 + $0x80] sm:$0xff] %v3738
        %3759 = vst [vmem:[#allocation3 + $0x88] sm:$0xff] %v3739
        %3760 = vst [vmem:[#allocation3 + $0x90] sm:$0xff] %v3740
        %3761 = vst [vmem:[#allocation3 + $0x98] sm:$0xff] %v3741
        %v3762 = vld [vmem:[#allocation4 + $0x18] sm:$0xff]
        %v3763 = vld [vmem:[#allocation4 + $0x20] sm:$0xff]
        %v3764 = vld [vmem:[#allocation4 + $0x28] sm:$0xff]
        %v3765 = vld [vmem:[#allocation4 + $0x30] sm:$0xff]
        %v3766 = vld [vmem:[#allocation4 + $0x38] sm:$0xff]
        %v3767 = vld [vmem:[#allocation4 + $0x40] sm:$0xff]
        %v3768 = vld [vmem:[#allocation4 + $0x48] sm:$0xff]
        %v3769 = vld [vmem:[#allocation4 + $0x50] sm:$0xff]
        %v3770 = vld [vmem:[#allocation4 + $0x58] sm:$0xff]
        %v3771 = vld [vmem:[#allocation4 + $0x60] sm:$0xff]
        %s3772 = scalar_lea.vmem %s3, 768
        %v3773 = vld [vmem:[%s3772] sm:$0xff]
        %v3774 = vld [vmem:[%s3772 + $0x8] sm:$0xff]
        %v3775 = vld [vmem:[%s3772 + $0x10] sm:$0xff]
        %v3776 = vld [vmem:[%s3772 + $0x18] sm:$0xff]
        %v3777 = vld [vmem:[%s3772 + $0x20] sm:$0xff]
        %v3778 = vld [vmem:[%s3772 + $0x28] sm:$0xff]
        %v3779 = vld [vmem:[%s3772 + $0x30] sm:$0xff]
        %v3780 = vld [vmem:[%s3772 + $0x38] sm:$0xff]
        %v3781 = vld [vmem:[%s3772 + $0x40] sm:$0xff]
        %v3782 = vld [vmem:[%s3772 + $0x48] sm:$0xff]
        %v3783 = vld [vmem:[%s3772 + $0x50] sm:$0xff]
        %v3784 = vld [vmem:[%s3772 + $0x58] sm:$0xff]
        %v3785 = vld [vmem:[%s3772 + $0x60] sm:$0xff]
        %v3786 = vld [vmem:[%s3772 + $0x68] sm:$0xff]
        %v3787 = vld [vmem:[%s3772 + $0x70] sm:$0xff]
        %v3788 = vld [vmem:[%s3772 + $0x78] sm:$0xff]
        %v3789 = vld [vmem:[%s3772 + $0x80] sm:$0xff]
        %v3790 = vld [vmem:[%s3772 + $0x88] sm:$0xff]
        %v3791 = vld [vmem:[%s3772 + $0x90] sm:$0xff]
        %v3792 = vld [vmem:[%s3772 + $0x98] sm:$0xff]
        %v3793 = vld [vmem:[%s3772 + $0xa0] sm:$0xff]
        %v3794 = vld [vmem:[%s3772 + $0xa8] sm:$0xff]
        %v3795 = vld [vmem:[%s3772 + $0xb0] sm:$0xff]
        %v3796 = vld [vmem:[%s3772 + $0xb8] sm:$0xff]
        %v3797 = vld [vmem:[%s3772 + $0xc0] sm:$0xff]
        %v3798 = vld [vmem:[%s3772 + $0xc8] sm:$0xff]
        %v3799 = vld [vmem:[%s3772 + $0xd0] sm:$0xff]
        %v3800 = vld [vmem:[%s3772 + $0xd8] sm:$0xff]
        %v3801 = vld [vmem:[%s3772 + $0xe0] sm:$0xff]
        %v3802 = vld [vmem:[%s3772 + $0xe8] sm:$0xff]
        %v3803 = vld [vmem:[%s3772 + $0xf0] sm:$0xff]
        %v3804 = vld [vmem:[%s3772 + $0xf8] sm:$0xff]
        %3805 = vmatprep.subr.mxu0 %v3774
        %3806 = vmatpush1.msra.mxu0 %v3773
        %3807 = vmatprep.subr.mxu0 %v3776
        %3808 = vmatpush1.msra.mxu0 %v3775
        %3809 = vmatprep.subr.mxu0 %v3778
        %3810 = vmatpush1.msra.mxu0 %v3777
        %3811 = vmatprep.subr.mxu0 %v3780
        %3812 = vmatpush1.msra.mxu0 %v3779
        %3813 = vmatprep.subr.mxu0 %v3782
        %3814 = vmatpush1.msra.mxu0 %v3781
        %3815 = vmatprep.subr.mxu0 %v3784
        %3816 = vmatpush1.msra.mxu0 %v3783
        %3817 = vmatprep.subr.mxu0 %v3786
        %3818 = vmatpush1.msra.mxu0 %v3785
        %3819 = vmatprep.subr.mxu0 %v3788
        %3820 = vmatpush1.msra.mxu0 %v3787
        %3821 = vmatprep.subr.mxu0 %v3790
        %3822 = vmatpush1.msra.mxu0 %v3789
        %3823 = vmatprep.subr.mxu0 %v3792
        %3824 = vmatpush1.msra.mxu0 %v3791
        %3825 = vmatprep.subr.mxu0 %v3794
        %3826 = vmatpush1.msra.mxu0 %v3793
        %3827 = vmatprep.subr.mxu0 %v3796
        %3828 = vmatpush1.msra.mxu0 %v3795
        %3829 = vmatprep.subr.mxu0 %v3798
        %3830 = vmatpush1.msra.mxu0 %v3797
        %3831 = vmatprep.subr.mxu0 %v3800
        %3832 = vmatpush1.msra.mxu0 %v3799
        %3833 = vmatprep.subr.mxu0 %v3802
        %3834 = vmatpush1.msra.mxu0 %v3801
        %3835 = vmatprep.subr.mxu0 %v3804
        %3836 = vmatpush1.msra.mxu0 %v3803
        %3837 = vmatprep.subr.mxu0 0.0
        %3838 = vmatpush1.msra.mxu0 0.0
        %3839 = vmatprep.subr.mxu0 0.0
        %3840 = vmatpush1.msra.mxu0 0.0
        %3841 = vmatprep.subr.mxu0 0.0
        %3842 = vmatpush1.msra.mxu0 0.0
        %3843 = vmatprep.subr.mxu0 0.0
        %3844 = vmatpush1.msra.mxu0 0.0
        %3845 = vmatprep.subr.mxu0 0.0
        %3846 = vmatpush1.msra.mxu0 0.0
        %3847 = vmatprep.subr.mxu0 0.0
        %3848 = vmatpush1.msra.mxu0 0.0
        %3849 = vmatprep.subr.mxu0 0.0
        %3850 = vmatpush1.msra.mxu0 0.0
        %3851 = vmatprep.subr.mxu0 0.0
        %3852 = vmatpush1.msra.mxu0 0.0
        %3853 = vmatprep.subr.mxu0 0.0
        %3854 = vmatpush1.msra.mxu0 0.0
        %3855 = vmatprep.subr.mxu0 0.0
        %3856 = vmatpush1.msra.mxu0 0.0
        %3857 = vmatprep.subr.mxu0 0.0
        %3858 = vmatpush1.msra.mxu0 0.0
        %3859 = vmatprep.subr.mxu0 0.0
        %3860 = vmatpush1.msra.mxu0 0.0
        %3861 = vmatprep.subr.mxu0 0.0
        %3862 = vmatpush1.msra.mxu0 0.0
        %3863 = vmatprep.subr.mxu0 0.0
        %3864 = vmatpush1.msra.mxu0 0.0
        %3865 = vmatprep.subr.mxu0 0.0
        %3866 = vmatpush1.msra.mxu0 0.0
        %3867 = vmatprep.subr.mxu0 0.0
        %3868 = vmatpush1.msra.mxu0 0.0
        %3869 = vmatprep.mubr.f32.mxu0 0.0
        %3870 = vmatmul.mubr.f32.gmra.mrb[0].mxu0 %v3762
        %v3871 = vpop.f32.mrb[0].mxu0
        %v3872 = vadd.f32 0.0, %v3871
        %v3873 = vpop.f32.mrb[0].mxu0
        %v3874 = vadd.f32 0.0, %v3873
        %3875 = vmatprep.mubr.f32.mxu0 0.0
        %3876 = vmatmul.mubr.f32.gmra.mrb[0].mxu0 %v3763
        %v3877 = vpop.f32.mrb[0].mxu0
        %v3878 = vadd.f32 0.0, %v3877
        %v3879 = vpop.f32.mrb[0].mxu0
        %v3880 = vadd.f32 0.0, %v3879
        %3881 = vmatprep.mubr.f32.mxu0 0.0
        %3882 = vmatmul.mubr.f32.gmra.mrb[0].mxu0 %v3764
        %v3883 = vpop.f32.mrb[0].mxu0
        %v3884 = vadd.f32 0.0, %v3883
        %v3885 = vpop.f32.mrb[0].mxu0
        %v3886 = vadd.f32 0.0, %v3885
        %3887 = vmatprep.mubr.f32.mxu0 0.0
        %3888 = vmatmul.mubr.f32.gmra.mrb[0].mxu0 %v3765
        %v3889 = vpop.f32.mrb[0].mxu0
        %v3890 = vadd.f32 0.0, %v3889
        %v3891 = vpop.f32.mrb[0].mxu0
        %v3892 = vadd.f32 0.0, %v3891
        %3893 = vmatprep.mubr.f32.mxu0 0.0
        %3894 = vmatmul.mubr.f32.gmra.mrb[0].mxu0 %v3766
        %v3895 = vpop.f32.mrb[0].mxu0
        %v3896 = vadd.f32 0.0, %v3895
        %v3897 = vpop.f32.mrb[0].mxu0
        %v3898 = vadd.f32 0.0, %v3897
        %3899 = vmatprep.mubr.f32.mxu0 0.0
        %3900 = vmatmul.mubr.f32.gmra.mrb[0].mxu0 %v3767
        %v3901 = vpop.f32.mrb[0].mxu0
        %v3902 = vadd.f32 0.0, %v3901
        %v3903 = vpop.f32.mrb[0].mxu0
        %v3904 = vadd.f32 0.0, %v3903
        %3905 = vmatprep.mubr.f32.mxu0 0.0
        %3906 = vmatmul.mubr.f32.gmra.mrb[0].mxu0 %v3768
        %v3907 = vpop.f32.mrb[0].mxu0
        %v3908 = vadd.f32 0.0, %v3907
        %v3909 = vpop.f32.mrb[0].mxu0
        %v3910 = vadd.f32 0.0, %v3909
        %3911 = vmatprep.mubr.f32.mxu0 0.0
        %3912 = vmatmul.mubr.f32.gmra.mrb[0].mxu0 %v3769
        %v3913 = vpop.f32.mrb[0].mxu0
        %v3914 = vadd.f32 0.0, %v3913
        %v3915 = vpop.f32.mrb[0].mxu0
        %v3916 = vadd.f32 0.0, %v3915
        %3917 = vmatprep.mubr.f32.mxu0 0.0
        %3918 = vmatmul.mubr.f32.gmra.mrb[0].mxu0 %v3770
        %v3919 = vpop.f32.mrb[0].mxu0
        %v3920 = vadd.f32 0.0, %v3919
        %v3921 = vpop.f32.mrb[0].mxu0
        %v3922 = vadd.f32 0.0, %v3921
        %3923 = vmatprep.mubr.f32.mxu0 0.0
        %3924 = vmatmul.mubr.f32.gmra.mrb[0].mxu0 %v3771
        %v3925 = vpop.f32.mrb[0].mxu0
        %v3926 = vadd.f32 0.0, %v3925
        %v3927 = vpop.f32.mrb[0].mxu0
        %v3928 = vadd.f32 0.0, %v3927
        %3929 = vdwg.mxu0
        %v3930 = vld [vmem:[#allocation3] sm:$0xff]
        %v3931 = vld [vmem:[#allocation3 + $0x8] sm:$0xff]
        %v3932 = vld [vmem:[#allocation3 + $0x10] sm:$0xff]
        %v3933 = vld [vmem:[#allocation3 + $0x18] sm:$0xff]
        %v3934 = vld [vmem:[#allocation3 + $0x20] sm:$0xff]
        %v3935 = vld [vmem:[#allocation3 + $0x28] sm:$0xff]
        %v3936 = vld [vmem:[#allocation3 + $0x30] sm:$0xff]
        %v3937 = vld [vmem:[#allocation3 + $0x38] sm:$0xff]
        %v3938 = vld [vmem:[#allocation3 + $0x40] sm:$0xff]
        %v3939 = vld [vmem:[#allocation3 + $0x48] sm:$0xff]
        %v3940 = vld [vmem:[#allocation3 + $0x50] sm:$0xff]
        %v3941 = vld [vmem:[#allocation3 + $0x58] sm:$0xff]
        %v3942 = vld [vmem:[#allocation3 + $0x60] sm:$0xff]
        %v3943 = vld [vmem:[#allocation3 + $0x68] sm:$0xff]
        %v3944 = vld [vmem:[#allocation3 + $0x70] sm:$0xff]
        %v3945 = vld [vmem:[#allocation3 + $0x78] sm:$0xff]
        %v3946 = vld [vmem:[#allocation3 + $0x80] sm:$0xff]
        %v3947 = vld [vmem:[#allocation3 + $0x88] sm:$0xff]
        %v3948 = vld [vmem:[#allocation3 + $0x90] sm:$0xff]
        %v3949 = vld [vmem:[#allocation3 + $0x98] sm:$0xff]
        %v3950 = vadd.f32 %v3930, %v3872
        %v3951 = vadd.f32 %v3931, %v3874
        %v3952 = vadd.f32 %v3932, %v3878
        %v3953 = vadd.f32 %v3933, %v3880
        %v3954 = vadd.f32 %v3934, %v3884
        %v3955 = vadd.f32 %v3935, %v3886
        %v3956 = vadd.f32 %v3936, %v3890
        %v3957 = vadd.f32 %v3937, %v3892
        %v3958 = vadd.f32 %v3938, %v3896
        %v3959 = vadd.f32 %v3939, %v3898
        %v3960 = vadd.f32 %v3940, %v3902
        %v3961 = vadd.f32 %v3941, %v3904
        %v3962 = vadd.f32 %v3942, %v3908
        %v3963 = vadd.f32 %v3943, %v3910
        %v3964 = vadd.f32 %v3944, %v3914
        %v3965 = vadd.f32 %v3945, %v3916
        %v3966 = vadd.f32 %v3946, %v3920
        %v3967 = vadd.f32 %v3947, %v3922
        %v3968 = vadd.f32 %v3948, %v3926
        %v3969 = vadd.f32 %v3949, %v3928
        %3970 = vst [vmem:[#allocation3] sm:$0xff] %v3950
        %3971 = vst [vmem:[#allocation3 + $0x8] sm:$0xff] %v3951
        %3972 = vst [vmem:[#allocation3 + $0x10] sm:$0xff] %v3952
        %3973 = vst [vmem:[#allocation3 + $0x18] sm:$0xff] %v3953
        %3974 = vst [vmem:[#allocation3 + $0x20] sm:$0xff] %v3954
        %3975 = vst [vmem:[#allocation3 + $0x28] sm:$0xff] %v3955
        %3976 = vst [vmem:[#allocation3 + $0x30] sm:$0xff] %v3956
        %3977 = vst [vmem:[#allocation3 + $0x38] sm:$0xff] %v3957
        %3978 = vst [vmem:[#allocation3 + $0x40] sm:$0xff] %v3958
        %3979 = vst [vmem:[#allocation3 + $0x48] sm:$0xff] %v3959
        %3980 = vst [vmem:[#allocation3 + $0x50] sm:$0xff] %v3960
        %3981 = vst [vmem:[#allocation3 + $0x58] sm:$0xff] %v3961
        %3982 = vst [vmem:[#allocation3 + $0x60] sm:$0xff] %v3962
        %3983 = vst [vmem:[#allocation3 + $0x68] sm:$0xff] %v3963
        %3984 = vst [vmem:[#allocation3 + $0x70] sm:$0xff] %v3964
        %3985 = vst [vmem:[#allocation3 + $0x78] sm:$0xff] %v3965
        %3986 = vst [vmem:[#allocation3 + $0x80] sm:$0xff] %v3966
        %3987 = vst [vmem:[#allocation3 + $0x88] sm:$0xff] %v3967
        %3988 = vst [vmem:[#allocation3 + $0x90] sm:$0xff] %v3968
        %3989 = vst [vmem:[#allocation3 + $0x98] sm:$0xff] %v3969
        %v3990 = vld [vmem:[#allocation4 + $0x20] sm:$0xff]
        %v3991 = vld [vmem:[#allocation4 + $0x28] sm:$0xff]
        %v3992 = vld [vmem:[#allocation4 + $0x30] sm:$0xff]
        %v3993 = vld [vmem:[#allocation4 + $0x38] sm:$0xff]
        %v3994 = vld [vmem:[#allocation4 + $0x40] sm:$0xff]
        %v3995 = vld [vmem:[#allocation4 + $0x48] sm:$0xff]
        %v3996 = vld [vmem:[#allocation4 + $0x50] sm:$0xff]
        %v3997 = vld [vmem:[#allocation4 + $0x58] sm:$0xff]
        %v3998 = vld [vmem:[#allocation4 + $0x60] sm:$0xff]
        %v3999 = vld [vmem:[#allocation4 + $0x68] sm:$0xff]
        %s4000 = scalar_lea.vmem %s3, 1024
        %v4001 = vld [vmem:[%s4000] sm:$0xff]
        %v4002 = vld [vmem:[%s4000 + $0x8] sm:$0xff]
        %v4003 = vld [vmem:[%s4000 + $0x10] sm:$0xff]
        %v4004 = vld [vmem:[%s4000 + $0x18] sm:$0xff]
        %v4005 = vld [vmem:[%s4000 + $0x20] sm:$0xff]
        %v4006 = vld [vmem:[%s4000 + $0x28] sm:$0xff]
        %v4007 = vld [vmem:[%s4000 + $0x30] sm:$0xff]
        %v4008 = vld [vmem:[%s4000 + $0x38] sm:$0xff]
        %v4009 = vld [vmem:[%s4000 + $0x40] sm:$0xff]
        %v4010 = vld [vmem:[%s4000 + $0x48] sm:$0xff]
        %v4011 = vld [vmem:[%s4000 + $0x50] sm:$0xff]
        %v4012 = vld [vmem:[%s4000 + $0x58] sm:$0xff]
        %v4013 = vld [vmem:[%s4000 + $0x60] sm:$0xff]
        %v4014 = vld [vmem:[%s4000 + $0x68] sm:$0xff]
        %v4015 = vld [vmem:[%s4000 + $0x70] sm:$0xff]
        %v4016 = vld [vmem:[%s4000 + $0x78] sm:$0xff]
        %v4017 = vld [vmem:[%s4000 + $0x80] sm:$0xff]
        %v4018 = vld [vmem:[%s4000 + $0x88] sm:$0xff]
        %v4019 = vld [vmem:[%s4000 + $0x90] sm:$0xff]
        %v4020 = vld [vmem:[%s4000 + $0x98] sm:$0xff]
        %v4021 = vld [vmem:[%s4000 + $0xa0] sm:$0xff]
        %v4022 = vld [vmem:[%s4000 + $0xa8] sm:$0xff]
        %v4023 = vld [vmem:[%s4000 + $0xb0] sm:$0xff]
        %v4024 = vld [vmem:[%s4000 + $0xb8] sm:$0xff]
        %v4025 = vld [vmem:[%s4000 + $0xc0] sm:$0xff]
        %v4026 = vld [vmem:[%s4000 + $0xc8] sm:$0xff]
        %v4027 = vld [vmem:[%s4000 + $0xd0] sm:$0xff]
        %v4028 = vld [vmem:[%s4000 + $0xd8] sm:$0xff]
        %v4029 = vld [vmem:[%s4000 + $0xe0] sm:$0xff]
        %v4030 = vld [vmem:[%s4000 + $0xe8] sm:$0xff]
        %v4031 = vld [vmem:[%s4000 + $0xf0] sm:$0xff]
        %v4032 = vld [vmem:[%s4000 + $0xf8] sm:$0xff]
        %4033 = vmatprep.subr.mxu0 %v4002
        %4034 = vmatpush1.msra.mxu0 %v4001
        %4035 = vmatprep.subr.mxu0 %v4004
        %4036 = vmatpush1.msra.mxu0 %v4003
        %4037 = vmatprep.subr.mxu0 %v4006
        %4038 = vmatpush1.msra.mxu0 %v4005
        %4039 = vmatprep.subr.mxu0 %v4008
        %4040 = vmatpush1.msra.mxu0 %v4007
        %4041 = vmatprep.subr.mxu0 %v4010
        %4042 = vmatpush1.msra.mxu0 %v4009
        %4043 = vmatprep.subr.mxu0 %v4012
        %4044 = vmatpush1.msra.mxu0 %v4011
        %4045 = vmatprep.subr.mxu0 %v4014
        %4046 = vmatpush1.msra.mxu0 %v4013
        %4047 = vmatprep.subr.mxu0 %v4016
        %4048 = vmatpush1.msra.mxu0 %v4015
        %4049 = vmatprep.subr.mxu0 %v4018
        %4050 = vmatpush1.msra.mxu0 %v4017
        %4051 = vmatprep.subr.mxu0 %v4020
        %4052 = vmatpush1.msra.mxu0 %v4019
        %4053 = vmatprep.subr.mxu0 %v4022
        %4054 = vmatpush1.msra.mxu0 %v4021
        %4055 = vmatprep.subr.mxu0 %v4024
        %4056 = vmatpush1.msra.mxu0 %v4023
        %4057 = vmatprep.subr.mxu0 %v4026
        %4058 = vmatpush1.msra.mxu0 %v4025
        %4059 = vmatprep.subr.mxu0 %v4028
        %4060 = vmatpush1.msra.mxu0 %v4027
        %4061 = vmatprep.subr.mxu0 %v4030
        %4062 = vmatpush1.msra.mxu0 %v4029
        %4063 = vmatprep.subr.mxu0 %v4032
        %4064 = vmatpush1.msra.mxu0 %v4031
        %4065 = vmatprep.subr.mxu0 0.0
        %4066 = vmatpush1.msra.mxu0 0.0
        %4067 = vmatprep.subr.mxu0 0.0
        %4068 = vmatpush1.msra.mxu0 0.0
        %4069 = vmatprep.subr.mxu0 0.0
        %4070 = vmatpush1.msra.mxu0 0.0
        %4071 = vmatprep.subr.mxu0 0.0
        %4072 = vmatpush1.msra.mxu0 0.0
        %4073 = vmatprep.subr.mxu0 0.0
        %4074 = vmatpush1.msra.mxu0 0.0
        %4075 = vmatprep.subr.mxu0 0.0
        %4076 = vmatpush1.msra.mxu0 0.0
        %4077 = vmatprep.subr.mxu0 0.0
        %4078 = vmatpush1.msra.mxu0 0.0
        %4079 = vmatprep.subr.mxu0 0.0
        %4080 = vmatpush1.msra.mxu0 0.0
        %4081 = vmatprep.subr.mxu0 0.0
        %4082 = vmatpush1.msra.mxu0 0.0
        %4083 = vmatprep.subr.mxu0 0.0
        %4084 = vmatpush1.msra.mxu0 0.0
        %4085 = vmatprep.subr.mxu0 0.0
        %4086 = vmatpush1.msra.mxu0 0.0
        %4087 = vmatprep.subr.mxu0 0.0
        %4088 = vmatpush1.msra.mxu0 0.0
        %4089 = vmatprep.subr.mxu0 0.0
        %4090 = vmatpush1.msra.mxu0 0.0
        %4091 = vmatprep.subr.mxu0 0.0
        %4092 = vmatpush1.msra.mxu0 0.0
        %4093 = vmatprep.subr.mxu0 0.0
        %4094 = vmatpush1.msra.mxu0 0.0
        %4095 = vmatprep.subr.mxu0 0.0
        %4096 = vmatpush1.msra.mxu0 0.0
        %4097 = vmatprep.mubr.f32.mxu0 0.0
        %4098 = vmatmul.mubr.f32.gmra.mrb[0].mxu0 %v3990
        %v4099 = vpop.f32.mrb[0].mxu0
        %v4100 = vadd.f32 0.0, %v4099
        %v4101 = vpop.f32.mrb[0].mxu0
        %v4102 = vadd.f32 0.0, %v4101
        %4103 = vmatprep.mubr.f32.mxu0 0.0
        %4104 = vmatmul.mubr.f32.gmra.mrb[0].mxu0 %v3991
        %v4105 = vpop.f32.mrb[0].mxu0
        %v4106 = vadd.f32 0.0, %v4105
        %v4107 = vpop.f32.mrb[0].mxu0
        %v4108 = vadd.f32 0.0, %v4107
        %4109 = vmatprep.mubr.f32.mxu0 0.0
        %4110 = vmatmul.mubr.f32.gmra.mrb[0].mxu0 %v3992
        %v4111 = vpop.f32.mrb[0].mxu0
        %v4112 = vadd.f32 0.0, %v4111
        %v4113 = vpop.f32.mrb[0].mxu0
        %v4114 = vadd.f32 0.0, %v4113
        %4115 = vmatprep.mubr.f32.mxu0 0.0
        %4116 = vmatmul.mubr.f32.gmra.mrb[0].mxu0 %v3993
        %v4117 = vpop.f32.mrb[0].mxu0
        %v4118 = vadd.f32 0.0, %v4117
        %v4119 = vpop.f32.mrb[0].mxu0
        %v4120 = vadd.f32 0.0, %v4119
        %4121 = vmatprep.mubr.f32.mxu0 0.0
        %4122 = vmatmul.mubr.f32.gmra.mrb[0].mxu0 %v3994
        %v4123 = vpop.f32.mrb[0].mxu0
        %v4124 = vadd.f32 0.0, %v4123
        %v4125 = vpop.f32.mrb[0].mxu0
        %v4126 = vadd.f32 0.0, %v4125
        %4127 = vmatprep.mubr.f32.mxu0 0.0
        %4128 = vmatmul.mubr.f32.gmra.mrb[0].mxu0 %v3995
        %v4129 = vpop.f32.mrb[0].mxu0
        %v4130 = vadd.f32 0.0, %v4129
        %v4131 = vpop.f32.mrb[0].mxu0
        %v4132 = vadd.f32 0.0, %v4131
        %4133 = vmatprep.mubr.f32.mxu0 0.0
        %4134 = vmatmul.mubr.f32.gmra.mrb[0].mxu0 %v3996
        %v4135 = vpop.f32.mrb[0].mxu0
        %v4136 = vadd.f32 0.0, %v4135
        %v4137 = vpop.f32.mrb[0].mxu0
        %v4138 = vadd.f32 0.0, %v4137
        %4139 = vmatprep.mubr.f32.mxu0 0.0
        %4140 = vmatmul.mubr.f32.gmra.mrb[0].mxu0 %v3997
        %v4141 = vpop.f32.mrb[0].mxu0
        %v4142 = vadd.f32 0.0, %v4141
        %v4143 = vpop.f32.mrb[0].mxu0
        %v4144 = vadd.f32 0.0, %v4143
        %4145 = vmatprep.mubr.f32.mxu0 0.0
        %4146 = vmatmul.mubr.f32.gmra.mrb[0].mxu0 %v3998
        %v4147 = vpop.f32.mrb[0].mxu0
        %v4148 = vadd.f32 0.0, %v4147
        %v4149 = vpop.f32.mrb[0].mxu0
        %v4150 = vadd.f32 0.0, %v4149
        %4151 = vmatprep.mubr.f32.mxu0 0.0
        %4152 = vmatmul.mubr.f32.gmra.mrb[0].mxu0 %v3999
        %v4153 = vpop.f32.mrb[0].mxu0
        %v4154 = vadd.f32 0.0, %v4153
        %v4155 = vpop.f32.mrb[0].mxu0
        %v4156 = vadd.f32 0.0, %v4155
        %4157 = vdwg.mxu0
        %v4158 = vld [vmem:[#allocation3] sm:$0xff]
        %v4159 = vld [vmem:[#allocation3 + $0x8] sm:$0xff]
        %v4160 = vld [vmem:[#allocation3 + $0x10] sm:$0xff]
        %v4161 = vld [vmem:[#allocation3 + $0x18] sm:$0xff]
        %v4162 = vld [vmem:[#allocation3 + $0x20] sm:$0xff]
        %v4163 = vld [vmem:[#allocation3 + $0x28] sm:$0xff]
        %v4164 = vld [vmem:[#allocation3 + $0x30] sm:$0xff]
        %v4165 = vld [vmem:[#allocation3 + $0x38] sm:$0xff]
        %v4166 = vld [vmem:[#allocation3 + $0x40] sm:$0xff]
        %v4167 = vld [vmem:[#allocation3 + $0x48] sm:$0xff]
        %v4168 = vld [vmem:[#allocation3 + $0x50] sm:$0xff]
        %v4169 = vld [vmem:[#allocation3 + $0x58] sm:$0xff]
        %v4170 = vld [vmem:[#allocation3 + $0x60] sm:$0xff]
        %v4171 = vld [vmem:[#allocation3 + $0x68] sm:$0xff]
        %v4172 = vld [vmem:[#allocation3 + $0x70] sm:$0xff]
        %v4173 = vld [vmem:[#allocation3 + $0x78] sm:$0xff]
        %v4174 = vld [vmem:[#allocation3 + $0x80] sm:$0xff]
        %v4175 = vld [vmem:[#allocation3 + $0x88] sm:$0xff]
        %v4176 = vld [vmem:[#allocation3 + $0x90] sm:$0xff]
        %v4177 = vld [vmem:[#allocation3 + $0x98] sm:$0xff]
        %v4178 = vadd.f32 %v4158, %v4100
        %v4179 = vadd.f32 %v4159, %v4102
        %v4180 = vadd.f32 %v4160, %v4106
        %v4181 = vadd.f32 %v4161, %v4108
        %v4182 = vadd.f32 %v4162, %v4112
        %v4183 = vadd.f32 %v4163, %v4114
        %v4184 = vadd.f32 %v4164, %v4118
        %v4185 = vadd.f32 %v4165, %v4120
        %v4186 = vadd.f32 %v4166, %v4124
        %v4187 = vadd.f32 %v4167, %v4126
        %v4188 = vadd.f32 %v4168, %v4130
        %v4189 = vadd.f32 %v4169, %v4132
        %v4190 = vadd.f32 %v4170, %v4136
        %v4191 = vadd.f32 %v4171, %v4138
        %v4192 = vadd.f32 %v4172, %v4142
        %v4193 = vadd.f32 %v4173, %v4144
        %v4194 = vadd.f32 %v4174, %v4148
        %v4195 = vadd.f32 %v4175, %v4150
        %v4196 = vadd.f32 %v4176, %v4154
        %v4197 = vadd.f32 %v4177, %v4156
        %4198 = vst [vmem:[#allocation3] sm:$0xff] %v4178
        %4199 = vst [vmem:[#allocation3 + $0x8] sm:$0xff] %v4179
        %4200 = vst [vmem:[#allocation3 + $0x10] sm:$0xff] %v4180
        %4201 = vst [vmem:[#allocation3 + $0x18] sm:$0xff] %v4181
        %4202 = vst [vmem:[#allocation3 + $0x20] sm:$0xff] %v4182
        %4203 = vst [vmem:[#allocation3 + $0x28] sm:$0xff] %v4183
        %4204 = vst [vmem:[#allocation3 + $0x30] sm:$0xff] %v4184
        %4205 = vst [vmem:[#allocation3 + $0x38] sm:$0xff] %v4185
        %4206 = vst [vmem:[#allocation3 + $0x40] sm:$0xff] %v4186
        %4207 = vst [vmem:[#allocation3 + $0x48] sm:$0xff] %v4187
        %4208 = vst [vmem:[#allocation3 + $0x50] sm:$0xff] %v4188
        %4209 = vst [vmem:[#allocation3 + $0x58] sm:$0xff] %v4189
        %4210 = vst [vmem:[#allocation3 + $0x60] sm:$0xff] %v4190
        %4211 = vst [vmem:[#allocation3 + $0x68] sm:$0xff] %v4191
        %4212 = vst [vmem:[#allocation3 + $0x70] sm:$0xff] %v4192
        %4213 = vst [vmem:[#allocation3 + $0x78] sm:$0xff] %v4193
        %4214 = vst [vmem:[#allocation3 + $0x80] sm:$0xff] %v4194
        %4215 = vst [vmem:[#allocation3 + $0x88] sm:$0xff] %v4195
        %4216 = vst [vmem:[#allocation3 + $0x90] sm:$0xff] %v4196
        %4217 = vst [vmem:[#allocation3 + $0x98] sm:$0xff] %v4197
        %v4218 = vld [vmem:[%s4] sm:$0x3]
        %v4219 = vld [vmem:[#allocation3] sm:$0xff]
        %v4220 = vld [vmem:[#allocation3 + $0x8] sm:$0xff]
        %v4221 = vld [vmem:[#allocation3 + $0x10] sm:$0xff]
        %v4222 = vld [vmem:[#allocation3 + $0x18] sm:$0xff]
        %v4224 = vlaneseq
        %v4225 = vshrl.u32 %v4224, 7
        %v4226 = vsub.s32 0, %v4225
        %v4227 = vrot.slane %v4218, %v4226
        %v4228 = vlaneseq
        %v4229 = vshrl.u32 %v4228, 7
        %v4230 = vsub.s32 1, %v4229
        %v4231 = vrot.slane %v4218, %v4230
        %v4234 = vadd.f32 %v4219, %v4227
        %v4235 = vadd.f32 %v4220, %v4231
        %v4236 = vadd.f32 %v4221, %v4227
        %v4237 = vadd.f32 %v4222, %v4231
        %v4238 = vmax.f32 %v4234, 0.0
        %v4239 = vmax.f32 %v4235, 0.0
        %v4240 = vmax.f32 %v4236, 0.0
        %v4241 = vmax.f32 %v4237, 0.0
        %v4242 = vmax.f32 %v4238, %v4239
        %v4243 = vmax.f32 %v4240, %v4241
        %v4244 = vmax.f32 %v4242, %v4243
        %4245 = vst [vmem:[#allocation5] sm:$0xff] %v4244
        %v4246 = vld [vmem:[#allocation3 + $0x20] sm:$0xff]
        %v4247 = vld [vmem:[#allocation3 + $0x28] sm:$0xff]
        %v4248 = vld [vmem:[#allocation3 + $0x30] sm:$0xff]
        %v4249 = vld [vmem:[#allocation3 + $0x38] sm:$0xff]
        %v4250 = vadd.f32 %v4246, %v4227
        %v4251 = vadd.f32 %v4247, %v4231
        %v4252 = vadd.f32 %v4248, %v4227
        %v4253 = vadd.f32 %v4249, %v4231
        %v4254 = vmax.f32 %v4250, 0.0
        %v4255 = vmax.f32 %v4251, 0.0
        %v4256 = vmax.f32 %v4252, 0.0
        %v4257 = vmax.f32 %v4253, 0.0
        %v4258 = vmax.f32 %v4254, %v4255
        %v4259 = vmax.f32 %v4256, %v4257
        %v4260 = vmax.f32 %v4258, %v4259
        %4261 = vst [vmem:[#allocation5 + $0x8] sm:$0xff] %v4260
        %v4262 = vld [vmem:[#allocation3 + $0x40] sm:$0xff]
        %v4263 = vld [vmem:[#allocation3 + $0x48] sm:$0xff]
        %v4264 = vld [vmem:[#allocation3 + $0x50] sm:$0xff]
        %v4265 = vld [vmem:[#allocation3 + $0x58] sm:$0xff]
        %v4266 = vadd.f32 %v4262, %v4227
        %v4267 = vadd.f32 %v4263, %v4231
        %v4268 = vadd.f32 %v4264, %v4227
        %v4269 = vadd.f32 %v4265, %v4231
        %v4270 = vmax.f32 %v4266, 0.0
        %v4271 = vmax.f32 %v4267, 0.0
        %v4272 = vmax.f32 %v4268, 0.0
        %v4273 = vmax.f32 %v4269, 0.0
        %v4274 = vmax.f32 %v4270, %v4271
        %v4275 = vmax.f32 %v4272, %v4273
        %v4276 = vmax.f32 %v4274, %v4275
        %4277 = vst [vmem:[#allocation5 + $0x10] sm:$0xff] %v4276
        %v4278 = vld [vmem:[#allocation3 + $0x60] sm:$0xff]
        %v4279 = vld [vmem:[#allocation3 + $0x68] sm:$0xff]
        %v4280 = vld [vmem:[#allocation3 + $0x70] sm:$0xff]
        %v4281 = vld [vmem:[#allocation3 + $0x78] sm:$0xff]
        %v4282 = vadd.f32 %v4278, %v4227
        %v4283 = vadd.f32 %v4279, %v4231
        %v4284 = vadd.f32 %v4280, %v4227
        %v4285 = vadd.f32 %v4281, %v4231
        %v4286 = vmax.f32 %v4282, 0.0
        %v4287 = vmax.f32 %v4283, 0.0
        %v4288 = vmax.f32 %v4284, 0.0
        %v4289 = vmax.f32 %v4285, 0.0
        %v4290 = vmax.f32 %v4286, %v4287
        %v4291 = vmax.f32 %v4288, %v4289
        %v4292 = vmax.f32 %v4290, %v4291
        %4293 = vst [vmem:[#allocation5 + $0x18] sm:$0xff] %v4292
        %v4294 = vld [vmem:[#allocation3 + $0x80] sm:$0xff]
        %v4295 = vld [vmem:[#allocation3 + $0x88] sm:$0xff]
        %v4296 = vld [vmem:[#allocation3 + $0x90] sm:$0xff]
        %v4297 = vld [vmem:[#allocation3 + $0x98] sm:$0xff]
        %v4298 = vadd.f32 %v4294, %v4227
        %v4299 = vadd.f32 %v4295, %v4231
        %v4300 = vadd.f32 %v4296, %v4227
        %v4301 = vadd.f32 %v4297, %v4231
        %v4302 = vmax.f32 %v4298, 0.0
        %v4303 = vmax.f32 %v4299, 0.0
        %v4304 = vmax.f32 %v4300, 0.0
        %v4305 = vmax.f32 %v4301, 0.0
        %v4306 = vmax.f32 %v4302, %v4303
        %v4307 = vmax.f32 %v4304, %v4305
        %v4308 = vmax.f32 %v4306, %v4307
        %4309 = vst [vmem:[#allocation5 + $0x20] sm:$0xff] %v4308
        %v4310 = vld [vmem:[#allocation5] sm:$0xff]
        %v4311 = vld [vmem:[%s5] sm:$0xff]
        %v4312 = vld [vmem:[%s5 + $0x8] sm:$0xff]
        %v4313 = vld [vmem:[%s5 + $0x10] sm:$0xff]
        %v4314 = vld [vmem:[%s5 + $0x18] sm:$0xff]
        %v4315 = vld [vmem:[%s5 + $0x20] sm:$0xff]
        %v4316 = vld [vmem:[%s5 + $0x28] sm:$0xff]
        %v4317 = vld [vmem:[%s5 + $0x30] sm:$0xff]
        %v4318 = vld [vmem:[%s5 + $0x38] sm:$0xff]
        %v4319 = vld [vmem:[%s5 + $0x40] sm:$0xff]
        %v4320 = vld [vmem:[%s5 + $0x48] sm:$0xff]
        %v4321 = vld [vmem:[%s5 + $0x50] sm:$0xff]
        %v4322 = vld [vmem:[%s5 + $0x58] sm:$0xff]
        %v4323 = vld [vmem:[%s5 + $0x60] sm:$0xff]
        %v4324 = vld [vmem:[%s5 + $0x68] sm:$0xff]
        %v4325 = vld [vmem:[%s5 + $0x70] sm:$0xff]
        %v4326 = vld [vmem:[%s5 + $0x78] sm:$0xff]
        %v4327 = vld [vmem:[#allocation5 + $0x8] sm:$0xff]
        %s4328 = scalar_lea.vmem %s5, 128
        %v4329 = vld [vmem:[%s4328] sm:$0xff]
        %v4330 = vld [vmem:[%s4328 + $0x8] sm:$0xff]
        %v4331 = vld [vmem:[%s4328 + $0x10] sm:$0xff]
        %v4332 = vld [vmem:[%s4328 + $0x18] sm:$0xff]
        %v4333 = vld [vmem:[%s4328 + $0x20] sm:$0xff]
        %v4334 = vld [vmem:[%s4328 + $0x28] sm:$0xff]
        %v4335 = vld [vmem:[%s4328 + $0x30] sm:$0xff]
        %v4336 = vld [vmem:[%s4328 + $0x38] sm:$0xff]
        %v4337 = vld [vmem:[%s4328 + $0x40] sm:$0xff]
        %v4338 = vld [vmem:[%s4328 + $0x48] sm:$0xff]
        %v4339 = vld [vmem:[%s4328 + $0x50] sm:$0xff]
        %v4340 = vld [vmem:[%s4328 + $0x58] sm:$0xff]
        %v4341 = vld [vmem:[%s4328 + $0x60] sm:$0xff]
        %v4342 = vld [vmem:[%s4328 + $0x68] sm:$0xff]
        %v4343 = vld [vmem:[%s4328 + $0x70] sm:$0xff]
        %v4344 = vld [vmem:[%s4328 + $0x78] sm:$0xff]
        %4345 = vmatprep.subr.mxu0 0.0
        %4346 = vmatpush1.msra.mxu0 %v4329
        %4347 = vmatprep.subr.mxu0 0.0
        %4348 = vmatpush1.msra.mxu0 %v4330
        %4349 = vmatprep.subr.mxu0 0.0
        %4350 = vmatpush1.msra.mxu0 %v4331
        %4351 = vmatprep.subr.mxu0 0.0
        %4352 = vmatpush1.msra.mxu0 %v4332
        %4353 = vmatprep.subr.mxu0 0.0
        %4354 = vmatpush1.msra.mxu0 %v4333
        %4355 = vmatprep.subr.mxu0 0.0
        %4356 = vmatpush1.msra.mxu0 %v4334
        %4357 = vmatprep.subr.mxu0 0.0
        %4358 = vmatpush1.msra.mxu0 %v4335
        %4359 = vmatprep.subr.mxu0 0.0
        %4360 = vmatpush1.msra.mxu0 %v4336
        %4361 = vmatprep.subr.mxu0 0.0
        %4362 = vmatpush1.msra.mxu0 %v4337
        %4363 = vmatprep.subr.mxu0 0.0
        %4364 = vmatpush1.msra.mxu0 %v4338
        %4365 = vmatprep.subr.mxu0 0.0
        %4366 = vmatpush1.msra.mxu0 %v4339
        %4367 = vmatprep.subr.mxu0 0.0
        %4368 = vmatpush1.msra.mxu0 %v4340
        %4369 = vmatprep.subr.mxu0 0.0
        %4370 = vmatpush1.msra.mxu0 %v4341
        %4371 = vmatprep.subr.mxu0 0.0
        %4372 = vmatpush1.msra.mxu0 %v4342
        %4373 = vmatprep.subr.mxu0 0.0
        %4374 = vmatpush1.msra.mxu0 %v4343
        %4375 = vmatprep.subr.mxu0 0.0
        %4376 = vmatpush1.msra.mxu0 %v4344
        %4377 = vmatprep.subr.mxu0 0.0
        %4378 = vmatpush1.msra.mxu0 0.0
        %4379 = vmatprep.subr.mxu0 0.0
        %4380 = vmatpush1.msra.mxu0 0.0
        %4381 = vmatprep.subr.mxu0 0.0
        %4382 = vmatpush1.msra.mxu0 0.0
        %4383 = vmatprep.subr.mxu0 0.0
        %4384 = vmatpush1.msra.mxu0 0.0
        %4385 = vmatprep.subr.mxu0 0.0
        %4386 = vmatpush1.msra.mxu0 0.0
        %4387 = vmatprep.subr.mxu0 0.0
        %4388 = vmatpush1.msra.mxu0 0.0
        %4389 = vmatprep.subr.mxu0 0.0
        %4390 = vmatpush1.msra.mxu0 0.0
        %4391 = vmatprep.subr.mxu0 0.0
        %4392 = vmatpush1.msra.mxu0 0.0
        %4393 = vmatprep.subr.mxu0 0.0
        %4394 = vmatpush1.msra.mxu0 0.0
        %4395 = vmatprep.subr.mxu0 0.0
        %4396 = vmatpush1.msra.mxu0 0.0
        %4397 = vmatprep.subr.mxu0 0.0
        %4398 = vmatpush1.msra.mxu0 0.0
        %4399 = vmatprep.subr.mxu0 0.0
        %4400 = vmatpush1.msra.mxu0 0.0
        %4401 = vmatprep.subr.mxu0 0.0
        %4402 = vmatpush1.msra.mxu0 0.0
        %4403 = vmatprep.subr.mxu0 0.0
        %4404 = vmatpush1.msra.mxu0 0.0
        %4405 = vmatprep.subr.mxu0 0.0
        %4406 = vmatpush1.msra.mxu0 0.0
        %4407 = vmatprep.subr.mxu0 0.0
        %4408 = vmatpush1.msra.mxu0 0.0
        %4409 = vmatprep.mubr.f32.mxu0 0.0
        %4410 = vmatmul.mubr.f32.gmra.mrb[0].mxu0 %v4327
        %v4411 = vpop.f32.mrb[0].mxu0
        %v4412 = vadd.f32 0.0, %v4411
        %v4413 = vpop.f32.mrb[0].mxu0
        %4414 = vdwg.mxu0
        %4415 = vmatprep.subr.mxu0 0.0
        %4416 = vmatpush1.msra.mxu0 %v4311
        %4417 = vmatprep.subr.mxu0 0.0
        %4418 = vmatpush1.msra.mxu0 %v4312
        %4419 = vmatprep.subr.mxu0 0.0
        %4420 = vmatpush1.msra.mxu0 %v4313
        %4421 = vmatprep.subr.mxu0 0.0
        %4422 = vmatpush1.msra.mxu0 %v4314
        %4423 = vmatprep.subr.mxu0 0.0
        %4424 = vmatpush1.msra.mxu0 %v4315
        %4425 = vmatprep.subr.mxu0 0.0
        %4426 = vmatpush1.msra.mxu0 %v4316
        %4427 = vmatprep.subr.mxu0 0.0
        %4428 = vmatpush1.msra.mxu0 %v4317
        %4429 = vmatprep.subr.mxu0 0.0
        %4430 = vmatpush1.msra.mxu0 %v4318
        %4431 = vmatprep.subr.mxu0 0.0
        %4432 = vmatpush1.msra.mxu0 %v4319
        %4433 = vmatprep.subr.mxu0 0.0
        %4434 = vmatpush1.msra.mxu0 %v4320
        %4435 = vmatprep.subr.mxu0 0.0
        %4436 = vmatpush1.msra.mxu0 %v4321
        %4437 = vmatprep.subr.mxu0 0.0
        %4438 = vmatpush1.msra.mxu0 %v4322
        %4439 = vmatprep.subr.mxu0 0.0
        %4440 = vmatpush1.msra.mxu0 %v4323
        %4441 = vmatprep.subr.mxu0 0.0
        %4442 = vmatpush1.msra.mxu0 %v4324
        %4443 = vmatprep.subr.mxu0 0.0
        %4444 = vmatpush1.msra.mxu0 %v4325
        %4445 = vmatprep.subr.mxu0 0.0
        %4446 = vmatpush1.msra.mxu0 %v4326
        %4447 = vmatprep.subr.mxu0 0.0
        %4448 = vmatpush1.msra.mxu0 0.0
        %4449 = vmatprep.subr.mxu0 0.0
        %4450 = vmatpush1.msra.mxu0 0.0
        %4451 = vmatprep.subr.mxu0 0.0
        %4452 = vmatpush1.msra.mxu0 0.0
        %4453 = vmatprep.subr.mxu0 0.0
        %4454 = vmatpush1.msra.mxu0 0.0
        %4455 = vmatprep.subr.mxu0 0.0
        %4456 = vmatpush1.msra.mxu0 0.0
        %4457 = vmatprep.subr.mxu0 0.0
        %4458 = vmatpush1.msra.mxu0 0.0
        %4459 = vmatprep.subr.mxu0 0.0
        %4460 = vmatpush1.msra.mxu0 0.0
        %4461 = vmatprep.subr.mxu0 0.0
        %4462 = vmatpush1.msra.mxu0 0.0
        %4463 = vmatprep.subr.mxu0 0.0
        %4464 = vmatpush1.msra.mxu0 0.0
        %4465 = vmatprep.subr.mxu0 0.0
        %4466 = vmatpush1.msra.mxu0 0.0
        %4467 = vmatprep.subr.mxu0 0.0
        %4468 = vmatpush1.msra.mxu0 0.0
        %4469 = vmatprep.subr.mxu0 0.0
        %4470 = vmatpush1.msra.mxu0 0.0
        %4471 = vmatprep.subr.mxu0 0.0
        %4472 = vmatpush1.msra.mxu0 0.0
        %4473 = vmatprep.subr.mxu0 0.0
        %4474 = vmatpush1.msra.mxu0 0.0
        %4475 = vmatprep.subr.mxu0 0.0
        %4476 = vmatpush1.msra.mxu0 0.0
        %4477 = vmatprep.subr.mxu0 0.0
        %4478 = vmatpush1.msra.mxu0 0.0
        %4479 = vmatprep.mubr.f32.mxu0 0.0
        %4480 = vmatmul.mubr.f32.gmra.mrb[0].mxu0 %v4310
        %v4481 = vpop.f32.mrb[0].mxu0
        %v4482 = vadd.f32 %v4412, %v4481
        %v4483 = vpop.f32.mrb[0].mxu0
        %4484 = vdwg.mxu0
        %v4485 = vld [vmem:[#allocation5 + $0x10] sm:$0xff]
        %s4486 = scalar_lea.vmem %s5, 256
        %v4487 = vld [vmem:[%s4486] sm:$0xff]
        %v4488 = vld [vmem:[%s4486 + $0x8] sm:$0xff]
        %v4489 = vld [vmem:[%s4486 + $0x10] sm:$0xff]
        %v4490 = vld [vmem:[%s4486 + $0x18] sm:$0xff]
        %v4491 = vld [vmem:[%s4486 + $0x20] sm:$0xff]
        %v4492 = vld [vmem:[%s4486 + $0x28] sm:$0xff]
        %v4493 = vld [vmem:[%s4486 + $0x30] sm:$0xff]
        %v4494 = vld [vmem:[%s4486 + $0x38] sm:$0xff]
        %v4495 = vld [vmem:[%s4486 + $0x40] sm:$0xff]
        %v4496 = vld [vmem:[%s4486 + $0x48] sm:$0xff]
        %v4497 = vld [vmem:[%s4486 + $0x50] sm:$0xff]
        %v4498 = vld [vmem:[%s4486 + $0x58] sm:$0xff]
        %v4499 = vld [vmem:[%s4486 + $0x60] sm:$0xff]
        %v4500 = vld [vmem:[%s4486 + $0x68] sm:$0xff]
        %v4501 = vld [vmem:[%s4486 + $0x70] sm:$0xff]
        %v4502 = vld [vmem:[%s4486 + $0x78] sm:$0xff]
        %4503 = vmatprep.subr.mxu0 0.0
        %4504 = vmatpush1.msra.mxu0 %v4487
        %4505 = vmatprep.subr.mxu0 0.0
        %4506 = vmatpush1.msra.mxu0 %v4488
        %4507 = vmatprep.subr.mxu0 0.0
        %4508 = vmatpush1.msra.mxu0 %v4489
        %4509 = vmatprep.subr.mxu0 0.0
        %4510 = vmatpush1.msra.mxu0 %v4490
        %4511 = vmatprep.subr.mxu0 0.0
        %4512 = vmatpush1.msra.mxu0 %v4491
        %4513 = vmatprep.subr.mxu0 0.0
        %4514 = vmatpush1.msra.mxu0 %v4492
        %4515 = vmatprep.subr.mxu0 0.0
        %4516 = vmatpush1.msra.mxu0 %v4493
        %4517 = vmatprep.subr.mxu0 0.0
        %4518 = vmatpush1.msra.mxu0 %v4494
        %4519 = vmatprep.subr.mxu0 0.0
        %4520 = vmatpush1.msra.mxu0 %v4495
        %4521 = vmatprep.subr.mxu0 0.0
        %4522 = vmatpush1.msra.mxu0 %v4496
        %4523 = vmatprep.subr.mxu0 0.0
        %4524 = vmatpush1.msra.mxu0 %v4497
        %4525 = vmatprep.subr.mxu0 0.0
        %4526 = vmatpush1.msra.mxu0 %v4498
        %4527 = vmatprep.subr.mxu0 0.0
        %4528 = vmatpush1.msra.mxu0 %v4499
        %4529 = vmatprep.subr.mxu0 0.0
        %4530 = vmatpush1.msra.mxu0 %v4500
        %4531 = vmatprep.subr.mxu0 0.0
        %4532 = vmatpush1.msra.mxu0 %v4501
        %4533 = vmatprep.subr.mxu0 0.0
        %4534 = vmatpush1.msra.mxu0 %v4502
        %4535 = vmatprep.subr.mxu0 0.0
        %4536 = vmatpush1.msra.mxu0 0.0
        %4537 = vmatprep.subr.mxu0 0.0
        %4538 = vmatpush1.msra.mxu0 0.0
        %4539 = vmatprep.subr.mxu0 0.0
        %4540 = vmatpush1.msra.mxu0 0.0
        %4541 = vmatprep.subr.mxu0 0.0
        %4542 = vmatpush1.msra.mxu0 0.0
        %4543 = vmatprep.subr.mxu0 0.0
        %4544 = vmatpush1.msra.mxu0 0.0
        %4545 = vmatprep.subr.mxu0 0.0
        %4546 = vmatpush1.msra.mxu0 0.0
        %4547 = vmatprep.subr.mxu0 0.0
        %4548 = vmatpush1.msra.mxu0 0.0
        %4549 = vmatprep.subr.mxu0 0.0
        %4550 = vmatpush1.msra.mxu0 0.0
        %4551 = vmatprep.subr.mxu0 0.0
        %4552 = vmatpush1.msra.mxu0 0.0
        %4553 = vmatprep.subr.mxu0 0.0
        %4554 = vmatpush1.msra.mxu0 0.0
        %4555 = vmatprep.subr.mxu0 0.0
        %4556 = vmatpush1.msra.mxu0 0.0
        %4557 = vmatprep.subr.mxu0 0.0
        %4558 = vmatpush1.msra.mxu0 0.0
        %4559 = vmatprep.subr.mxu0 0.0
        %4560 = vmatpush1.msra.mxu0 0.0
        %4561 = vmatprep.subr.mxu0 0.0
        %4562 = vmatpush1.msra.mxu0 0.0
        %4563 = vmatprep.subr.mxu0 0.0
        %4564 = vmatpush1.msra.mxu0 0.0
        %4565 = vmatprep.subr.mxu0 0.0
        %4566 = vmatpush1.msra.mxu0 0.0
        %4567 = vmatprep.mubr.f32.mxu0 0.0
        %4568 = vmatmul.mubr.f32.gmra.mrb[0].mxu0 %v4485
        %v4569 = vpop.f32.mrb[0].mxu0
        %v4570 = vadd.f32 0.0, %v4569
        %v4571 = vpop.f32.mrb[0].mxu0
        %4572 = vdwg.mxu0
        %v4573 = vadd.f32 %v4482, %v4570
        %v4574 = vld [vmem:[#allocation5 + $0x18] sm:$0xff]
        %s4575 = scalar_lea.vmem %s5, 384
        %v4576 = vld [vmem:[%s4575] sm:$0xff]
        %v4577 = vld [vmem:[%s4575 + $0x8] sm:$0xff]
        %v4578 = vld [vmem:[%s4575 + $0x10] sm:$0xff]
        %v4579 = vld [vmem:[%s4575 + $0x18] sm:$0xff]
        %v4580 = vld [vmem:[%s4575 + $0x20] sm:$0xff]
        %v4581 = vld [vmem:[%s4575 + $0x28] sm:$0xff]
        %v4582 = vld [vmem:[%s4575 + $0x30] sm:$0xff]
        %v4583 = vld [vmem:[%s4575 + $0x38] sm:$0xff]
        %v4584 = vld [vmem:[%s4575 + $0x40] sm:$0xff]
        %v4585 = vld [vmem:[%s4575 + $0x48] sm:$0xff]
        %v4586 = vld [vmem:[%s4575 + $0x50] sm:$0xff]
        %v4587 = vld [vmem:[%s4575 + $0x58] sm:$0xff]
        %v4588 = vld [vmem:[%s4575 + $0x60] sm:$0xff]
        %v4589 = vld [vmem:[%s4575 + $0x68] sm:$0xff]
        %v4590 = vld [vmem:[%s4575 + $0x70] sm:$0xff]
        %v4591 = vld [vmem:[%s4575 + $0x78] sm:$0xff]
        %4592 = vmatprep.subr.mxu0 0.0
        %4593 = vmatpush1.msra.mxu0 %v4576
        %4594 = vmatprep.subr.mxu0 0.0
        %4595 = vmatpush1.msra.mxu0 %v4577
        %4596 = vmatprep.subr.mxu0 0.0
        %4597 = vmatpush1.msra.mxu0 %v4578
        %4598 = vmatprep.subr.mxu0 0.0
        %4599 = vmatpush1.msra.mxu0 %v4579
        %4600 = vmatprep.subr.mxu0 0.0
        %4601 = vmatpush1.msra.mxu0 %v4580
        %4602 = vmatprep.subr.mxu0 0.0
        %4603 = vmatpush1.msra.mxu0 %v4581
        %4604 = vmatprep.subr.mxu0 0.0
        %4605 = vmatpush1.msra.mxu0 %v4582
        %4606 = vmatprep.subr.mxu0 0.0
        %4607 = vmatpush1.msra.mxu0 %v4583
        %4608 = vmatprep.subr.mxu0 0.0
        %4609 = vmatpush1.msra.mxu0 %v4584
        %4610 = vmatprep.subr.mxu0 0.0
        %4611 = vmatpush1.msra.mxu0 %v4585
        %4612 = vmatprep.subr.mxu0 0.0
        %4613 = vmatpush1.msra.mxu0 %v4586
        %4614 = vmatprep.subr.mxu0 0.0
        %4615 = vmatpush1.msra.mxu0 %v4587
        %4616 = vmatprep.subr.mxu0 0.0
        %4617 = vmatpush1.msra.mxu0 %v4588
        %4618 = vmatprep.subr.mxu0 0.0
        %4619 = vmatpush1.msra.mxu0 %v4589
        %4620 = vmatprep.subr.mxu0 0.0
        %4621 = vmatpush1.msra.mxu0 %v4590
        %4622 = vmatprep.subr.mxu0 0.0
        %4623 = vmatpush1.msra.mxu0 %v4591
        %4624 = vmatprep.subr.mxu0 0.0
        %4625 = vmatpush1.msra.mxu0 0.0
        %4626 = vmatprep.subr.mxu0 0.0
        %4627 = vmatpush1.msra.mxu0 0.0
        %4628 = vmatprep.subr.mxu0 0.0
        %4629 = vmatpush1.msra.mxu0 0.0
        %4630 = vmatprep.subr.mxu0 0.0
        %4631 = vmatpush1.msra.mxu0 0.0
        %4632 = vmatprep.subr.mxu0 0.0
        %4633 = vmatpush1.msra.mxu0 0.0
        %4634 = vmatprep.subr.mxu0 0.0
        %4635 = vmatpush1.msra.mxu0 0.0
        %4636 = vmatprep.subr.mxu0 0.0
        %4637 = vmatpush1.msra.mxu0 0.0
        %4638 = vmatprep.subr.mxu0 0.0
        %4639 = vmatpush1.msra.mxu0 0.0
        %4640 = vmatprep.subr.mxu0 0.0
        %4641 = vmatpush1.msra.mxu0 0.0
        %4642 = vmatprep.subr.mxu0 0.0
        %4643 = vmatpush1.msra.mxu0 0.0
        %4644 = vmatprep.subr.mxu0 0.0
        %4645 = vmatpush1.msra.mxu0 0.0
        %4646 = vmatprep.subr.mxu0 0.0
        %4647 = vmatpush1.msra.mxu0 0.0
        %4648 = vmatprep.subr.mxu0 0.0
        %4649 = vmatpush1.msra.mxu0 0.0
        %4650 = vmatprep.subr.mxu0 0.0
        %4651 = vmatpush1.msra.mxu0 0.0
        %4652 = vmatprep.subr.mxu0 0.0
        %4653 = vmatpush1.msra.mxu0 0.0
        %4654 = vmatprep.subr.mxu0 0.0
        %4655 = vmatpush1.msra.mxu0 0.0
        %4656 = vmatprep.mubr.f32.mxu0 0.0
        %4657 = vmatmul.mubr.f32.gmra.mrb[0].mxu0 %v4574
        %v4658 = vpop.f32.mrb[0].mxu0
        %v4659 = vadd.f32 0.0, %v4658
        %v4660 = vpop.f32.mrb[0].mxu0
        %4661 = vdwg.mxu0
        %v4662 = vadd.f32 %v4573, %v4659
        %v4663 = vld [vmem:[#allocation5 + $0x20] sm:$0xff]
        %s4664 = scalar_lea.vmem %s5, 512
        %v4665 = vld [vmem:[%s4664] sm:$0xff]
        %v4666 = vld [vmem:[%s4664 + $0x8] sm:$0xff]
        %v4667 = vld [vmem:[%s4664 + $0x10] sm:$0xff]
        %v4668 = vld [vmem:[%s4664 + $0x18] sm:$0xff]
        %v4669 = vld [vmem:[%s4664 + $0x20] sm:$0xff]
        %v4670 = vld [vmem:[%s4664 + $0x28] sm:$0xff]
        %v4671 = vld [vmem:[%s4664 + $0x30] sm:$0xff]
        %v4672 = vld [vmem:[%s4664 + $0x38] sm:$0xff]
        %v4673 = vld [vmem:[%s4664 + $0x40] sm:$0xff]
        %v4674 = vld [vmem:[%s4664 + $0x48] sm:$0xff]
        %v4675 = vld [vmem:[%s4664 + $0x50] sm:$0xff]
        %v4676 = vld [vmem:[%s4664 + $0x58] sm:$0xff]
        %v4677 = vld [vmem:[%s4664 + $0x60] sm:$0xff]
        %v4678 = vld [vmem:[%s4664 + $0x68] sm:$0xff]
        %v4679 = vld [vmem:[%s4664 + $0x70] sm:$0xff]
        %v4680 = vld [vmem:[%s4664 + $0x78] sm:$0xff]
        %4681 = vmatprep.subr.mxu0 0.0
        %4682 = vmatpush1.msra.mxu0 %v4665
        %4683 = vmatprep.subr.mxu0 0.0
        %4684 = vmatpush1.msra.mxu0 %v4666
        %4685 = vmatprep.subr.mxu0 0.0
        %4686 = vmatpush1.msra.mxu0 %v4667
        %4687 = vmatprep.subr.mxu0 0.0
        %4688 = vmatpush1.msra.mxu0 %v4668
        %4689 = vmatprep.subr.mxu0 0.0
        %4690 = vmatpush1.msra.mxu0 %v4669
        %4691 = vmatprep.subr.mxu0 0.0
        %4692 = vmatpush1.msra.mxu0 %v4670
        %4693 = vmatprep.subr.mxu0 0.0
        %4694 = vmatpush1.msra.mxu0 %v4671
        %4695 = vmatprep.subr.mxu0 0.0
        %4696 = vmatpush1.msra.mxu0 %v4672
        %4697 = vmatprep.subr.mxu0 0.0
        %4698 = vmatpush1.msra.mxu0 %v4673
        %4699 = vmatprep.subr.mxu0 0.0
        %4700 = vmatpush1.msra.mxu0 %v4674
        %4701 = vmatprep.subr.mxu0 0.0
        %4702 = vmatpush1.msra.mxu0 %v4675
        %4703 = vmatprep.subr.mxu0 0.0
        %4704 = vmatpush1.msra.mxu0 %v4676
        %4705 = vmatprep.subr.mxu0 0.0
        %4706 = vmatpush1.msra.mxu0 %v4677
        %4707 = vmatprep.subr.mxu0 0.0
        %4708 = vmatpush1.msra.mxu0 %v4678
        %4709 = vmatprep.subr.mxu0 0.0
        %4710 = vmatpush1.msra.mxu0 %v4679
        %4711 = vmatprep.subr.mxu0 0.0
        %4712 = vmatpush1.msra.mxu0 %v4680
        %4713 = vmatprep.subr.mxu0 0.0
        %4714 = vmatpush1.msra.mxu0 0.0
        %4715 = vmatprep.subr.mxu0 0.0
        %4716 = vmatpush1.msra.mxu0 0.0
        %4717 = vmatprep.subr.mxu0 0.0
        %4718 = vmatpush1.msra.mxu0 0.0
        %4719 = vmatprep.subr.mxu0 0.0
        %4720 = vmatpush1.msra.mxu0 0.0
        %4721 = vmatprep.subr.mxu0 0.0
        %4722 = vmatpush1.msra.mxu0 0.0
        %4723 = vmatprep.subr.mxu0 0.0
        %4724 = vmatpush1.msra.mxu0 0.0
        %4725 = vmatprep.subr.mxu0 0.0
        %4726 = vmatpush1.msra.mxu0 0.0
        %4727 = vmatprep.subr.mxu0 0.0
        %4728 = vmatpush1.msra.mxu0 0.0
        %4729 = vmatprep.subr.mxu0 0.0
        %4730 = vmatpush1.msra.mxu0 0.0
        %4731 = vmatprep.subr.mxu0 0.0
        %4732 = vmatpush1.msra.mxu0 0.0
        %4733 = vmatprep.subr.mxu0 0.0
        %4734 = vmatpush1.msra.mxu0 0.0
        %4735 = vmatprep.subr.mxu0 0.0
        %4736 = vmatpush1.msra.mxu0 0.0
        %4737 = vmatprep.subr.mxu0 0.0
        %4738 = vmatpush1.msra.mxu0 0.0
        %4739 = vmatprep.subr.mxu0 0.0
        %4740 = vmatpush1.msra.mxu0 0.0
        %4741 = vmatprep.subr.mxu0 0.0
        %4742 = vmatpush1.msra.mxu0 0.0
        %4743 = vmatprep.subr.mxu0 0.0
        %4744 = vmatpush1.msra.mxu0 0.0
        %4745 = vmatprep.mubr.f32.mxu0 0.0
        %4746 = vmatmul.mubr.f32.gmra.mrb[0].mxu0 %v4663
        %v4747 = vpop.f32.mrb[0].mxu0
        %v4748 = vadd.f32 0.0, %v4747
        %v4749 = vpop.f32.mrb[0].mxu0
        %4750 = vdwg.mxu0
        %v4751 = vadd.f32 %v4662, %v4748
        %v4752 = vld [vmem:[%s6] sm:$0x1]
        %v4754 = vlaneseq
        %v4755 = vshrl.u32 %v4754, 7
        %v4756 = vsub.s32 0, %v4755
        %v4757 = vrot.slane %v4752, %v4756
        %v4759 = vadd.f32 %v4751, %v4757
        %v4760 = vmax.f32 %v4759, 0.0
        %v4761 = vld [vmem:[%s7] sm:$0xff]
        %v4762 = vld [vmem:[%s7 + $0x8] sm:$0xff]
        %v4763 = vld [vmem:[%s7 + $0x10] sm:$0xff]
        %v4764 = vld [vmem:[%s7 + $0x18] sm:$0xff]
        %v4765 = vld [vmem:[%s7 + $0x20] sm:$0xff]
        %v4766 = vld [vmem:[%s7 + $0x28] sm:$0xff]
        %v4767 = vld [vmem:[%s7 + $0x30] sm:$0xff]
        %v4768 = vld [vmem:[%s7 + $0x38] sm:$0xff]
        %v4769 = vld [vmem:[%s7 + $0x40] sm:$0xff]
        %v4770 = vld [vmem:[%s7 + $0x48] sm:$0xff]
        %v4771 = vld [vmem:[%s7 + $0x50] sm:$0xff]
        %v4772 = vld [vmem:[%s7 + $0x58] sm:$0xff]
        %v4773 = vld [vmem:[%s7 + $0x60] sm:$0xff]
        %v4774 = vld [vmem:[%s7 + $0x68] sm:$0xff]
        %v4775 = vld [vmem:[%s7 + $0x70] sm:$0xff]
        %v4776 = vld [vmem:[%s8] sm:$0x1]
        %v4778 = vlaneseq
        %v4779 = vshrl.u32 %v4778, 7
        %v4780 = vsub.s32 0, %v4779
        %v4781 = vrot.slane %v4776, %v4780
        %vm4783 = vcmask 982016
        %v4785 = vsel %vm4783, %v4760, 0
        %4787 = vmatprep.subr.mxu0 0.0
        %4788 = vmatpush1.msra.mxu0 %v4761
        %4789 = vmatprep.subr.mxu0 0.0
        %4790 = vmatpush1.msra.mxu0 %v4762
        %4791 = vmatprep.subr.mxu0 0.0
        %4792 = vmatpush1.msra.mxu0 %v4763
        %4793 = vmatprep.subr.mxu0 0.0
        %4794 = vmatpush1.msra.mxu0 %v4764
        %4795 = vmatprep.subr.mxu0 0.0
        %4796 = vmatpush1.msra.mxu0 %v4765
        %4797 = vmatprep.subr.mxu0 0.0
        %4798 = vmatpush1.msra.mxu0 %v4766
        %4799 = vmatprep.subr.mxu0 0.0
        %4800 = vmatpush1.msra.mxu0 %v4767
        %4801 = vmatprep.subr.mxu0 0.0
        %4802 = vmatpush1.msra.mxu0 %v4768
        %4803 = vmatprep.subr.mxu0 0.0
        %4804 = vmatpush1.msra.mxu0 %v4769
        %4805 = vmatprep.subr.mxu0 0.0
        %4806 = vmatpush1.msra.mxu0 %v4770
        %4807 = vmatprep.subr.mxu0 0.0
        %4808 = vmatpush1.msra.mxu0 %v4771
        %4809 = vmatprep.subr.mxu0 0.0
        %4810 = vmatpush1.msra.mxu0 %v4772
        %4811 = vmatprep.subr.mxu0 0.0
        %4812 = vmatpush1.msra.mxu0 %v4773
        %4813 = vmatprep.subr.mxu0 0.0
        %4814 = vmatpush1.msra.mxu0 %v4774
        %4815 = vmatprep.subr.mxu0 0.0
        %4816 = vmatpush1.msra.mxu0 %v4775
        %4817 = vmatprep.subr.mxu0 0.0
        %4818 = vmatpush1.msra.mxu0 0.0
        %4819 = vmatprep.subr.mxu0 0.0
        %4820 = vmatpush1.msra.mxu0 0.0
        %4821 = vmatprep.subr.mxu0 0.0
        %4822 = vmatpush1.msra.mxu0 0.0
        %4823 = vmatprep.subr.mxu0 0.0
        %4824 = vmatpush1.msra.mxu0 0.0
        %4825 = vmatprep.subr.mxu0 0.0
        %4826 = vmatpush1.msra.mxu0 0.0
        %4827 = vmatprep.subr.mxu0 0.0
        %4828 = vmatpush1.msra.mxu0 0.0
        %4829 = vmatprep.subr.mxu0 0.0
        %4830 = vmatpush1.msra.mxu0 0.0
        %4831 = vmatprep.subr.mxu0 0.0
        %4832 = vmatpush1.msra.mxu0 0.0
        %4833 = vmatprep.subr.mxu0 0.0
        %4834 = vmatpush1.msra.mxu0 0.0
        %4835 = vmatprep.subr.mxu0 0.0
        %4836 = vmatpush1.msra.mxu0 0.0
        %4837 = vmatprep.subr.mxu0 0.0
        %4838 = vmatpush1.msra.mxu0 0.0
        %4839 = vmatprep.subr.mxu0 0.0
        %4840 = vmatpush1.msra.mxu0 0.0
        %4841 = vmatprep.subr.mxu0 0.0
        %4842 = vmatpush1.msra.mxu0 0.0
        %4843 = vmatprep.subr.mxu0 0.0
        %4844 = vmatpush1.msra.mxu0 0.0
        %4845 = vmatprep.subr.mxu0 0.0
        %4846 = vmatpush1.msra.mxu0 0.0
        %4847 = vmatprep.subr.mxu0 0.0
        %4848 = vmatpush1.msra.mxu0 0.0
        %4849 = vmatprep.subr.mxu0 0.0
        %4850 = vmatpush1.msra.mxu0 0.0
        %4851 = vmatprep.mubr.f32.mxu0 0.0
        %4852 = vmatmul.mubr.f32.gmra.mrb[0].mxu0 %v4785
        %v4853 = vpop.f32.mrb[0].mxu0
        %v4854 = vadd.f32 %v4781, %v4853
        %v4855 = vpop.f32.mrb[0].mxu0
        %4856 = vdwg.mxu0
        %v4857 = vmax.f32 %v4854, 0.0
        %v4858 = vld [vmem:[%s9] sm:$0xff]
        %v4859 = vld [vmem:[%s9 + $0x8] sm:$0xff]
        %v4860 = vld [vmem:[%s9 + $0x10] sm:$0xff]
        %v4861 = vld [vmem:[%s9 + $0x18] sm:$0xff]
        %v4862 = vld [vmem:[%s9 + $0x20] sm:$0xff]
        %v4863 = vld [vmem:[%s9 + $0x28] sm:$0xff]
        %v4864 = vld [vmem:[%s9 + $0x30] sm:$0xff]
        %v4865 = vld [vmem:[%s9 + $0x38] sm:$0xff]
        %v4866 = vld [vmem:[%s9 + $0x40] sm:$0xff]
        %v4867 = vld [vmem:[%s9 + $0x48] sm:$0xff]
        %v4868 = vld [vmem:[%s9 + $0x50] sm:$0xf]
        %v4869 = vld [vmem:[%s10] sm:$0x1]
        %v4871 = vlaneseq
        %v4872 = vshrl.u32 %v4871, 7
        %v4873 = vsub.s32 0, %v4872
        %v4874 = vrot.slane %v4869, %v4873
        %vm4876 = vcmask 687104
        %v4878 = vsel %vm4876, %v4857, 0
        %vm4880 = vcmask 1043456
        %v4882 = vsel %vm4880, %v4868, 0
        %4884 = vmatprep.subr.mxu0 0.0
        %4885 = vmatpush1.msra.mxu0 %v4858
        %4886 = vmatprep.subr.mxu0 0.0
        %4887 = vmatpush1.msra.mxu0 %v4859
        %4888 = vmatprep.subr.mxu0 0.0
        %4889 = vmatpush1.msra.mxu0 %v4860
        %4890 = vmatprep.subr.mxu0 0.0
        %4891 = vmatpush1.msra.mxu0 %v4861
        %4892 = vmatprep.subr.mxu0 0.0
        %4893 = vmatpush1.msra.mxu0 %v4862
        %4894 = vmatprep.subr.mxu0 0.0
        %4895 = vmatpush1.msra.mxu0 %v4863
        %4896 = vmatprep.subr.mxu0 0.0
        %4897 = vmatpush1.msra.mxu0 %v4864
        %4898 = vmatprep.subr.mxu0 0.0
        %4899 = vmatpush1.msra.mxu0 %v4865
        %4900 = vmatprep.subr.mxu0 0.0
        %4901 = vmatpush1.msra.mxu0 %v4866
        %4902 = vmatprep.subr.mxu0 0.0
        %4903 = vmatpush1.msra.mxu0 %v4867
        %4904 = vmatprep.subr.mxu0 0.0
        %4905 = vmatpush1.msra.mxu0 %v4882
        %4906 = vmatprep.subr.mxu0 0.0
        %4907 = vmatpush1.msra.mxu0 0.0
        %4908 = vmatprep.subr.mxu0 0.0
        %4909 = vmatpush1.msra.mxu0 0.0
        %4910 = vmatprep.subr.mxu0 0.0
        %4911 = vmatpush1.msra.mxu0 0.0
        %4912 = vmatprep.subr.mxu0 0.0
        %4913 = vmatpush1.msra.mxu0 0.0
        %4914 = vmatprep.subr.mxu0 0.0
        %4915 = vmatpush1.msra.mxu0 0.0
        %4916 = vmatprep.subr.mxu0 0.0
        %4917 = vmatpush1.msra.mxu0 0.0
        %4918 = vmatprep.subr.mxu0 0.0
        %4919 = vmatpush1.msra.mxu0 0.0
        %4920 = vmatprep.subr.mxu0 0.0
        %4921 = vmatpush1.msra.mxu0 0.0
        %4922 = vmatprep.subr.mxu0 0.0
        %4923 = vmatpush1.msra.mxu0 0.0
        %4924 = vmatprep.subr.mxu0 0.0
        %4925 = vmatpush1.msra.mxu0 0.0
        %4926 = vmatprep.subr.mxu0 0.0
        %4927 = vmatpush1.msra.mxu0 0.0
        %4928 = vmatprep.subr.mxu0 0.0
        %4929 = vmatpush1.msra.mxu0 0.0
        %4930 = vmatprep.subr.mxu0 0.0
        %4931 = vmatpush1.msra.mxu0 0.0
        %4932 = vmatprep.subr.mxu0 0.0
        %4933 = vmatpush1.msra.mxu0 0.0
        %4934 = vmatprep.subr.mxu0 0.0
        %4935 = vmatpush1.msra.mxu0 0.0
        %4936 = vmatprep.subr.mxu0 0.0
        %4937 = vmatpush1.msra.mxu0 0.0
        %4938 = vmatprep.subr.mxu0 0.0
        %4939 = vmatpush1.msra.mxu0 0.0
        %4940 = vmatprep.subr.mxu0 0.0
        %4941 = vmatpush1.msra.mxu0 0.0
        %4942 = vmatprep.subr.mxu0 0.0
        %4943 = vmatpush1.msra.mxu0 0.0
        %4944 = vmatprep.subr.mxu0 0.0
        %4945 = vmatpush1.msra.mxu0 0.0
        %4946 = vmatprep.subr.mxu0 0.0
        %4947 = vmatpush1.msra.mxu0 0.0
        %4948 = vmatprep.mubr.f32.mxu0 0.0
        %4949 = vmatmul.mubr.f32.gmra.mrb[0].mxu0 %v4878
        %v4950 = vpop.f32.mrb[0].mxu0
        %v4951 = vadd.f32 %v4874, %v4950
        %v4952 = vpop.f32.mrb[0].mxu0
        %4953 = vdwg.mxu0
        %vm4954 = vcmask 80896
        %4955 = vst.msk [vmem:[%s379] sm:$0xff] %vm4954, %v4951
        %s4956 = sand.u32 %s269, 1
        %s4957 = scalar_lea.sflag [#allocation7], %s4956
        %s4958 = sand.u32 %s269, 1
        %s4959 = smul.addr %s4958, 8
        %s4960 = scalar_lea.vmem [#allocation6], %s4959
        // Predicated region
        $region65: #{lenet_forward.1} parent=63 // pred_check
          %p4961 = pneg %p279
        $region66: #{lenet_forward.1} parent=63 // pred_check_branch
          %4963 = sbr.rel (%p4961) target = $region68
        $region67: #{lenet_forward.1} parent=63 // pred_region
          %s4965 = ssub.s32 128, 128
          %4966 = vsyncadd %s4957, %s4965
          %s4967 = smul.addr %s25, 128
          %s4968 = scalar_lea.hbm %s11, %s4967
          %s4970 = sshll.u32 %s4960, 4
          %s4971 = int_to_ptr.vmem [resolvable:$true] %s4970
          %4973 = dma.vmem_to_hbm [thread:$0]  %s4971, 128, %s4968, %s4957
        $region68: #{lenet_forward.1} parent=63 // pred_fallthru
          _
      $region64: #{lenet_forward.1} parent=5 // pred_fallthru
        _
      %p4974 = scmp.le.s32.totalorder 2, %s20
      // Predicated region
      $region69: #{lenet_forward.1} parent=5 // pred_check
        %p4975 = pneg %p4974
      $region70: #{lenet_forward.1} parent=5 // pred_check_branch
        %4977 = sbr.rel (%p4975) target = $region72
      $region71: #{lenet_forward.1} parent=5 // pred_region
        %s4978 = ssub.s32 %s20, 2
        // Predicated region
        $region73: #{lenet_forward.1} parent=71 // pred_check
          %p4979 = pneg %p285
        $region74: #{lenet_forward.1} parent=71 // pred_check_branch
          %4981 = sbr.rel (%p4979) target = $region76
        $region75: #{lenet_forward.1} parent=71 // pred_region
          %s4982 = sand.u32 %s270, 1
          %s4983 = scalar_lea.sflag [#allocation7], %s4982
          %s4984 = sand.u32 %s270, 1
          %s4985 = smul.addr %s4984, 8
          %s4986 = scalar_lea.vmem [#allocation6], %s4985
          %4987 = dma.done %s4983, 128
        $region76: #{lenet_forward.1} parent=71 // pred_fallthru
          _
      $region72: #{lenet_forward.1} parent=5 // pred_fallthru
        _
    $region6: #{lenet_forward.1} parent=1 // loop_footer
      %s24 = sadd.s32 1, %s20
    $region7: #{lenet_forward.1} parent=1 // loop_footer_branch
      %19 = sbr.rel target = $region3
    $region8: #{lenet_forward.1} parent=1 // loop_exit
      _
    %4988 = vsyncpa [#allocation7], 1
    %s4989 = scalar_lea.sflag [#allocation7], 1
    %4990 = vsyncpa %s4989, 1

</llo_original>
